<compile_context>
chip_gen: v5e
topology: v5e:2x2
jax: 0.10.0
libtpu: 0.0.40
codegen_flags: <defaults>
</compile_context>

<pallas_src>
import functools

import numpy as np
import jax
import jax.numpy as jnp
from jax.experimental import pallas as pl
from jax.experimental.pallas import tpu as pltpu

# ----------------------------- config ("args") ------------------------------
NEG = 0.2            # args.neg
IN_DIM = 16          # args.in_dim  (== image width W, Linear acts on last dim)
HIDDEN = 32          # args.hidden_size
NUM_LAYERS = 2       # args.num_hidden_layers
NUM_HEADS = 4        # args.num_attention_heads
INTER = 64           # args.intermediate_size
QUANT_FACTOR = 1     # args.quant_factor -> single stride-2 conv1d block (no MaxPool)
IMG_H = 16
IMG_W = IN_DIM
C1 = 64              # conv1 mid channels
T_OUT = IMG_H // 2   # squasher output length (stride-2)
EPS = 1e-5

# --------- "wpack" packed small-parameter buffer: row layout (f32, 136 x 160) ----------
R_SQW = 0                     # rows 0:32,   lanes 0:160  squasher Conv1d weights [W_0|..|W_4]
R_LE = 32                     # rows 32:64,  lanes 0:32   linear-embedding weight
R_B2VM = 64                   # 1 row,       lanes 0:32   folded conv2+vertice_mapping bias
R_BSQ = 65                    # 1 row,       lanes 0:32   squasher bias
R_BQKV = 66                   # 2 rows,      lanes 0:96   per-layer fused QKV bias
R_BO = 68                     # 2 rows,      lanes 0:32   attention out-proj bias
R_G1 = 70                     # 2 rows       LN1 gamma
R_BE1 = 72                    # 2 rows       LN1 beta
R_BF1 = 74                    # 2 rows,      lanes 0:64   FFN in bias
R_BF2 = 76                    # 2 rows       FFN out bias
R_G2 = 78                     # 2 rows       LN2 gamma
R_BE2 = 80                    # 2 rows       LN2 beta
R_PE = 88                     # rows 88:96,  lanes 0:32   sinusoidal PE + LE bias (pre-summed)
R_SEL = 96                    # rows 96:136, lanes 0:16   5 x (8,16) squasher gather selectors
WPACK_ROWS = R_SEL + 5 * T_OUT          # 136
WPACK_LANES = 5 * HIDDEN                # 160

# --------- "wlayers" transformer matmul weights (f32, 320 x 96, DMA-overlapped) ---------
RL_QKV = 0                    # rows 0:64   (32/layer), lanes 0:96
RL_WO = 64                    # rows 64:128 (32/layer), lanes 0:32
RL_WF1 = 128                  # rows 128:192 (32/layer), lanes 0:64
RL_WF2 = 192                  # rows 192:320 (64/layer), lanes 0:32
WLAYER_ROWS = RL_WF2 + 2 * INTER        # 320
WLAYER_LANES = 3 * HIDDEN               # 96


def vmem_spec():
    # tiny model -> every array fully VMEM-resident, no grid
    return pl.BlockSpec(memory_space=pltpu.MemorySpace.VMEM)


# ------------------------------- fused kernel --------------------------------
def fused_encoder_kernel(xpad_ref, xw1_ref, b1_ref, w2vm_ref, wpack_ref, wlayers_hbm,
                         o_ref, wl_ref, dma_sem, *, num_heads, num_layers, neg):
    f32 = jnp.float32
    bf16 = jnp.bfloat16
    H, d = IMG_H, HIDDEN
    dh = d // num_heads

    # Kick off the transformer-layer weight DMA (HBM -> VMEM scratch); it overlaps with
    # the conv / squasher / embedding compute below (all other inputs were auto-copied
    # by Pallas before kernel entry).
    layer_cp = pltpu.make_async_copy(wlayers_hbm, wl_ref, dma_sem)
    layer_cp.start()

    # ---- conv1: Conv2d(3->64, k=3, pad=1) + ReLU as ONE bf16 matmul against a folded
    #      Toeplitz weight (K = 3*(W+2)*3 = 162, N = W*64 = 1024, lane-dense output). ----
    x1 = jnp.concatenate([xpad_ref[0:H, :], xpad_ref[1:H + 1, :], xpad_ref[2:H + 2, :]],
                         axis=1).astype(bf16)                                   # (16, 162)
    y1 = jnp.dot(x1, xw1_ref[...], preferred_element_type=f32) + b1_ref[...]
    y1 = jnp.maximum(y1, 0.0).astype(bf16)                                      # (16, 1024)

    # ---- conv2 (64->1, k=3, pad=1) folded with vertice_mapping3 (Linear W->hidden):
    #      one bf16 matmul over the UNPADDED conv1 output (one 32-lane block per ky tap,
    #      kx zero-padding folded into the weight), then two tiny sublane shifts realize
    #      the ky = -1/+1 taps.  No padded scratch, no im2col concat. ----
    A = jnp.dot(y1, w2vm_ref[...], preferred_element_type=f32)                  # (16, 96)
    zrow = jnp.zeros((1, d), f32)
    top = jnp.concatenate([zrow, A[0:H - 1, 0:d]], axis=0)                      # ky = 0 tap
    bot = jnp.concatenate([A[1:H, 2 * d:3 * d], zrow], axis=0)                  # ky = 2 tap
    vm = top + A[:, d:2 * d] + bot + wpack_ref[R_B2VM:R_B2VM + 1, 0:d]
    vm = jnp.where(vm >= 0.0, vm, neg * vm)                                     # (16, 32)

    # ---- squasher: Conv1d(k=5, stride=2, replicate pad) + LeakyReLU + InstanceNorm1d.
    #      One matmul vm @ [W_0|..|W_4] plus 5 accumulating matmuls against constant 0/1
    #      clamp/stride-2 selectors (replaces 40 masked single-row stores + scratch). ----
    y5 = jnp.dot(vm, wpack_ref[R_SQW:R_SQW + d, :], preferred_element_type=f32)  # (16, 160)
    sq = wpack_ref[R_BSQ:R_BSQ + 1, 0:d]                                         # broadcasts
    for k in range(5):
        sel_k = wpack_ref[R_SEL + k * T_OUT:R_SEL + (k + 1) * T_OUT, 0:H]        # (8, 16)
        sq = sq + jnp.dot(sel_k, y5[:, k * d:(k + 1) * d], preferred_element_type=f32)
    sq = jnp.where(sq >= 0.0, sq, neg * sq)                                      # (8, 32)
    mu = jnp.mean(sq, axis=0, keepdims=True)                                     # InstanceNorm1d
    var = jnp.mean((sq - mu) ** 2, axis=0, keepdims=True)
    sq = (sq - mu) * jax.lax.rsqrt(var + EPS)

    # ---- linear embedding + positional encoding (LE bias pre-summed into PE; dropout=id) ----
    h = jnp.dot(sq, wpack_ref[R_LE:R_LE + d, 0:d], preferred_element_type=f32) \
        + wpack_ref[R_PE:R_PE + T_OUT, 0:d]

    # ---- transformer encoder layers (post-LN MHA, ReLU FFN), unrolled in-kernel ----
    layer_cp.wait()                                  # layer weights now resident in VMEM
    nt_dims = (((1,), (1,)), ((), ()))               # A @ B^T without a materialized transpose
    scale = 1.0 / float(dh) ** 0.5
    for l in range(num_layers):
        wqkv_l = wl_ref[RL_QKV + 32 * l:RL_QKV + 32 * (l + 1), 0:3 * d]          # (32, 96)
        wo_l = wl_ref[RL_WO + 32 * l:RL_WO + 32 * (l + 1), 0:d]                  # (32, 32)
        wf1_l = wl_ref[RL_WF1 + 32 * l:RL_WF1 + 32 * (l + 1), 0:INTER]           # (32, 64)
        wf2_l = wl_ref[RL_WF2 + 64 * l:RL_WF2 + 64 * (l + 1), 0:d]               # (64, 32)

        qkv = jnp.dot(h, wqkv_l, preferred_element_type=f32) \
            + wpack_ref[R_BQKV + l:R_BQKV + l + 1, 0:3 * d]                      # (8, 96)
        q = qkv[:, 0:d]
        k_ = qkv[:, d:2 * d]
        v = qkv[:, 2 * d:3 * d]

        # per-head attention; head concat folded into the out-projection (K-split of wo)
        attn = wpack_ref[R_BO + l:R_BO + l + 1, 0:d]                             # broadcasts
        for hd in range(num_heads):
            sl = slice(hd * dh, (hd + 1) * dh)
            s = jax.lax.dot_general(q[:, sl], k_[:, sl], nt_dims,
                                    preferred_element_type=f32) * scale          # (8, 8)
            s = s - jnp.max(s, axis=-1, keepdims=True)
            p = jnp.exp(s)
            p = p * pl.reciprocal(jnp.sum(p, axis=-1, keepdims=True), approx=True)
            head = jnp.dot(p, v[:, sl], preferred_element_type=f32)              # (8, 8)
            attn = attn + jnp.dot(head, wo_l[hd * dh:(hd + 1) * dh, :],
                                  preferred_element_type=f32)

        # residual + LayerNorm 1
        h1 = h + attn
        m1 = jnp.mean(h1, axis=-1, keepdims=True)
        v1 = jnp.mean((h1 - m1) ** 2, axis=-1, keepdims=True)
        h1 = (h1 - m1) * jax.lax.rsqrt(v1 + EPS) * wpack_ref[R_G1 + l:R_G1 + l + 1, 0:d] \
            + wpack_ref[R_BE1 + l:R_BE1 + l + 1, 0:d]

        # feed-forward (ReLU), residual + LayerNorm 2
        f = jnp.dot(h1, wf1_l, preferred_element_type=f32) \
            + wpack_ref[R_BF1 + l:R_BF1 + l + 1, 0:INTER]
        f = jnp.maximum(f, 0.0)
        f = jnp.dot(f, wf2_l, preferred_element_type=f32) \
            + wpack_ref[R_BF2 + l:R_BF2 + l + 1, 0:d]
        h2 = h1 + f
        m2 = jnp.mean(h2, axis=-1, keepdims=True)
        v2 = jnp.mean((h2 - m2) ** 2, axis=-1, keepdims=True)
        h = (h2 - m2) * jax.lax.rsqrt(v2 + EPS) * wpack_ref[R_G2 + l:R_G2 + l + 1, 0:d] \
            + wpack_ref[R_BE2 + l:R_BE2 + l + 1, 0:d]

    o_ref[...] = h


# ------------------------------ JAX wrapper -----------------------------------
@jax.jit
def transformer_encoder_forward(inputs, kp):
    # inputs: (1, 3, H, W) -- PyTorch NCHW with the leading dim that squeeze(0) removes
    x = inputs[0]                                                    # (3, H, W)
    ximg = jnp.transpose(x, (1, 2, 0)).reshape(IMG_H, IMG_W * 3)     # (H, W*3) channel-minor
    xpad = jnp.pad(ximg, ((1, 1), (3, 3)))                           # (H+2, (W+2)*3) zero pad

    out = pl.pallas_call(
        functools.partial(fused_encoder_kernel, num_heads=NUM_HEADS,
                          num_layers=NUM_LAYERS, neg=NEG),
        out_shape=jax.ShapeDtypeStruct((T_OUT, HIDDEN), jnp.float32),
        in_specs=[vmem_spec(), vmem_spec(), vmem_spec(), vmem_spec(), vmem_spec(),
                  pl.BlockSpec(memory_space=pl.ANY)],                # wlayers stays in HBM
        out_specs=vmem_spec(),
        scratch_shapes=[
            pltpu.VMEM((WLAYER_ROWS, WLAYER_LANES), jnp.float32),    # overlapped layer weights
            pltpu.SemaphoreType.DMA(()),
        ],
        compiler_params=pltpu.CompilerParams(vmem_limit_bytes=16 * 1024 * 1024),
    )(xpad, kp["xw1"], kp["b1"], kp["w2vm"], kp["wpack"], kp["wlayers"])
    return out[None]                                                 # (1, T, hidden)


# ------------------------------ parameters ------------------------------------
def positional_encoding(t, d):
    pos = jnp.arange(t, dtype=jnp.float32)[:, None]
    div = jnp.exp(jnp.arange(0, d, 2, dtype=jnp.float32) * (-jnp.log(10000.0) / d))
    pe = jnp.zeros((t, d), jnp.float32)
    pe = pe.at[:, 0::2].set(jnp.sin(pos * div))
    pe = pe.at[:, 1::2].set(jnp.cos(pos * div))
    return pe


def init_params(key):
    keys = iter(jax.random.split(key, 64))

    def rnd(shape, scale=0.05):
        return scale * jax.random.normal(next(keys), shape, jnp.float32)

    p = {
        "c1w": rnd((3, 3, 3, C1)), "c1b": rnd((1, C1)),     # conv1: (ky,kx,ci,co)
        "c2w": rnd((3, 3, C1)), "c2b": rnd((1, 1)),         # conv2 (cout=1): (ky,kx,ci)
        "vmw": rnd((IN_DIM, HIDDEN)), "vmb": rnd((1, HIDDEN)),
        "sqw": rnd((5, HIDDEN, HIDDEN)), "sqb": rnd((1, HIDDEN)),   # (k, ci, co)
        "lew": rnd((HIDDEN, HIDDEN)), "leb": rnd((1, HIDDEN)),
        "layers": [],
    }
    for _ in range(NUM_LAYERS):
        p["layers"].append({
            "wq": rnd((HIDDEN, HIDDEN)), "bq": rnd((1, HIDDEN)),
            "wk": rnd((HIDDEN, HIDDEN)), "bk": rnd((1, HIDDEN)),
            "wv": rnd((HIDDEN, HIDDEN)), "bv": rnd((1, HIDDEN)),
            "wo": rnd((HIDDEN, HIDDEN)), "bo": rnd((1, HIDDEN)),
            "g1": jnp.ones((1, HIDDEN), jnp.float32),
            "be1": jnp.zeros((1, HIDDEN), jnp.float32),
            "w1": rnd((HIDDEN, INTER)), "b1": rnd((1, INTER)),
            "w2": rnd((INTER, HIDDEN)), "b2": rnd((1, HIDDEN)),
            "g2": jnp.ones((1, HIDDEN), jnp.float32),
            "be2": jnp.zeros((1, HIDDEN), jnp.float32),
        })
    return p


def prepare_kernel_params(p):
    """One-time conversion into folded / Toeplitz / packed kernel-ready buffers."""
    W = IMG_W
    f32 = jnp.float32

    # conv1 folded im2col Toeplitz weight, stored bf16 (f32 MXU accumulation in-kernel).
    t1 = jnp.zeros((3, W + 2, 3, W, C1), f32)
    for j in range(W):
        t1 = t1.at[:, j:j + 3, :, j, :].set(p["c1w"])
    xw1 = t1.reshape(3 * (W + 2) * 3, W * C1).astype(jnp.bfloat16)       # (162, 1024)
    b1row = jnp.tile(p["c1b"], (1, W))                                   # (1, 1024) f32

    # conv2 per-ky Toeplitz over UNPADDED columns (kx zero-pad folded into the weight),
    # then folded with vertice_mapping3:  w2vm = [W2_ky0|W2_ky1|W2_ky2] @ W_vm, bf16.
    t2 = jnp.zeros((3, W, C1, W), f32)                                   # (ky, j', ci, j)
    for j in range(W):
        for kx in range(3):
            jp = j + kx - 1
            if 0 <= jp < W:
                t2 = t2.at[:, jp, :, j].set(p["c2w"][:, kx, :])
    w2_ky = t2.reshape(3, W * C1, W)                                     # (3, 1024, 16)
    w2vm_ky = jnp.einsum("kij,jd->kid", w2_ky, p["vmw"])                 # (3, 1024, 32)
    w2vm = jnp.concatenate([w2vm_ky[0], w2vm_ky[1], w2vm_ky[2]],
                           axis=1).astype(jnp.bfloat16)                  # (1024, 96)
    bias2vm = p["c2b"][0, 0] * jnp.sum(p["vmw"], axis=0, keepdims=True) + p["vmb"]   # (1, 32)

    # squasher stride-2 / replicate-clamp gather selectors (constant 0/1 matrices).
    sel = np.zeros((5, T_OUT, IMG_H), np.float32)
    for k in range(5):
        for t in range(T_OUT):
            sel[k, t, min(max(2 * t + k - 2, 0), IMG_H - 1)] = 1.0

    layers = p["layers"]

    # -------- wpack: everything small, one DMA --------
    wpack = jnp.zeros((WPACK_ROWS, WPACK_LANES), f32)
    wsq_cat = jnp.concatenate([p["sqw"][k] for k in range(5)], axis=1)   # (32, 160)
    wpack = wpack.at[R_SQW:R_SQW + HIDDEN, :].set(wsq_cat)
    wpack = wpack.at[R_LE:R_LE + HIDDEN, 0:HIDDEN].set(p["lew"])
    wpack = wpack.at[R_B2VM, 0:HIDDEN].set(bias2vm[0])
    wpack = wpack.at[R_BSQ, 0:HIDDEN].set(p["sqb"][0])
    pe_ble = positional_encoding(T_OUT, HIDDEN) + p["leb"]               # fold LE bias into PE
    wpack = wpack.at[R_PE:R_PE + T_OUT, 0:HIDDEN].set(pe_ble)
    wpack = wpack.at[R_SEL:R_SEL + 5 * T_OUT, 0:IMG_H].set(
        jnp.asarray(sel.reshape(5 * T_OUT, IMG_H)))
    for l, lp in enumerate(layers):
        bqkv = jnp.concatenate([lp["bq"], lp["bk"], lp["bv"]], axis=1)[0]
        wpack = wpack.at[R_BQKV + l, 0:3 * HIDDEN].set(bqkv)
        wpack = wpack.at[R_BO + l, 0:HIDDEN].set(lp["bo"][0])
        wpack = wpack.at[R_G1 + l, 0:HIDDEN].set(lp["g1"][0])
        wpack = wpack.at[R_BE1 + l, 0:HIDDEN].set(lp["be1"][0])
        wpack = wpack.at[R_BF1 + l, 0:INTER].set(lp["b1"][0])
        wpack = wpack.at[R_BF2 + l, 0:HIDDEN].set(lp["b2"][0])
        wpack = wpack.at[R_G2 + l, 0:HIDDEN].set(lp["g2"][0])
        wpack = wpack.at[R_BE2 + l, 0:HIDDEN].set(lp["be2"][0])

    # -------- wlayers: transformer matmul weights (manually DMA-overlapped in-kernel) --------
    wlayers = jnp.zeros((WLAYER_ROWS, WLAYER_LANES), f32)
    for l, lp in enumerate(layers):
        wqkv = jnp.concatenate([lp["wq"], lp["wk"], lp["wv"]], axis=1)   # (32, 96)
        wlayers = wlayers.at[RL_QKV + 32 * l:RL_QKV + 32 * (l + 1), 0:3 * HIDDEN].set(wqkv)
        wlayers = wlayers.at[RL_WO + 32 * l:RL_WO + 32 * (l + 1), 0:HIDDEN].set(lp["wo"])
        wlayers = wlayers.at[RL_WF1 + 32 * l:RL_WF1 + 32 * (l + 1), 0:INTER].set(lp["w1"])
        wlayers = wlayers.at[RL_WF2 + 64 * l:RL_WF2 + 64 * (l + 1), 0:HIDDEN].set(lp["w2"])

    return {"xw1": xw1, "b1": b1row, "w2vm": w2vm, "wpack": wpack, "wlayers": wlayers}


if __name__ == "__main__":
    key = jax.random.PRNGKey(0)
    k_params, k_x = jax.random.split(key)
    raw_params = init_params(k_params)
    kernel_params = prepare_kernel_params(raw_params)     # one-time weight prep (hoisted)

    # example input, same convention the PyTorch forward expects (pre-squeeze(0))
    inputs = jax.random.normal(k_x, (1, 3, IMG_H, IMG_W), jnp.float32)

    out = transformer_encoder_forward(inputs, kernel_params)
    out = jax.block_until_ready(out)
    assert out.shape == (1, T_OUT, HIDDEN), out.shape
    assert bool(jnp.all(jnp.isfinite(out)))
    print("KERNEL_OK")
</pallas_src>

<mosaic_0001>
module attributes {stable_mosaic.version = 11 : i64} {
  func.func @fused_encoder_kernel(%arg0: memref<18x54xf32, #tpu.memory_space<vmem>>, %arg1: memref<162x1024xbf16, #tpu.memory_space<vmem>>, %arg2: memref<1x1024xf32, #tpu.memory_space<vmem>>, %arg3: memref<1024x96xbf16, #tpu.memory_space<vmem>>, %arg4: memref<136x160xf32, #tpu.memory_space<vmem>>, %arg5: memref<320x96xf32, #tpu.memory_space<any>>, %arg6: memref<8x32xf32, #tpu.memory_space<vmem>>, %arg7: memref<320x96xf32, #tpu.memory_space<vmem>>, %arg8: memref<!tpu.dma_semaphore, #tpu.memory_space<semaphore_mem>>) attributes {dimension_semantics = [], scalar_prefetch = 0 : i64, scratch_operands = 2 : i64, tpu.core_type = #tpu.core_type<tc>} {
    tpu.enqueue_dma source(%arg5 : memref<320x96xf32, #tpu.memory_space<any>>) target(%arg7 : memref<320x96xf32, #tpu.memory_space<vmem>>) target_semaphore(%arg8 : memref<!tpu.dma_semaphore, #tpu.memory_space<semaphore_mem>>)
    %c0 = arith.constant 0 : index
    %c0_0 = arith.constant 0 : index
    %0 = vector.load %arg0[%c0, %c0_0] : memref<18x54xf32, #tpu.memory_space<vmem>>, vector<16x54xf32>
    %c1 = arith.constant 1 : index
    %c0_1 = arith.constant 0 : index
    %1 = vector.load %arg0[%c1, %c0_1] : memref<18x54xf32, #tpu.memory_space<vmem>>, vector<16x54xf32>
    %c2 = arith.constant 2 : index
    %c0_2 = arith.constant 0 : index
    %2 = vector.load %arg0[%c2, %c0_2] : memref<18x54xf32, #tpu.memory_space<vmem>>, vector<16x54xf32>
    %3 = tpu.concatenate %0, %1, %2 in 1 : vector<16x54xf32>, vector<16x54xf32>, vector<16x54xf32> -> vector<16x162xf32>
    %4 = arith.truncf %3 : vector<16x162xf32> to vector<16x162xbf16>
    %c0_3 = arith.constant 0 : index
    %c0_4 = arith.constant 0 : index
    %5 = vector.load %arg1[%c0_3, %c0_4] : memref<162x1024xbf16, #tpu.memory_space<vmem>>, vector<162x1024xbf16>
    %cst = arith.constant dense<0.000000e+00> : vector<16x1024xf32>
    %6 = tpu.matmul %4, %5, %cst {dimension_numbers = #tpu.dot_dimension_numbers<[1], [0], [0], [1], [0, 0, 1, 1], [], []>} : vector<16x162xbf16>, vector<162x1024xbf16>, vector<16x1024xf32> -> vector<16x1024xf32>
    %c0_5 = arith.constant 0 : index
    %c0_6 = arith.constant 0 : index
    %7 = vector.load %arg2[%c0_5, %c0_6] : memref<1x1024xf32, #tpu.memory_space<vmem>>, vector<1x1024xf32>
    %8 = vector.broadcast %7 : vector<1x1024xf32> to vector<16x1024xf32>
    %9 = arith.addf %6, %8 : vector<16x1024xf32>
    %cst_7 = arith.constant 0.000000e+00 : f32
    %10 = vector.broadcast %cst_7 : f32 to vector<16x1024xf32>
    %11 = arith.maximumf %9, %10 : vector<16x1024xf32>
    %12 = arith.truncf %11 : vector<16x1024xf32> to vector<16x1024xbf16>
    %c0_8 = arith.constant 0 : index
    %c0_9 = arith.constant 0 : index
    %13 = vector.load %arg3[%c0_8, %c0_9] : memref<1024x96xbf16, #tpu.memory_space<vmem>>, vector<1024x96xbf16>
    %cst_10 = arith.constant dense<0.000000e+00> : vector<16x96xf32>
    %14 = tpu.matmul %12, %13, %cst_10 {dimension_numbers = #tpu.dot_dimension_numbers<[1], [0], [0], [1], [0, 0, 1, 1], [], []>} : vector<16x1024xbf16>, vector<1024x96xbf16>, vector<16x96xf32> -> vector<16x96xf32>
    %cst_11 = arith.constant 0.000000e+00 : f32
    %15 = vector.broadcast %cst_11 : f32 to vector<1x32xf32>
    %16 = vector.extract_strided_slice %14 {offsets = [0, 0], sizes = [15, 32], strides = [1, 1]} : vector<16x96xf32> to vector<15x32xf32>
    %17 = tpu.concatenate %15, %16 in 0 : vector<1x32xf32>, vector<15x32xf32> -> vector<16x32xf32>
    %18 = vector.extract_strided_slice %14 {offsets = [1, 64], sizes = [15, 32], strides = [1, 1]} : vector<16x96xf32> to vector<15x32xf32>
    %19 = tpu.concatenate %18, %15 in 0 : vector<15x32xf32>, vector<1x32xf32> -> vector<16x32xf32>
    %20 = vector.extract_strided_slice %14 {offsets = [0, 32], sizes = [16, 32], strides = [1, 1]} : vector<16x96xf32> to vector<16x32xf32>
    %21 = arith.addf %17, %20 : vector<16x32xf32>
    %22 = arith.addf %21, %19 : vector<16x32xf32>
    %c64 = arith.constant 64 : index
    %c0_12 = arith.constant 0 : index
    %23 = vector.load %arg4[%c64, %c0_12] : memref<136x160xf32, #tpu.memory_space<vmem>>, vector<1x32xf32>
    %24 = vector.broadcast %23 : vector<1x32xf32> to vector<16x32xf32>
    %25 = arith.addf %22, %24 : vector<16x32xf32>
    %cst_13 = arith.constant 0.000000e+00 : f32
    %26 = vector.broadcast %cst_13 : f32 to vector<16x32xf32>
    %27 = arith.cmpf oge, %25, %26 : vector<16x32xf32>
    %cst_14 = arith.constant 2.000000e-01 : f32
    %28 = vector.broadcast %cst_14 : f32 to vector<16x32xf32>
    %29 = arith.mulf %28, %25 : vector<16x32xf32>
    %30 = arith.select %27, %25, %29 : vector<16x32xi1>, vector<16x32xf32>
    %c0_15 = arith.constant 0 : index
    %c0_16 = arith.constant 0 : index
    %31 = vector.load %arg4[%c0_15, %c0_16] : memref<136x160xf32, #tpu.memory_space<vmem>>, vector<32x160xf32>
    %cst_17 = arith.constant dense<0.000000e+00> : vector<16x160xf32>
    %32 = tpu.matmul %30, %31, %cst_17 {dimension_numbers = #tpu.dot_dimension_numbers<[1], [0], [0], [1], [0, 0, 1, 1], [], []>} : vector<16x32xf32>, vector<32x160xf32>, vector<16x160xf32> -> vector<16x160xf32>
    %c65 = arith.constant 65 : index
    %c0_18 = arith.constant 0 : index
    %33 = vector.load %arg4[%c65, %c0_18] : memref<136x160xf32, #tpu.memory_space<vmem>>, vector<1x32xf32>
    %c96 = arith.constant 96 : index
    %c0_19 = arith.constant 0 : index
    %34 = vector.load %arg4[%c96, %c0_19] : memref<136x160xf32, #tpu.memory_space<vmem>>, vector<8x16xf32>
    %35 = vector.extract_strided_slice %32 {offsets = [0, 0], sizes = [16, 32], strides = [1, 1]} : vector<16x160xf32> to vector<16x32xf32>
    %cst_20 = arith.constant dense<0.000000e+00> : vector<8x32xf32>
    %36 = tpu.matmul %34, %35, %cst_20 {dimension_numbers = #tpu.dot_dimension_numbers<[1], [0], [0], [1], [0, 0, 1, 1], [], []>} : vector<8x16xf32>, vector<16x32xf32>, vector<8x32xf32> -> vector<8x32xf32>
    %37 = vector.broadcast %33 : vector<1x32xf32> to vector<8x32xf32>
    %38 = arith.addf %37, %36 : vector<8x32xf32>
    %c104 = arith.constant 104 : index
    %c0_21 = arith.constant 0 : index
    %39 = vector.load %arg4[%c104, %c0_21] : memref<136x160xf32, #tpu.memory_space<vmem>>, vector<8x16xf32>
    %40 = vector.extract_strided_slice %32 {offsets = [0, 32], sizes = [16, 32], strides = [1, 1]} : vector<16x160xf32> to vector<16x32xf32>
    %cst_22 = arith.constant dense<0.000000e+00> : vector<8x32xf32>
    %41 = tpu.matmul %39, %40, %cst_22 {dimension_numbers = #tpu.dot_dimension_numbers<[1], [0], [0], [1], [0, 0, 1, 1], [], []>} : vector<8x16xf32>, vector<16x32xf32>, vector<8x32xf32> -> vector<8x32xf32>
    %42 = arith.addf %38, %41 : vector<8x32xf32>
    %c112 = arith.constant 112 : index
    %c0_23 = arith.constant 0 : index
    %43 = vector.load %arg4[%c112, %c0_23] : memref<136x160xf32, #tpu.memory_space<vmem>>, vector<8x16xf32>
    %44 = vector.extract_strided_slice %32 {offsets = [0, 64], sizes = [16, 32], strides = [1, 1]} : vector<16x160xf32> to vector<16x32xf32>
    %cst_24 = arith.constant dense<0.000000e+00> : vector<8x32xf32>
    %45 = tpu.matmul %43, %44, %cst_24 {dimension_numbers = #tpu.dot_dimension_numbers<[1], [0], [0], [1], [0, 0, 1, 1], [], []>} : vector<8x16xf32>, vector<16x32xf32>, vector<8x32xf32> -> vector<8x32xf32>
    %46 = arith.addf %42, %45 : vector<8x32xf32>
    %c120 = arith.constant 120 : index
    %c0_25 = arith.constant 0 : index
    %47 = vector.load %arg4[%c120, %c0_25] : memref<136x160xf32, #tpu.memory_space<vmem>>, vector<8x16xf32>
    %48 = vector.extract_strided_slice %32 {offsets = [0, 96], sizes = [16, 32], strides = [1, 1]} : vector<16x160xf32> to vector<16x32xf32>
    %cst_26 = arith.constant dense<0.000000e+00> : vector<8x32xf32>
    %49 = tpu.matmul %47, %48, %cst_26 {dimension_numbers = #tpu.dot_dimension_numbers<[1], [0], [0], [1], [0, 0, 1, 1], [], []>} : vector<8x16xf32>, vector<16x32xf32>, vector<8x32xf32> -> vector<8x32xf32>
    %50 = arith.addf %46, %49 : vector<8x32xf32>
    %c128 = arith.constant 128 : index
    %c0_27 = arith.constant 0 : index
    %51 = vector.load %arg4[%c128, %c0_27] : memref<136x160xf32, #tpu.memory_space<vmem>>, vector<8x16xf32>
    %52 = vector.extract_strided_slice %32 {offsets = [0, 128], sizes = [16, 32], strides = [1, 1]} : vector<16x160xf32> to vector<16x32xf32>
    %cst_28 = arith.constant dense<0.000000e+00> : vector<8x32xf32>
    %53 = tpu.matmul %51, %52, %cst_28 {dimension_numbers = #tpu.dot_dimension_numbers<[1], [0], [0], [1], [0, 0, 1, 1], [], []>} : vector<8x16xf32>, vector<16x32xf32>, vector<8x32xf32> -> vector<8x32xf32>
    %54 = arith.addf %50, %53 : vector<8x32xf32>
    %cst_29 = arith.constant 0.000000e+00 : f32
    %55 = vector.broadcast %cst_29 : f32 to vector<8x32xf32>
    %56 = arith.cmpf oge, %54, %55 : vector<8x32xf32>
    %cst_30 = arith.constant 2.000000e-01 : f32
    %57 = vector.broadcast %cst_30 : f32 to vector<8x32xf32>
    %58 = arith.mulf %57, %54 : vector<8x32xf32>
    %59 = arith.select %56, %54, %58 : vector<8x32xi1>, vector<8x32xf32>
    %cst_31 = arith.constant dense<0.000000e+00> : vector<32xf32>
    %60 = vector.multi_reduction <add>, %59, %cst_31 [0] : vector<8x32xf32> to vector<32xf32>
    %61 = vector.shape_cast %60 : vector<32xf32> to vector<1x32xf32>
    %cst_32 = arith.constant 8.000000e+00 : f32
    %62 = vector.broadcast %cst_32 : f32 to vector<1x32xf32>
    %63 = arith.divf %61, %62 : vector<1x32xf32>
    %64 = vector.broadcast %63 : vector<1x32xf32> to vector<8x32xf32>
    %65 = arith.subf %59, %64 : vector<8x32xf32>
    %66 = arith.mulf %65, %65 : vector<8x32xf32>
    %cst_33 = arith.constant dense<0.000000e+00> : vector<32xf32>
    %67 = vector.multi_reduction <add>, %66, %cst_33 [0] : vector<8x32xf32> to vector<32xf32>
    %68 = vector.shape_cast %67 : vector<32xf32> to vector<1x32xf32>
    %cst_34 = arith.constant 8.000000e+00 : f32
    %69 = vector.broadcast %cst_34 : f32 to vector<1x32xf32>
    %70 = arith.divf %68, %69 : vector<1x32xf32>
    %71 = vector.broadcast %63 : vector<1x32xf32> to vector<8x32xf32>
    %72 = arith.subf %59, %71 : vector<8x32xf32>
    %cst_35 = arith.constant 9.99999974E-6 : f32
    %73 = vector.broadcast %cst_35 : f32 to vector<1x32xf32>
    %74 = arith.addf %70, %73 : vector<1x32xf32>
    %75 = math.rsqrt %74 : vector<1x32xf32>
    %76 = vector.broadcast %75 : vector<1x32xf32> to vector<8x32xf32>
    %77 = arith.mulf %72, %76 : vector<8x32xf32>
    %c32 = arith.constant 32 : index
    %c0_36 = arith.constant 0 : index
    %78 = vector.load %arg4[%c32, %c0_36] : memref<136x160xf32, #tpu.memory_space<vmem>>, vector<32x32xf32>
    %cst_37 = arith.constant dense<0.000000e+00> : vector<8x32xf32>
    %79 = tpu.matmul %77, %78, %cst_37 {dimension_numbers = #tpu.dot_dimension_numbers<[1], [0], [0], [1], [0, 0, 1, 1], [], []>} : vector<8x32xf32>, vector<32x32xf32>, vector<8x32xf32> -> vector<8x32xf32>
    %c88 = arith.constant 88 : index
    %c0_38 = arith.constant 0 : index
    %80 = vector.load %arg4[%c88, %c0_38] : memref<136x160xf32, #tpu.memory_space<vmem>>, vector<8x32xf32>
    %81 = arith.addf %79, %80 : vector<8x32xf32>
    tpu.wait_dma2 semaphore(%arg8 : memref<!tpu.dma_semaphore, #tpu.memory_space<semaphore_mem>>) src(%arg5 : memref<320x96xf32, #tpu.memory_space<any>>) dst(%arg7 : memref<320x96xf32, #tpu.memory_space<vmem>>)
    %c0_39 = arith.constant 0 : index
    %c0_40 = arith.constant 0 : index
    %82 = vector.load %arg7[%c0_39, %c0_40] : memref<320x96xf32, #tpu.memory_space<vmem>>, vector<32x96xf32>
    %c64_41 = arith.constant 64 : index
    %c0_42 = arith.constant 0 : index
    %83 = vector.load %arg7[%c64_41, %c0_42] : memref<320x96xf32, #tpu.memory_space<vmem>>, vector<32x32xf32>
    %c128_43 = arith.constant 128 : index
    %c0_44 = arith.constant 0 : index
    %84 = vector.load %arg7[%c128_43, %c0_44] : memref<320x96xf32, #tpu.memory_space<vmem>>, vector<32x64xf32>
    %c192 = arith.constant 192 : index
    %c0_45 = arith.constant 0 : index
    %85 = vector.load %arg7[%c192, %c0_45] : memref<320x96xf32, #tpu.memory_space<vmem>>, vector<64x32xf32>
    %cst_46 = arith.constant dense<0.000000e+00> : vector<8x96xf32>
    %86 = tpu.matmul %81, %82, %cst_46 {dimension_numbers = #tpu.dot_dimension_numbers<[1], [0], [0], [1], [0, 0, 1, 1], [], []>} : vector<8x32xf32>, vector<32x96xf32>, vector<8x96xf32> -> vector<8x96xf32>
    %c66 = arith.constant 66 : index
    %c0_47 = arith.constant 0 : index
    %87 = vector.load %arg4[%c66, %c0_47] : memref<136x160xf32, #tpu.memory_space<vmem>>, vector<1x96xf32>
    %88 = vector.broadcast %87 : vector<1x96xf32> to vector<8x96xf32>
    %89 = arith.addf %86, %88 : vector<8x96xf32>
    %90 = vector.extract_strided_slice %89 {offsets = [0, 0], sizes = [8, 32], strides = [1, 1]} : vector<8x96xf32> to vector<8x32xf32>
    %91 = vector.extract_strided_slice %89 {offsets = [0, 32], sizes = [8, 32], strides = [1, 1]} : vector<8x96xf32> to vector<8x32xf32>
    %92 = vector.extract_strided_slice %89 {offsets = [0, 64], sizes = [8, 32], strides = [1, 1]} : vector<8x96xf32> to vector<8x32xf32>
    %c68 = arith.constant 68 : index
    %c0_48 = arith.constant 0 : index
    %93 = vector.load %arg4[%c68, %c0_48] : memref<136x160xf32, #tpu.memory_space<vmem>>, vector<1x32xf32>
    %94 = vector.extract_strided_slice %90 {offsets = [0, 0], sizes = [8, 8], strides = [1, 1]} : vector<8x32xf32> to vector<8x8xf32>
    %95 = vector.extract_strided_slice %91 {offsets = [0, 0], sizes = [8, 8], strides = [1, 1]} : vector<8x32xf32> to vector<8x8xf32>
    %cst_49 = arith.constant dense<0.000000e+00> : vector<8x8xf32>
    %96 = tpu.matmul %94, %95, %cst_49 {dimension_numbers = #tpu.dot_dimension_numbers<[1], [1], [0], [0], [0, 0, 1, 0], [], []>} : vector<8x8xf32>, vector<8x8xf32>, vector<8x8xf32> -> vector<8x8xf32>
    %cst_50 = arith.constant 0.353553385 : f32
    %97 = vector.broadcast %cst_50 : f32 to vector<8x8xf32>
    %98 = arith.mulf %96, %97 : vector<8x8xf32>
    %cst_51 = arith.constant dense<0xFF800000> : vector<8xf32>
    %99 = vector.multi_reduction <maximumf>, %98, %cst_51 [1] : vector<8x8xf32> to vector<8xf32>
    %100 = vector.shape_cast %99 : vector<8xf32> to vector<8x1xf32>
    %101 = vector.broadcast %100 : vector<8x1xf32> to vector<8x8xf32>
    %102 = arith.subf %98, %101 : vector<8x8xf32>
    %103 = math.exp %102 : vector<8x8xf32>
    %cst_52 = arith.constant dense<0.000000e+00> : vector<8xf32>
    %104 = vector.multi_reduction <add>, %103, %cst_52 [1] : vector<8x8xf32> to vector<8xf32>
    %105 = vector.shape_cast %104 : vector<8xf32> to vector<8x1xf32>
    %106 = tpu.reciprocal %105 {approx = true} : vector<8x1xf32> -> vector<8x1xf32>
    %107 = vector.broadcast %106 : vector<8x1xf32> to vector<8x8xf32>
    %108 = arith.mulf %103, %107 : vector<8x8xf32>
    %109 = vector.extract_strided_slice %92 {offsets = [0, 0], sizes = [8, 8], strides = [1, 1]} : vector<8x32xf32> to vector<8x8xf32>
    %cst_53 = arith.constant dense<0.000000e+00> : vector<8x8xf32>
    %110 = tpu.matmul %108, %109, %cst_53 {dimension_numbers = #tpu.dot_dimension_numbers<[1], [0], [0], [1], [0, 0, 1, 1], [], []>} : vector<8x8xf32>, vector<8x8xf32>, vector<8x8xf32> -> vector<8x8xf32>
    %111 = vector.extract_strided_slice %83 {offsets = [0, 0], sizes = [8, 32], strides = [1, 1]} : vector<32x32xf32> to vector<8x32xf32>
    %cst_54 = arith.constant dense<0.000000e+00> : vector<8x32xf32>
    %112 = tpu.matmul %110, %111, %cst_54 {dimension_numbers = #tpu.dot_dimension_numbers<[1], [0], [0], [1], [0, 0, 1, 1], [], []>} : vector<8x8xf32>, vector<8x32xf32>, vector<8x32xf32> -> vector<8x32xf32>
    %113 = vector.broadcast %93 : vector<1x32xf32> to vector<8x32xf32>
    %114 = arith.addf %113, %112 : vector<8x32xf32>
    %115 = vector.extract_strided_slice %90 {offsets = [0, 8], sizes = [8, 8], strides = [1, 1]} : vector<8x32xf32> to vector<8x8xf32>
    %116 = vector.extract_strided_slice %91 {offsets = [0, 8], sizes = [8, 8], strides = [1, 1]} : vector<8x32xf32> to vector<8x8xf32>
    %cst_55 = arith.constant dense<0.000000e+00> : vector<8x8xf32>
    %117 = tpu.matmul %115, %116, %cst_55 {dimension_numbers = #tpu.dot_dimension_numbers<[1], [1], [0], [0], [0, 0, 1, 0], [], []>} : vector<8x8xf32>, vector<8x8xf32>, vector<8x8xf32> -> vector<8x8xf32>
    %cst_56 = arith.constant 0.353553385 : f32
    %118 = vector.broadcast %cst_56 : f32 to vector<8x8xf32>
    %119 = arith.mulf %117, %118 : vector<8x8xf32>
    %cst_57 = arith.constant dense<0xFF800000> : vector<8xf32>
    %120 = vector.multi_reduction <maximumf>, %119, %cst_57 [1] : vector<8x8xf32> to vector<8xf32>
    %121 = vector.shape_cast %120 : vector<8xf32> to vector<8x1xf32>
    %122 = vector.broadcast %121 : vector<8x1xf32> to vector<8x8xf32>
    %123 = arith.subf %119, %122 : vector<8x8xf32>
    %124 = math.exp %123 : vector<8x8xf32>
    %cst_58 = arith.constant dense<0.000000e+00> : vector<8xf32>
    %125 = vector.multi_reduction <add>, %124, %cst_58 [1] : vector<8x8xf32> to vector<8xf32>
    %126 = vector.shape_cast %125 : vector<8xf32> to vector<8x1xf32>
    %127 = tpu.reciprocal %126 {approx = true} : vector<8x1xf32> -> vector<8x1xf32>
    %128 = vector.broadcast %127 : vector<8x1xf32> to vector<8x8xf32>
    %129 = arith.mulf %124, %128 : vector<8x8xf32>
    %130 = vector.extract_strided_slice %92 {offsets = [0, 8], sizes = [8, 8], strides = [1, 1]} : vector<8x32xf32> to vector<8x8xf32>
    %cst_59 = arith.constant dense<0.000000e+00> : vector<8x8xf32>
    %131 = tpu.matmul %129, %130, %cst_59 {dimension_numbers = #tpu.dot_dimension_numbers<[1], [0], [0], [1], [0, 0, 1, 1], [], []>} : vector<8x8xf32>, vector<8x8xf32>, vector<8x8xf32> -> vector<8x8xf32>
    %132 = vector.extract_strided_slice %83 {offsets = [8, 0], sizes = [8, 32], strides = [1, 1]} : vector<32x32xf32> to vector<8x32xf32>
    %cst_60 = arith.constant dense<0.000000e+00> : vector<8x32xf32>
    %133 = tpu.matmul %131, %132, %cst_60 {dimension_numbers = #tpu.dot_dimension_numbers<[1], [0], [0], [1], [0, 0, 1, 1], [], []>} : vector<8x8xf32>, vector<8x32xf32>, vector<8x32xf32> -> vector<8x32xf32>
    %134 = arith.addf %114, %133 : vector<8x32xf32>
    %135 = vector.extract_strided_slice %90 {offsets = [0, 16], sizes = [8, 8], strides = [1, 1]} : vector<8x32xf32> to vector<8x8xf32>
    %136 = vector.extract_strided_slice %91 {offsets = [0, 16], sizes = [8, 8], strides = [1, 1]} : vector<8x32xf32> to vector<8x8xf32>
    %cst_61 = arith.constant dense<0.000000e+00> : vector<8x8xf32>
    %137 = tpu.matmul %135, %136, %cst_61 {dimension_numbers = #tpu.dot_dimension_numbers<[1], [1], [0], [0], [0, 0, 1, 0], [], []>} : vector<8x8xf32>, vector<8x8xf32>, vector<8x8xf32> -> vector<8x8xf32>
    %cst_62 = arith.constant 0.353553385 : f32
    %138 = vector.broadcast %cst_62 : f32 to vector<8x8xf32>
    %139 = arith.mulf %137, %138 : vector<8x8xf32>
    %cst_63 = arith.constant dense<0xFF800000> : vector<8xf32>
    %140 = vector.multi_reduction <maximumf>, %139, %cst_63 [1] : vector<8x8xf32> to vector<8xf32>
    %141 = vector.shape_cast %140 : vector<8xf32> to vector<8x1xf32>
    %142 = vector.broadcast %141 : vector<8x1xf32> to vector<8x8xf32>
    %143 = arith.subf %139, %142 : vector<8x8xf32>
    %144 = math.exp %143 : vector<8x8xf32>
    %cst_64 = arith.constant dense<0.000000e+00> : vector<8xf32>
    %145 = vector.multi_reduction <add>, %144, %cst_64 [1] : vector<8x8xf32> to vector<8xf32>
    %146 = vector.shape_cast %145 : vector<8xf32> to vector<8x1xf32>
    %147 = tpu.reciprocal %146 {approx = true} : vector<8x1xf32> -> vector<8x1xf32>
    %148 = vector.broadcast %147 : vector<8x1xf32> to vector<8x8xf32>
    %149 = arith.mulf %144, %148 : vector<8x8xf32>
    %150 = vector.extract_strided_slice %92 {offsets = [0, 16], sizes = [8, 8], strides = [1, 1]} : vector<8x32xf32> to vector<8x8xf32>
    %cst_65 = arith.constant dense<0.000000e+00> : vector<8x8xf32>
    %151 = tpu.matmul %149, %150, %cst_65 {dimension_numbers = #tpu.dot_dimension_numbers<[1], [0], [0], [1], [0, 0, 1, 1], [], []>} : vector<8x8xf32>, vector<8x8xf32>, vector<8x8xf32> -> vector<8x8xf32>
    %152 = vector.extract_strided_slice %83 {offsets = [16, 0], sizes = [8, 32], strides = [1, 1]} : vector<32x32xf32> to vector<8x32xf32>
    %cst_66 = arith.constant dense<0.000000e+00> : vector<8x32xf32>
    %153 = tpu.matmul %151, %152, %cst_66 {dimension_numbers = #tpu.dot_dimension_numbers<[1], [0], [0], [1], [0, 0, 1, 1], [], []>} : vector<8x8xf32>, vector<8x32xf32>, vector<8x32xf32> -> vector<8x32xf32>
    %154 = arith.addf %134, %153 : vector<8x32xf32>
    %155 = vector.extract_strided_slice %90 {offsets = [0, 24], sizes = [8, 8], strides = [1, 1]} : vector<8x32xf32> to vector<8x8xf32>
    %156 = vector.extract_strided_slice %91 {offsets = [0, 24], sizes = [8, 8], strides = [1, 1]} : vector<8x32xf32> to vector<8x8xf32>
    %cst_67 = arith.constant dense<0.000000e+00> : vector<8x8xf32>
    %157 = tpu.matmul %155, %156, %cst_67 {dimension_numbers = #tpu.dot_dimension_numbers<[1], [1], [0], [0], [0, 0, 1, 0], [], []>} : vector<8x8xf32>, vector<8x8xf32>, vector<8x8xf32> -> vector<8x8xf32>
    %cst_68 = arith.constant 0.353553385 : f32
    %158 = vector.broadcast %cst_68 : f32 to vector<8x8xf32>
    %159 = arith.mulf %157, %158 : vector<8x8xf32>
    %cst_69 = arith.constant dense<0xFF800000> : vector<8xf32>
    %160 = vector.multi_reduction <maximumf>, %159, %cst_69 [1] : vector<8x8xf32> to vector<8xf32>
    %161 = vector.shape_cast %160 : vector<8xf32> to vector<8x1xf32>
    %162 = vector.broadcast %161 : vector<8x1xf32> to vector<8x8xf32>
    %163 = arith.subf %159, %162 : vector<8x8xf32>
    %164 = math.exp %163 : vector<8x8xf32>
    %cst_70 = arith.constant dense<0.000000e+00> : vector<8xf32>
    %165 = vector.multi_reduction <add>, %164, %cst_70 [1] : vector<8x8xf32> to vector<8xf32>
    %166 = vector.shape_cast %165 : vector<8xf32> to vector<8x1xf32>
    %167 = tpu.reciprocal %166 {approx = true} : vector<8x1xf32> -> vector<8x1xf32>
    %168 = vector.broadcast %167 : vector<8x1xf32> to vector<8x8xf32>
    %169 = arith.mulf %164, %168 : vector<8x8xf32>
    %170 = vector.extract_strided_slice %92 {offsets = [0, 24], sizes = [8, 8], strides = [1, 1]} : vector<8x32xf32> to vector<8x8xf32>
    %cst_71 = arith.constant dense<0.000000e+00> : vector<8x8xf32>
    %171 = tpu.matmul %169, %170, %cst_71 {dimension_numbers = #tpu.dot_dimension_numbers<[1], [0], [0], [1], [0, 0, 1, 1], [], []>} : vector<8x8xf32>, vector<8x8xf32>, vector<8x8xf32> -> vector<8x8xf32>
    %172 = vector.extract_strided_slice %83 {offsets = [24, 0], sizes = [8, 32], strides = [1, 1]} : vector<32x32xf32> to vector<8x32xf32>
    %cst_72 = arith.constant dense<0.000000e+00> : vector<8x32xf32>
    %173 = tpu.matmul %171, %172, %cst_72 {dimension_numbers = #tpu.dot_dimension_numbers<[1], [0], [0], [1], [0, 0, 1, 1], [], []>} : vector<8x8xf32>, vector<8x32xf32>, vector<8x32xf32> -> vector<8x32xf32>
    %174 = arith.addf %154, %173 : vector<8x32xf32>
    %175 = arith.addf %81, %174 : vector<8x32xf32>
    %cst_73 = arith.constant dense<0.000000e+00> : vector<8xf32>
    %176 = vector.multi_reduction <add>, %175, %cst_73 [1] : vector<8x32xf32> to vector<8xf32>
    %177 = vector.shape_cast %176 : vector<8xf32> to vector<8x1xf32>
    %cst_74 = arith.constant 3.200000e+01 : f32
    %178 = vector.broadcast %cst_74 : f32 to vector<8x1xf32>
    %179 = arith.divf %177, %178 : vector<8x1xf32>
    %180 = vector.broadcast %179 : vector<8x1xf32> to vector<8x32xf32>
    %181 = arith.subf %175, %180 : vector<8x32xf32>
    %182 = arith.mulf %181, %181 : vector<8x32xf32>
    %cst_75 = arith.constant dense<0.000000e+00> : vector<8xf32>
    %183 = vector.multi_reduction <add>, %182, %cst_75 [1] : vector<8x32xf32> to vector<8xf32>
    %184 = vector.shape_cast %183 : vector<8xf32> to vector<8x1xf32>
    %cst_76 = arith.constant 3.200000e+01 : f32
    %185 = vector.broadcast %cst_76 : f32 to vector<8x1xf32>
    %186 = arith.divf %184, %185 : vector<8x1xf32>
    %187 = vector.broadcast %179 : vector<8x1xf32> to vector<8x32xf32>
    %188 = arith.subf %175, %187 : vector<8x32xf32>
    %cst_77 = arith.constant 9.99999974E-6 : f32
    %189 = vector.broadcast %cst_77 : f32 to vector<8x1xf32>
    %190 = arith.addf %186, %189 : vector<8x1xf32>
    %191 = math.rsqrt %190 : vector<8x1xf32>
    %192 = vector.broadcast %191 : vector<8x1xf32> to vector<8x32xf32>
    %193 = arith.mulf %188, %192 : vector<8x32xf32>
    %c70 = arith.constant 70 : index
    %c0_78 = arith.constant 0 : index
    %194 = vector.load %arg4[%c70, %c0_78] : memref<136x160xf32, #tpu.memory_space<vmem>>, vector<1x32xf32>
    %195 = vector.broadcast %194 : vector<1x32xf32> to vector<8x32xf32>
    %196 = arith.mulf %193, %195 : vector<8x32xf32>
    %c72 = arith.constant 72 : index
    %c0_79 = arith.constant 0 : index
    %197 = vector.load %arg4[%c72, %c0_79] : memref<136x160xf32, #tpu.memory_space<vmem>>, vector<1x32xf32>
    %198 = vector.broadcast %197 : vector<1x32xf32> to vector<8x32xf32>
    %199 = arith.addf %196, %198 : vector<8x32xf32>
    %cst_80 = arith.constant dense<0.000000e+00> : vector<8x64xf32>
    %200 = tpu.matmul %199, %84, %cst_80 {dimension_numbers = #tpu.dot_dimension_numbers<[1], [0], [0], [1], [0, 0, 1, 1], [], []>} : vector<8x32xf32>, vector<32x64xf32>, vector<8x64xf32> -> vector<8x64xf32>
    %c74 = arith.constant 74 : index
    %c0_81 = arith.constant 0 : index
    %201 = vector.load %arg4[%c74, %c0_81] : memref<136x160xf32, #tpu.memory_space<vmem>>, vector<1x64xf32>
    %202 = vector.broadcast %201 : vector<1x64xf32> to vector<8x64xf32>
    %203 = arith.addf %200, %202 : vector<8x64xf32>
    %cst_82 = arith.constant 0.000000e+00 : f32
    %204 = vector.broadcast %cst_82 : f32 to vector<8x64xf32>
    %205 = arith.maximumf %203, %204 : vector<8x64xf32>
    %cst_83 = arith.constant dense<0.000000e+00> : vector<8x32xf32>
    %206 = tpu.matmul %205, %85, %cst_83 {dimension_numbers = #tpu.dot_dimension_numbers<[1], [0], [0], [1], [0, 0, 1, 1], [], []>} : vector<8x64xf32>, vector<64x32xf32>, vector<8x32xf32> -> vector<8x32xf32>
    %c76 = arith.constant 76 : index
    %c0_84 = arith.constant 0 : index
    %207 = vector.load %arg4[%c76, %c0_84] : memref<136x160xf32, #tpu.memory_space<vmem>>, vector<1x32xf32>
    %208 = vector.broadcast %207 : vector<1x32xf32> to vector<8x32xf32>
    %209 = arith.addf %206, %208 : vector<8x32xf32>
    %210 = arith.addf %199, %209 : vector<8x32xf32>
    %cst_85 = arith.constant dense<0.000000e+00> : vector<8xf32>
    %211 = vector.multi_reduction <add>, %210, %cst_85 [1] : vector<8x32xf32> to vector<8xf32>
    %212 = vector.shape_cast %211 : vector<8xf32> to vector<8x1xf32>
    %cst_86 = arith.constant 3.200000e+01 : f32
    %213 = vector.broadcast %cst_86 : f32 to vector<8x1xf32>
    %214 = arith.divf %212, %213 : vector<8x1xf32>
    %215 = vector.broadcast %214 : vector<8x1xf32> to vector<8x32xf32>
    %216 = arith.subf %210, %215 : vector<8x32xf32>
    %217 = arith.mulf %216, %216 : vector<8x32xf32>
    %cst_87 = arith.constant dense<0.000000e+00> : vector<8xf32>
    %218 = vector.multi_reduction <add>, %217, %cst_87 [1] : vector<8x32xf32> to vector<8xf32>
    %219 = vector.shape_cast %218 : vector<8xf32> to vector<8x1xf32>
    %cst_88 = arith.constant 3.200000e+01 : f32
    %220 = vector.broadcast %cst_88 : f32 to vector<8x1xf32>
    %221 = arith.divf %219, %220 : vector<8x1xf32>
    %222 = vector.broadcast %214 : vector<8x1xf32> to vector<8x32xf32>
    %223 = arith.subf %210, %222 : vector<8x32xf32>
    %cst_89 = arith.constant 9.99999974E-6 : f32
    %224 = vector.broadcast %cst_89 : f32 to vector<8x1xf32>
    %225 = arith.addf %221, %224 : vector<8x1xf32>
    %226 = math.rsqrt %225 : vector<8x1xf32>
    %227 = vector.broadcast %226 : vector<8x1xf32> to vector<8x32xf32>
    %228 = arith.mulf %223, %227 : vector<8x32xf32>
    %c78 = arith.constant 78 : index
    %c0_90 = arith.constant 0 : index
    %229 = vector.load %arg4[%c78, %c0_90] : memref<136x160xf32, #tpu.memory_space<vmem>>, vector<1x32xf32>
    %230 = vector.broadcast %229 : vector<1x32xf32> to vector<8x32xf32>
    %231 = arith.mulf %228, %230 : vector<8x32xf32>
    %c80 = arith.constant 80 : index
    %c0_91 = arith.constant 0 : index
    %232 = vector.load %arg4[%c80, %c0_91] : memref<136x160xf32, #tpu.memory_space<vmem>>, vector<1x32xf32>
    %233 = vector.broadcast %232 : vector<1x32xf32> to vector<8x32xf32>
    %234 = arith.addf %231, %233 : vector<8x32xf32>
    %c32_92 = arith.constant 32 : index
    %c0_93 = arith.constant 0 : index
    %235 = vector.load %arg7[%c32_92, %c0_93] : memref<320x96xf32, #tpu.memory_space<vmem>>, vector<32x96xf32>
    %c96_94 = arith.constant 96 : index
    %c0_95 = arith.constant 0 : index
    %236 = vector.load %arg7[%c96_94, %c0_95] : memref<320x96xf32, #tpu.memory_space<vmem>>, vector<32x32xf32>
    %c160 = arith.constant 160 : index
    %c0_96 = arith.constant 0 : index
    %237 = vector.load %arg7[%c160, %c0_96] : memref<320x96xf32, #tpu.memory_space<vmem>>, vector<32x64xf32>
    %c256 = arith.constant 256 : index
    %c0_97 = arith.constant 0 : index
    %238 = vector.load %arg7[%c256, %c0_97] : memref<320x96xf32, #tpu.memory_space<vmem>>, vector<64x32xf32>
    %cst_98 = arith.constant dense<0.000000e+00> : vector<8x96xf32>
    %239 = tpu.matmul %234, %235, %cst_98 {dimension_numbers = #tpu.dot_dimension_numbers<[1], [0], [0], [1], [0, 0, 1, 1], [], []>} : vector<8x32xf32>, vector<32x96xf32>, vector<8x96xf32> -> vector<8x96xf32>
    %c67 = arith.constant 67 : index
    %c0_99 = arith.constant 0 : index
    %240 = vector.load %arg4[%c67, %c0_99] : memref<136x160xf32, #tpu.memory_space<vmem>>, vector<1x96xf32>
    %241 = vector.broadcast %240 : vector<1x96xf32> to vector<8x96xf32>
    %242 = arith.addf %239, %241 : vector<8x96xf32>
    %243 = vector.extract_strided_slice %242 {offsets = [0, 0], sizes = [8, 32], strides = [1, 1]} : vector<8x96xf32> to vector<8x32xf32>
    %244 = vector.extract_strided_slice %242 {offsets = [0, 32], sizes = [8, 32], strides = [1, 1]} : vector<8x96xf32> to vector<8x32xf32>
    %245 = vector.extract_strided_slice %242 {offsets = [0, 64], sizes = [8, 32], strides = [1, 1]} : vector<8x96xf32> to vector<8x32xf32>
    %c69 = arith.constant 69 : index
    %c0_100 = arith.constant 0 : index
    %246 = vector.load %arg4[%c69, %c0_100] : memref<136x160xf32, #tpu.memory_space<vmem>>, vector<1x32xf32>
    %247 = vector.extract_strided_slice %243 {offsets = [0, 0], sizes = [8, 8], strides = [1, 1]} : vector<8x32xf32> to vector<8x8xf32>
    %248 = vector.extract_strided_slice %244 {offsets = [0, 0], sizes = [8, 8], strides = [1, 1]} : vector<8x32xf32> to vector<8x8xf32>
    %cst_101 = arith.constant dense<0.000000e+00> : vector<8x8xf32>
    %249 = tpu.matmul %247, %248, %cst_101 {dimension_numbers = #tpu.dot_dimension_numbers<[1], [1], [0], [0], [0, 0, 1, 0], [], []>} : vector<8x8xf32>, vector<8x8xf32>, vector<8x8xf32> -> vector<8x8xf32>
    %cst_102 = arith.constant 0.353553385 : f32
    %250 = vector.broadcast %cst_102 : f32 to vector<8x8xf32>
    %251 = arith.mulf %249, %250 : vector<8x8xf32>
    %cst_103 = arith.constant dense<0xFF800000> : vector<8xf32>
    %252 = vector.multi_reduction <maximumf>, %251, %cst_103 [1] : vector<8x8xf32> to vector<8xf32>
    %253 = vector.shape_cast %252 : vector<8xf32> to vector<8x1xf32>
    %254 = vector.broadcast %253 : vector<8x1xf32> to vector<8x8xf32>
    %255 = arith.subf %251, %254 : vector<8x8xf32>
    %256 = math.exp %255 : vector<8x8xf32>
    %cst_104 = arith.constant dense<0.000000e+00> : vector<8xf32>
    %257 = vector.multi_reduction <add>, %256, %cst_104 [1] : vector<8x8xf32> to vector<8xf32>
    %258 = vector.shape_cast %257 : vector<8xf32> to vector<8x1xf32>
    %259 = tpu.reciprocal %258 {approx = true} : vector<8x1xf32> -> vector<8x1xf32>
    %260 = vector.broadcast %259 : vector<8x1xf32> to vector<8x8xf32>
    %261 = arith.mulf %256, %260 : vector<8x8xf32>
    %262 = vector.extract_strided_slice %245 {offsets = [0, 0], sizes = [8, 8], strides = [1, 1]} : vector<8x32xf32> to vector<8x8xf32>
    %cst_105 = arith.constant dense<0.000000e+00> : vector<8x8xf32>
    %263 = tpu.matmul %261, %262, %cst_105 {dimension_numbers = #tpu.dot_dimension_numbers<[1], [0], [0], [1], [0, 0, 1, 1], [], []>} : vector<8x8xf32>, vector<8x8xf32>, vector<8x8xf32> -> vector<8x8xf32>
    %264 = vector.extract_strided_slice %236 {offsets = [0, 0], sizes = [8, 32], strides = [1, 1]} : vector<32x32xf32> to vector<8x32xf32>
    %cst_106 = arith.constant dense<0.000000e+00> : vector<8x32xf32>
    %265 = tpu.matmul %263, %264, %cst_106 {dimension_numbers = #tpu.dot_dimension_numbers<[1], [0], [0], [1], [0, 0, 1, 1], [], []>} : vector<8x8xf32>, vector<8x32xf32>, vector<8x32xf32> -> vector<8x32xf32>
    %266 = vector.broadcast %246 : vector<1x32xf32> to vector<8x32xf32>
    %267 = arith.addf %266, %265 : vector<8x32xf32>
    %268 = vector.extract_strided_slice %243 {offsets = [0, 8], sizes = [8, 8], strides = [1, 1]} : vector<8x32xf32> to vector<8x8xf32>
    %269 = vector.extract_strided_slice %244 {offsets = [0, 8], sizes = [8, 8], strides = [1, 1]} : vector<8x32xf32> to vector<8x8xf32>
    %cst_107 = arith.constant dense<0.000000e+00> : vector<8x8xf32>
    %270 = tpu.matmul %268, %269, %cst_107 {dimension_numbers = #tpu.dot_dimension_numbers<[1], [1], [0], [0], [0, 0, 1, 0], [], []>} : vector<8x8xf32>, vector<8x8xf32>, vector<8x8xf32> -> vector<8x8xf32>
    %cst_108 = arith.constant 0.353553385 : f32
    %271 = vector.broadcast %cst_108 : f32 to vector<8x8xf32>
    %272 = arith.mulf %270, %271 : vector<8x8xf32>
    %cst_109 = arith.constant dense<0xFF800000> : vector<8xf32>
    %273 = vector.multi_reduction <maximumf>, %272, %cst_109 [1] : vector<8x8xf32> to vector<8xf32>
    %274 = vector.shape_cast %273 : vector<8xf32> to vector<8x1xf32>
    %275 = vector.broadcast %274 : vector<8x1xf32> to vector<8x8xf32>
    %276 = arith.subf %272, %275 : vector<8x8xf32>
    %277 = math.exp %276 : vector<8x8xf32>
    %cst_110 = arith.constant dense<0.000000e+00> : vector<8xf32>
    %278 = vector.multi_reduction <add>, %277, %cst_110 [1] : vector<8x8xf32> to vector<8xf32>
    %279 = vector.shape_cast %278 : vector<8xf32> to vector<8x1xf32>
    %280 = tpu.reciprocal %279 {approx = true} : vector<8x1xf32> -> vector<8x1xf32>
    %281 = vector.broadcast %280 : vector<8x1xf32> to vector<8x8xf32>
    %282 = arith.mulf %277, %281 : vector<8x8xf32>
    %283 = vector.extract_strided_slice %245 {offsets = [0, 8], sizes = [8, 8], strides = [1, 1]} : vector<8x32xf32> to vector<8x8xf32>
    %cst_111 = arith.constant dense<0.000000e+00> : vector<8x8xf32>
    %284 = tpu.matmul %282, %283, %cst_111 {dimension_numbers = #tpu.dot_dimension_numbers<[1], [0], [0], [1], [0, 0, 1, 1], [], []>} : vector<8x8xf32>, vector<8x8xf32>, vector<8x8xf32> -> vector<8x8xf32>
    %285 = vector.extract_strided_slice %236 {offsets = [8, 0], sizes = [8, 32], strides = [1, 1]} : vector<32x32xf32> to vector<8x32xf32>
    %cst_112 = arith.constant dense<0.000000e+00> : vector<8x32xf32>
    %286 = tpu.matmul %284, %285, %cst_112 {dimension_numbers = #tpu.dot_dimension_numbers<[1], [0], [0], [1], [0, 0, 1, 1], [], []>} : vector<8x8xf32>, vector<8x32xf32>, vector<8x32xf32> -> vector<8x32xf32>
    %287 = arith.addf %267, %286 : vector<8x32xf32>
    %288 = vector.extract_strided_slice %243 {offsets = [0, 16], sizes = [8, 8], strides = [1, 1]} : vector<8x32xf32> to vector<8x8xf32>
    %289 = vector.extract_strided_slice %244 {offsets = [0, 16], sizes = [8, 8], strides = [1, 1]} : vector<8x32xf32> to vector<8x8xf32>
    %cst_113 = arith.constant dense<0.000000e+00> : vector<8x8xf32>
    %290 = tpu.matmul %288, %289, %cst_113 {dimension_numbers = #tpu.dot_dimension_numbers<[1], [1], [0], [0], [0, 0, 1, 0], [], []>} : vector<8x8xf32>, vector<8x8xf32>, vector<8x8xf32> -> vector<8x8xf32>
    %cst_114 = arith.constant 0.353553385 : f32
    %291 = vector.broadcast %cst_114 : f32 to vector<8x8xf32>
    %292 = arith.mulf %290, %291 : vector<8x8xf32>
    %cst_115 = arith.constant dense<0xFF800000> : vector<8xf32>
    %293 = vector.multi_reduction <maximumf>, %292, %cst_115 [1] : vector<8x8xf32> to vector<8xf32>
    %294 = vector.shape_cast %293 : vector<8xf32> to vector<8x1xf32>
    %295 = vector.broadcast %294 : vector<8x1xf32> to vector<8x8xf32>
    %296 = arith.subf %292, %295 : vector<8x8xf32>
    %297 = math.exp %296 : vector<8x8xf32>
    %cst_116 = arith.constant dense<0.000000e+00> : vector<8xf32>
    %298 = vector.multi_reduction <add>, %297, %cst_116 [1] : vector<8x8xf32> to vector<8xf32>
    %299 = vector.shape_cast %298 : vector<8xf32> to vector<8x1xf32>
    %300 = tpu.reciprocal %299 {approx = true} : vector<8x1xf32> -> vector<8x1xf32>
    %301 = vector.broadcast %300 : vector<8x1xf32> to vector<8x8xf32>
    %302 = arith.mulf %297, %301 : vector<8x8xf32>
    %303 = vector.extract_strided_slice %245 {offsets = [0, 16], sizes = [8, 8], strides = [1, 1]} : vector<8x32xf32> to vector<8x8xf32>
    %cst_117 = arith.constant dense<0.000000e+00> : vector<8x8xf32>
    %304 = tpu.matmul %302, %303, %cst_117 {dimension_numbers = #tpu.dot_dimension_numbers<[1], [0], [0], [1], [0, 0, 1, 1], [], []>} : vector<8x8xf32>, vector<8x8xf32>, vector<8x8xf32> -> vector<8x8xf32>
    %305 = vector.extract_strided_slice %236 {offsets = [16, 0], sizes = [8, 32], strides = [1, 1]} : vector<32x32xf32> to vector<8x32xf32>
    %cst_118 = arith.constant dense<0.000000e+00> : vector<8x32xf32>
    %306 = tpu.matmul %304, %305, %cst_118 {dimension_numbers = #tpu.dot_dimension_numbers<[1], [0], [0], [1], [0, 0, 1, 1], [], []>} : vector<8x8xf32>, vector<8x32xf32>, vector<8x32xf32> -> vector<8x32xf32>
    %307 = arith.addf %287, %306 : vector<8x32xf32>
    %308 = vector.extract_strided_slice %243 {offsets = [0, 24], sizes = [8, 8], strides = [1, 1]} : vector<8x32xf32> to vector<8x8xf32>
    %309 = vector.extract_strided_slice %244 {offsets = [0, 24], sizes = [8, 8], strides = [1, 1]} : vector<8x32xf32> to vector<8x8xf32>
    %cst_119 = arith.constant dense<0.000000e+00> : vector<8x8xf32>
    %310 = tpu.matmul %308, %309, %cst_119 {dimension_numbers = #tpu.dot_dimension_numbers<[1], [1], [0], [0], [0, 0, 1, 0], [], []>} : vector<8x8xf32>, vector<8x8xf32>, vector<8x8xf32> -> vector<8x8xf32>
    %cst_120 = arith.constant 0.353553385 : f32
    %311 = vector.broadcast %cst_120 : f32 to vector<8x8xf32>
    %312 = arith.mulf %310, %311 : vector<8x8xf32>
    %cst_121 = arith.constant dense<0xFF800000> : vector<8xf32>
    %313 = vector.multi_reduction <maximumf>, %312, %cst_121 [1] : vector<8x8xf32> to vector<8xf32>
    %314 = vector.shape_cast %313 : vector<8xf32> to vector<8x1xf32>
    %315 = vector.broadcast %314 : vector<8x1xf32> to vector<8x8xf32>
    %316 = arith.subf %312, %315 : vector<8x8xf32>
    %317 = math.exp %316 : vector<8x8xf32>
    %cst_122 = arith.constant dense<0.000000e+00> : vector<8xf32>
    %318 = vector.multi_reduction <add>, %317, %cst_122 [1] : vector<8x8xf32> to vector<8xf32>
    %319 = vector.shape_cast %318 : vector<8xf32> to vector<8x1xf32>
    %320 = tpu.reciprocal %319 {approx = true} : vector<8x1xf32> -> vector<8x1xf32>
    %321 = vector.broadcast %320 : vector<8x1xf32> to vector<8x8xf32>
    %322 = arith.mulf %317, %321 : vector<8x8xf32>
    %323 = vector.extract_strided_slice %245 {offsets = [0, 24], sizes = [8, 8], strides = [1, 1]} : vector<8x32xf32> to vector<8x8xf32>
    %cst_123 = arith.constant dense<0.000000e+00> : vector<8x8xf32>
    %324 = tpu.matmul %322, %323, %cst_123 {dimension_numbers = #tpu.dot_dimension_numbers<[1], [0], [0], [1], [0, 0, 1, 1], [], []>} : vector<8x8xf32>, vector<8x8xf32>, vector<8x8xf32> -> vector<8x8xf32>
    %325 = vector.extract_strided_slice %236 {offsets = [24, 0], sizes = [8, 32], strides = [1, 1]} : vector<32x32xf32> to vector<8x32xf32>
    %cst_124 = arith.constant dense<0.000000e+00> : vector<8x32xf32>
    %326 = tpu.matmul %324, %325, %cst_124 {dimension_numbers = #tpu.dot_dimension_numbers<[1], [0], [0], [1], [0, 0, 1, 1], [], []>} : vector<8x8xf32>, vector<8x32xf32>, vector<8x32xf32> -> vector<8x32xf32>
    %327 = arith.addf %307, %326 : vector<8x32xf32>
    %328 = arith.addf %234, %327 : vector<8x32xf32>
    %cst_125 = arith.constant dense<0.000000e+00> : vector<8xf32>
    %329 = vector.multi_reduction <add>, %328, %cst_125 [1] : vector<8x32xf32> to vector<8xf32>
    %330 = vector.shape_cast %329 : vector<8xf32> to vector<8x1xf32>
    %cst_126 = arith.constant 3.200000e+01 : f32
    %331 = vector.broadcast %cst_126 : f32 to vector<8x1xf32>
    %332 = arith.divf %330, %331 : vector<8x1xf32>
    %333 = vector.broadcast %332 : vector<8x1xf32> to vector<8x32xf32>
    %334 = arith.subf %328, %333 : vector<8x32xf32>
    %335 = arith.mulf %334, %334 : vector<8x32xf32>
    %cst_127 = arith.constant dense<0.000000e+00> : vector<8xf32>
    %336 = vector.multi_reduction <add>, %335, %cst_127 [1] : vector<8x32xf32> to vector<8xf32>
    %337 = vector.shape_cast %336 : vector<8xf32> to vector<8x1xf32>
    %cst_128 = arith.constant 3.200000e+01 : f32
    %338 = vector.broadcast %cst_128 : f32 to vector<8x1xf32>
    %339 = arith.divf %337, %338 : vector<8x1xf32>
    %340 = vector.broadcast %332 : vector<8x1xf32> to vector<8x32xf32>
    %341 = arith.subf %328, %340 : vector<8x32xf32>
    %cst_129 = arith.constant 9.99999974E-6 : f32
    %342 = vector.broadcast %cst_129 : f32 to vector<8x1xf32>
    %343 = arith.addf %339, %342 : vector<8x1xf32>
    %344 = math.rsqrt %343 : vector<8x1xf32>
    %345 = vector.broadcast %344 : vector<8x1xf32> to vector<8x32xf32>
    %346 = arith.mulf %341, %345 : vector<8x32xf32>
    %c71 = arith.constant 71 : index
    %c0_130 = arith.constant 0 : index
    %347 = vector.load %arg4[%c71, %c0_130] : memref<136x160xf32, #tpu.memory_space<vmem>>, vector<1x32xf32>
    %348 = vector.broadcast %347 : vector<1x32xf32> to vector<8x32xf32>
    %349 = arith.mulf %346, %348 : vector<8x32xf32>
    %c73 = arith.constant 73 : index
    %c0_131 = arith.constant 0 : index
    %350 = vector.load %arg4[%c73, %c0_131] : memref<136x160xf32, #tpu.memory_space<vmem>>, vector<1x32xf32>
    %351 = vector.broadcast %350 : vector<1x32xf32> to vector<8x32xf32>
    %352 = arith.addf %349, %351 : vector<8x32xf32>
    %cst_132 = arith.constant dense<0.000000e+00> : vector<8x64xf32>
    %353 = tpu.matmul %352, %237, %cst_132 {dimension_numbers = #tpu.dot_dimension_numbers<[1], [0], [0], [1], [0, 0, 1, 1], [], []>} : vector<8x32xf32>, vector<32x64xf32>, vector<8x64xf32> -> vector<8x64xf32>
    %c75 = arith.constant 75 : index
    %c0_133 = arith.constant 0 : index
    %354 = vector.load %arg4[%c75, %c0_133] : memref<136x160xf32, #tpu.memory_space<vmem>>, vector<1x64xf32>
    %355 = vector.broadcast %354 : vector<1x64xf32> to vector<8x64xf32>
    %356 = arith.addf %353, %355 : vector<8x64xf32>
    %cst_134 = arith.constant 0.000000e+00 : f32
    %357 = vector.broadcast %cst_134 : f32 to vector<8x64xf32>
    %358 = arith.maximumf %356, %357 : vector<8x64xf32>
    %cst_135 = arith.constant dense<0.000000e+00> : vector<8x32xf32>
    %359 = tpu.matmul %358, %238, %cst_135 {dimension_numbers = #tpu.dot_dimension_numbers<[1], [0], [0], [1], [0, 0, 1, 1], [], []>} : vector<8x64xf32>, vector<64x32xf32>, vector<8x32xf32> -> vector<8x32xf32>
    %c77 = arith.constant 77 : index
    %c0_136 = arith.constant 0 : index
    %360 = vector.load %arg4[%c77, %c0_136] : memref<136x160xf32, #tpu.memory_space<vmem>>, vector<1x32xf32>
    %361 = vector.broadcast %360 : vector<1x32xf32> to vector<8x32xf32>
    %362 = arith.addf %359, %361 : vector<8x32xf32>
    %363 = arith.addf %352, %362 : vector<8x32xf32>
    %cst_137 = arith.constant dense<0.000000e+00> : vector<8xf32>
    %364 = vector.multi_reduction <add>, %363, %cst_137 [1] : vector<8x32xf32> to vector<8xf32>
    %365 = vector.shape_cast %364 : vector<8xf32> to vector<8x1xf32>
    %cst_138 = arith.constant 3.200000e+01 : f32
    %366 = vector.broadcast %cst_138 : f32 to vector<8x1xf32>
    %367 = arith.divf %365, %366 : vector<8x1xf32>
    %368 = vector.broadcast %367 : vector<8x1xf32> to vector<8x32xf32>
    %369 = arith.subf %363, %368 : vector<8x32xf32>
    %370 = arith.mulf %369, %369 : vector<8x32xf32>
    %cst_139 = arith.constant dense<0.000000e+00> : vector<8xf32>
    %371 = vector.multi_reduction <add>, %370, %cst_139 [1] : vector<8x32xf32> to vector<8xf32>
    %372 = vector.shape_cast %371 : vector<8xf32> to vector<8x1xf32>
    %cst_140 = arith.constant 3.200000e+01 : f32
    %373 = vector.broadcast %cst_140 : f32 to vector<8x1xf32>
    %374 = arith.divf %372, %373 : vector<8x1xf32>
    %375 = vector.broadcast %367 : vector<8x1xf32> to vector<8x32xf32>
    %376 = arith.subf %363, %375 : vector<8x32xf32>
    %cst_141 = arith.constant 9.99999974E-6 : f32
    %377 = vector.broadcast %cst_141 : f32 to vector<8x1xf32>
    %378 = arith.addf %374, %377 : vector<8x1xf32>
    %379 = math.rsqrt %378 : vector<8x1xf32>
    %380 = vector.broadcast %379 : vector<8x1xf32> to vector<8x32xf32>
    %381 = arith.mulf %376, %380 : vector<8x32xf32>
    %c79 = arith.constant 79 : index
    %c0_142 = arith.constant 0 : index
    %382 = vector.load %arg4[%c79, %c0_142] : memref<136x160xf32, #tpu.memory_space<vmem>>, vector<1x32xf32>
    %383 = vector.broadcast %382 : vector<1x32xf32> to vector<8x32xf32>
    %384 = arith.mulf %381, %383 : vector<8x32xf32>
    %c81 = arith.constant 81 : index
    %c0_143 = arith.constant 0 : index
    %385 = vector.load %arg4[%c81, %c0_143] : memref<136x160xf32, #tpu.memory_space<vmem>>, vector<1x32xf32>
    %386 = vector.broadcast %385 : vector<1x32xf32> to vector<8x32xf32>
    %387 = arith.addf %384, %386 : vector<8x32xf32>
    %c0_144 = arith.constant 0 : index
    %c0_145 = arith.constant 0 : index
    %388 = vector.load %arg6[%c0_144, %c0_145] : memref<8x32xf32, #tpu.memory_space<vmem>>, vector<8x32xf32>
    tpu.vector_store %arg6[%c0_144, %c0_145], %387 {strides = array<i32>} : memref<8x32xf32, #tpu.memory_space<vmem>>, vector<8x32xf32>,
    return
  }
}

</mosaic_0001>

<llo_original>
// kernel: transformer_encoder_forward.1
$region0: #{transformer_encoder_forward.1}
  #allocation0 [shape = 'u32[]', space=smem, size = 0x4, offset = 0x4, fixed_abs, tag = 'smem constant byte address 0x4 - core index']
  #allocation1 [shape = 'u32[72,128]{1,0:T(1,128)}', space=vmem, size = 0x9000, scoped, tag = 'internal scratch']
  #allocation2 [shape = 'f32[320,96]{1,0:T(8,128)}', space=vmem, size = 0x28000, scoped, tag = 'scratch operand']
  #allocation3 [shape = 's32[1]{0}', space=sflag, size = 0x4, scoped, tag = 'scratch operand']
  #allocation6 [shape = 's32[]', space=sflag, size = 0x4, offset = 0, fixed_abs, tag = 'sflag constant byte address 0x0 - dummy sync flag']
  %s0 = inlined_call_operand.vmem [shape: f32[18,54], index: 0, kind: input, shape index: {}]
  %s1 = inlined_call_operand.vmem [shape: bf16[162,1024], index: 1, kind: input, shape index: {}]
  %s2 = inlined_call_operand.vmem [shape: f32[1,1024], index: 2, kind: input, shape index: {}]
  %s3 = inlined_call_operand.vmem [shape: bf16[1024,96], index: 3, kind: input, shape index: {}]
  %s4 = inlined_call_operand.vmem [shape: f32[136,160], index: 4, kind: input, shape index: {}]
  %s5 = inlined_call_operand.vmem [shape: f32[320,96], index: 5, kind: input, shape index: {}]
  %s6 = inlined_call_operand.hbm [shape: f32[8,32], index: 6, kind: output, shape index: {}]
  %s7 = sld [smem:[#allocation0]]
  $region49: #{transformer_encoder_forward.1} parent=0
    _
  %s9 = ssub.s32 1, %s7
  %s10 = scalar_select 0, %s9, %s7
  $region1: #{transformer_encoder_forward.1} parent=0
    #allocation4 [shape = 'u8[4096]{0}', space=vmem, size = 0x1000, scoped, tag = 'output window, operand 0, single buffered']
    #allocation5 [shape = 's32[1]{0}', space=sflag, size = 0x4, scoped, tag = 'scoped memory for transformer_encoder_forward.1']
    %11 = vsyncpa [#allocation5], 0
    // Predicated region
    $region2: #{transformer_encoder_forward.1} parent=1 // pred_check
      _
    $region3: #{transformer_encoder_forward.1} parent=1 // pred_check_branch
      %13 = sbr.rel (0) target = $region5
    $region4: #{transformer_encoder_forward.1} parent=1 // pred_region
      _
    $region5: #{transformer_encoder_forward.1} parent=1 // pred_fallthru
      _
    // Predicated region
    $region6: #{transformer_encoder_forward.1} parent=1 // pred_check
      _
    $region7: #{transformer_encoder_forward.1} parent=1 // pred_check_branch
      %15 = sbr.rel (0) target = $region9
    $region8: #{transformer_encoder_forward.1} parent=1 // pred_region
      _
    $region9: #{transformer_encoder_forward.1} parent=1 // pred_fallthru
      _
    // Predicated region
    $region10: #{transformer_encoder_forward.1} parent=1 // pred_check
      _
    $region11: #{transformer_encoder_forward.1} parent=1 // pred_check_branch
      %17 = sbr.rel (0) target = $region13
    $region12: #{transformer_encoder_forward.1} parent=1 // pred_region
      _
    $region13: #{transformer_encoder_forward.1} parent=1 // pred_fallthru
      _
    // Predicated region
    $region14: #{transformer_encoder_forward.1} parent=1 // pred_check
      _
    $region15: #{transformer_encoder_forward.1} parent=1 // pred_check_branch
      %19 = sbr.rel (0) target = $region17
    $region16: #{transformer_encoder_forward.1} parent=1 // pred_region
      _
    $region17: #{transformer_encoder_forward.1} parent=1 // pred_fallthru
      _
    // Predicated region
    $region18: #{transformer_encoder_forward.1} parent=1 // pred_check
      _
    $region19: #{transformer_encoder_forward.1} parent=1 // pred_check_branch
      %21 = sbr.rel (0) target = $region21
    $region20: #{transformer_encoder_forward.1} parent=1 // pred_region
      _
    $region21: #{transformer_encoder_forward.1} parent=1 // pred_fallthru
      _
    // Predicated region
    $region22: #{transformer_encoder_forward.1} parent=1 // pred_check
      _
    $region23: #{transformer_encoder_forward.1} parent=1 // pred_check_branch
      %24 = sbr.rel (0) target = $region25
    $region24: #{transformer_encoder_forward.1} parent=1 // pred_region
      loop: start=0, step=1, limit=1
      $region26: #{transformer_encoder_forward.1} parent=24 // loop_pre_header
        _
      $region27: #{transformer_encoder_forward.1} parent=24 // loop_header
        %s26 = sphi 0, %s30
        %p27 = scmp.ge.s32.totalorder %s26, 1
        %s31 = sphi %s5, %s5
        %s32 = sphi [#allocation2], [#allocation2]
      $region28: #{transformer_encoder_forward.1} parent=24 // loop_header_branch
        %29 = sbr.rel (%p27) target = $region32
      $region29: #{transformer_encoder_forward.1} parent=24 // loop_body
        %v33 = vld [vmem:[%s31] sm:$0xff]
        %34 = vst [vmem:[%s32] sm:$0xff] %v33
        %v35 = vld [vmem:[%s31 + $0x8] sm:$0xff]
        %36 = vst [vmem:[%s32 + $0x8] sm:$0xff] %v35
        %v37 = vld [vmem:[%s31 + $0x10] sm:$0xff]
        %38 = vst [vmem:[%s32 + $0x10] sm:$0xff] %v37
        %v39 = vld [vmem:[%s31 + $0x18] sm:$0xff]
        %40 = vst [vmem:[%s32 + $0x18] sm:$0xff] %v39
        %v41 = vld [vmem:[%s31 + $0x20] sm:$0xff]
        %42 = vst [vmem:[%s32 + $0x20] sm:$0xff] %v41
        %v43 = vld [vmem:[%s31 + $0x28] sm:$0xff]
        %44 = vst [vmem:[%s32 + $0x28] sm:$0xff] %v43
        %v45 = vld [vmem:[%s31 + $0x30] sm:$0xff]
        %46 = vst [vmem:[%s32 + $0x30] sm:$0xff] %v45
        %v47 = vld [vmem:[%s31 + $0x38] sm:$0xff]
        %48 = vst [vmem:[%s32 + $0x38] sm:$0xff] %v47
        %v49 = vld [vmem:[%s31 + $0x40] sm:$0xff]
        %50 = vst [vmem:[%s32 + $0x40] sm:$0xff] %v49
        %v51 = vld [vmem:[%s31 + $0x48] sm:$0xff]
        %52 = vst [vmem:[%s32 + $0x48] sm:$0xff] %v51
        %v53 = vld [vmem:[%s31 + $0x50] sm:$0xff]
        %54 = vst [vmem:[%s32 + $0x50] sm:$0xff] %v53
        %v55 = vld [vmem:[%s31 + $0x58] sm:$0xff]
        %56 = vst [vmem:[%s32 + $0x58] sm:$0xff] %v55
        %v57 = vld [vmem:[%s31 + $0x60] sm:$0xff]
        %58 = vst [vmem:[%s32 + $0x60] sm:$0xff] %v57
        %v59 = vld [vmem:[%s31 + $0x68] sm:$0xff]
        %60 = vst [vmem:[%s32 + $0x68] sm:$0xff] %v59
        %v61 = vld [vmem:[%s31 + $0x70] sm:$0xff]
        %62 = vst [vmem:[%s32 + $0x70] sm:$0xff] %v61
        %v63 = vld [vmem:[%s31 + $0x78] sm:$0xff]
        %64 = vst [vmem:[%s32 + $0x78] sm:$0xff] %v63
        %v65 = vld [vmem:[%s31 + $0x80] sm:$0xff]
        %66 = vst [vmem:[%s32 + $0x80] sm:$0xff] %v65
        %v67 = vld [vmem:[%s31 + $0x88] sm:$0xff]
        %68 = vst [vmem:[%s32 + $0x88] sm:$0xff] %v67
        %v69 = vld [vmem:[%s31 + $0x90] sm:$0xff]
        %70 = vst [vmem:[%s32 + $0x90] sm:$0xff] %v69
        %v71 = vld [vmem:[%s31 + $0x98] sm:$0xff]
        %72 = vst [vmem:[%s32 + $0x98] sm:$0xff] %v71
        %v73 = vld [vmem:[%s31 + $0xa0] sm:$0xff]
        %74 = vst [vmem:[%s32 + $0xa0] sm:$0xff] %v73
        %v75 = vld [vmem:[%s31 + $0xa8] sm:$0xff]
        %76 = vst [vmem:[%s32 + $0xa8] sm:$0xff] %v75
        %v77 = vld [vmem:[%s31 + $0xb0] sm:$0xff]
        %78 = vst [vmem:[%s32 + $0xb0] sm:$0xff] %v77
        %v79 = vld [vmem:[%s31 + $0xb8] sm:$0xff]
        %80 = vst [vmem:[%s32 + $0xb8] sm:$0xff] %v79
        %v81 = vld [vmem:[%s31 + $0xc0] sm:$0xff]
        %82 = vst [vmem:[%s32 + $0xc0] sm:$0xff] %v81
        %v83 = vld [vmem:[%s31 + $0xc8] sm:$0xff]
        %84 = vst [vmem:[%s32 + $0xc8] sm:$0xff] %v83
        %v85 = vld [vmem:[%s31 + $0xd0] sm:$0xff]
        %86 = vst [vmem:[%s32 + $0xd0] sm:$0xff] %v85
        %v87 = vld [vmem:[%s31 + $0xd8] sm:$0xff]
        %88 = vst [vmem:[%s32 + $0xd8] sm:$0xff] %v87
        %v89 = vld [vmem:[%s31 + $0xe0] sm:$0xff]
        %90 = vst [vmem:[%s32 + $0xe0] sm:$0xff] %v89
        %v91 = vld [vmem:[%s31 + $0xe8] sm:$0xff]
        %92 = vst [vmem:[%s32 + $0xe8] sm:$0xff] %v91
        %v93 = vld [vmem:[%s31 + $0xf0] sm:$0xff]
        %94 = vst [vmem:[%s32 + $0xf0] sm:$0xff] %v93
        %v95 = vld [vmem:[%s31 + $0xf8] sm:$0xff]
        %96 = vst [vmem:[%s32 + $0xf8] sm:$0xff] %v95
        %v97 = vld [vmem:[%s31 + $0x100] sm:$0xff]
        %98 = vst [vmem:[%s32 + $0x100] sm:$0xff] %v97
        %v99 = vld [vmem:[%s31 + $0x108] sm:$0xff]
        %100 = vst [vmem:[%s32 + $0x108] sm:$0xff] %v99
        %v101 = vld [vmem:[%s31 + $0x110] sm:$0xff]
        %102 = vst [vmem:[%s32 + $0x110] sm:$0xff] %v101
        %v103 = vld [vmem:[%s31 + $0x118] sm:$0xff]
        %104 = vst [vmem:[%s32 + $0x118] sm:$0xff] %v103
        %v105 = vld [vmem:[%s31 + $0x120] sm:$0xff]
        %106 = vst [vmem:[%s32 + $0x120] sm:$0xff] %v105
        %v107 = vld [vmem:[%s31 + $0x128] sm:$0xff]
        %108 = vst [vmem:[%s32 + $0x128] sm:$0xff] %v107
        %v109 = vld [vmem:[%s31 + $0x130] sm:$0xff]
        %110 = vst [vmem:[%s32 + $0x130] sm:$0xff] %v109
        %v111 = vld [vmem:[%s31 + $0x138] sm:$0xff]
        %112 = vst [vmem:[%s32 + $0x138] sm:$0xff] %v111
      $region30: #{transformer_encoder_forward.1} parent=24 // loop_footer
        %s30 = sadd.s32 1, %s26
      $region31: #{transformer_encoder_forward.1} parent=24 // loop_footer_branch
        %25 = sbr.rel target = $region27
      $region32: #{transformer_encoder_forward.1} parent=24 // loop_exit
        _
    $region25: #{transformer_encoder_forward.1} parent=1 // pred_fallthru
      _
    // Predicated region
    $region33: #{transformer_encoder_forward.1} parent=1 // pred_check
      _
    $region34: #{transformer_encoder_forward.1} parent=1 // pred_check_branch
      %114 = sbr.rel target = $region36
    $region35: #{transformer_encoder_forward.1} parent=1 // pred_region
      _
    $region36: #{transformer_encoder_forward.1} parent=1 // pred_fallthru
      _
    // Predicated region
    $region37: #{transformer_encoder_forward.1} parent=1 // pred_check
      _
    $region38: #{transformer_encoder_forward.1} parent=1 // pred_check_branch
      %117 = sbr.rel (0) target = $region40
    $region39: #{transformer_encoder_forward.1} parent=1 // pred_region
      %118 = vsyncadd [#allocation3], 5120
    $region40: #{transformer_encoder_forward.1} parent=1 // pred_fallthru
      _
    %v119 = vld [vmem:[%s0] sm:$0xff]
    %v120 = vld [vmem:[%s0 + $0x8] sm:$0xff]
    %v121 = vld [vmem:[%s0 + $0x1] sm:$0xff]
    %v122 = vld [vmem:[%s0 + $0x9] sm:$0xff]
    %v123 = vld [vmem:[%s0 + $0x2] sm:$0xff]
    %v124 = vld [vmem:[%s0 + $0xa] sm:$0xff]
    %127 = vrot.lane.b32.xlu0 %v121, 54
    %v128 = vpop.permute.xlu0 %127
    %129 = vrot.lane.b32.xlu0 %v122, 54
    %v130 = vpop.permute.xlu0 %129
    %135 = vrot.lane.b32.xlu0 %v123, 108
    %v136 = vpop.permute.xlu0 %135
    %137 = vrot.lane.b32.xlu0 %v124, 108
    %v138 = vpop.permute.xlu0 %137
    %vm141 = vcmask 441344
    %v142 = vsel %vm141, %v119, %v128
    %v143 = vsel %vm141, %v120, %v130
    %vm144 = vcmask 883712
    %v145 = vsel %vm144, %v142, %v136
    %v146 = vsel %vm144, %v143, %v138
    %v147 = vpack.c.bf16 %v146, %v145
    %v148 = vpack.c.bf16 %v138, %v136
    %v149 = vld [vmem:[%s1] sm:$0xff]
    %v150 = vld [vmem:[%s1 + $0x8] sm:$0xff]
    %v151 = vld [vmem:[%s1 + $0x10] sm:$0xff]
    %v152 = vld [vmem:[%s1 + $0x18] sm:$0xff]
    %v153 = vld [vmem:[%s1 + $0x20] sm:$0xff]
    %v154 = vld [vmem:[%s1 + $0x28] sm:$0xff]
    %v155 = vld [vmem:[%s1 + $0x30] sm:$0xff]
    %v156 = vld [vmem:[%s1 + $0x38] sm:$0xff]
    %v157 = vld [vmem:[%s1 + $0x40] sm:$0xff]
    %v158 = vld [vmem:[%s1 + $0x48] sm:$0xff]
    %v159 = vld [vmem:[%s1 + $0x50] sm:$0xff]
    %v160 = vld [vmem:[%s1 + $0x58] sm:$0xff]
    %v161 = vld [vmem:[%s1 + $0x60] sm:$0xff]
    %v162 = vld [vmem:[%s1 + $0x68] sm:$0xff]
    %v163 = vld [vmem:[%s1 + $0x70] sm:$0xff]
    %v164 = vld [vmem:[%s1 + $0x78] sm:$0xff]
    %v165 = vld [vmem:[%s1 + $0x80] sm:$0xff]
    %v166 = vld [vmem:[%s1 + $0x88] sm:$0xff]
    %v167 = vld [vmem:[%s1 + $0x90] sm:$0xff]
    %v168 = vld [vmem:[%s1 + $0x98] sm:$0xff]
    %v169 = vld [vmem:[%s1 + $0xa0] sm:$0xff]
    %v170 = vld [vmem:[%s1 + $0xa8] sm:$0xff]
    %v171 = vld [vmem:[%s1 + $0xb0] sm:$0xff]
    %v172 = vld [vmem:[%s1 + $0xb8] sm:$0xff]
    %v173 = vld [vmem:[%s1 + $0xc0] sm:$0xff]
    %v174 = vld [vmem:[%s1 + $0xc8] sm:$0xff]
    %v175 = vld [vmem:[%s1 + $0xd0] sm:$0xff]
    %v176 = vld [vmem:[%s1 + $0xd8] sm:$0xff]
    %v177 = vld [vmem:[%s1 + $0xe0] sm:$0xff]
    %v178 = vld [vmem:[%s1 + $0xe8] sm:$0xff]
    %v179 = vld [vmem:[%s1 + $0xf0] sm:$0xff]
    %v180 = vld [vmem:[%s1 + $0xf8] sm:$0xff]
    %v181 = vld [vmem:[%s1 + $0x100] sm:$0xff]
    %v182 = vld [vmem:[%s1 + $0x108] sm:$0xff]
    %v183 = vld [vmem:[%s1 + $0x110] sm:$0xff]
    %v184 = vld [vmem:[%s1 + $0x118] sm:$0xff]
    %v185 = vld [vmem:[%s1 + $0x120] sm:$0xff]
    %v186 = vld [vmem:[%s1 + $0x128] sm:$0xff]
    %v187 = vld [vmem:[%s1 + $0x130] sm:$0xff]
    %v188 = vld [vmem:[%s1 + $0x138] sm:$0xff]
    %v189 = vld [vmem:[%s1 + $0x140] sm:$0xff]
    %v190 = vld [vmem:[%s1 + $0x148] sm:$0xff]
    %v191 = vld [vmem:[%s1 + $0x150] sm:$0xff]
    %v192 = vld [vmem:[%s1 + $0x158] sm:$0xff]
    %v193 = vld [vmem:[%s1 + $0x160] sm:$0xff]
    %v194 = vld [vmem:[%s1 + $0x168] sm:$0xff]
    %v195 = vld [vmem:[%s1 + $0x170] sm:$0xff]
    %v196 = vld [vmem:[%s1 + $0x178] sm:$0xff]
    %v197 = vld [vmem:[%s1 + $0x180] sm:$0xff]
    %v198 = vld [vmem:[%s1 + $0x188] sm:$0xff]
    %v199 = vld [vmem:[%s1 + $0x190] sm:$0xff]
    %v200 = vld [vmem:[%s1 + $0x198] sm:$0xff]
    %v201 = vld [vmem:[%s1 + $0x1a0] sm:$0xff]
    %v202 = vld [vmem:[%s1 + $0x1a8] sm:$0xff]
    %v203 = vld [vmem:[%s1 + $0x1b0] sm:$0xff]
    %v204 = vld [vmem:[%s1 + $0x1b8] sm:$0xff]
    %v205 = vld [vmem:[%s1 + $0x1c0] sm:$0xff]
    %v206 = vld [vmem:[%s1 + $0x1c8] sm:$0xff]
    %v207 = vld [vmem:[%s1 + $0x1d0] sm:$0xff]
    %v208 = vld [vmem:[%s1 + $0x1d8] sm:$0xff]
    %v209 = vld [vmem:[%s1 + $0x1e0] sm:$0xff]
    %v210 = vld [vmem:[%s1 + $0x1e8] sm:$0xff]
    %v211 = vld [vmem:[%s1 + $0x1f0] sm:$0xff]
    %v212 = vld [vmem:[%s1 + $0x1f8] sm:$0xff]
    %v213 = vld [vmem:[%s1 + $0x200] sm:$0xff]
    %v214 = vld [vmem:[%s1 + $0x208] sm:$0xff]
    %v215 = vld [vmem:[%s1 + $0x210] sm:$0xff]
    %v216 = vld [vmem:[%s1 + $0x218] sm:$0xff]
    %v217 = vld [vmem:[%s1 + $0x220] sm:$0xff]
    %v218 = vld [vmem:[%s1 + $0x228] sm:$0xff]
    %v219 = vld [vmem:[%s1 + $0x230] sm:$0xff]
    %v220 = vld [vmem:[%s1 + $0x238] sm:$0xff]
    %v221 = vld [vmem:[%s1 + $0x240] sm:$0xff]
    %v222 = vld [vmem:[%s1 + $0x248] sm:$0xff]
    %v223 = vld [vmem:[%s1 + $0x250] sm:$0xff]
    %v224 = vld [vmem:[%s1 + $0x258] sm:$0xff]
    %v225 = vld [vmem:[%s1 + $0x260] sm:$0xff]
    %v226 = vld [vmem:[%s1 + $0x268] sm:$0xff]
    %v227 = vld [vmem:[%s1 + $0x270] sm:$0xff]
    %v228 = vld [vmem:[%s1 + $0x278] sm:$0xff]
    %v229 = vld [vmem:[%s1 + $0x280] sm:$0x11]
    %v230 = vld [vmem:[%s1 + $0x288] sm:$0x11]
    %v231 = vld [vmem:[%s1 + $0x290] sm:$0x11]
    %v232 = vld [vmem:[%s1 + $0x298] sm:$0x11]
    %v233 = vld [vmem:[%s2] sm:$0xff]
    %v235 = vperm.slane %v233, 0
    %v236 = vperm.slane %v233, 1
    %v237 = vperm.slane %v233, 2
    %v238 = vperm.slane %v233, 3
    %v239 = vperm.slane %v233, 4
    %v240 = vperm.slane %v233, 5
    %v241 = vperm.slane %v233, 6
    %v242 = vperm.slane %v233, 7
    %v335 = vunpack.c.l.b16 %v149
    %v336 = vunpack.c.h.b16 %v149
    %v337 = vunpack.c.l.b16 %v150
    %v338 = vunpack.c.h.b16 %v150
    %v339 = vunpack.c.l.b16 %v151
    %v340 = vunpack.c.h.b16 %v151
    %v341 = vunpack.c.l.b16 %v152
    %v342 = vunpack.c.h.b16 %v152
    %v343 = vunpack.c.l.b16 %v153
    %v344 = vunpack.c.h.b16 %v153
    %v345 = vunpack.c.l.b16 %v154
    %v346 = vunpack.c.h.b16 %v154
    %v347 = vunpack.c.l.b16 %v155
    %v348 = vunpack.c.h.b16 %v155
    %v349 = vunpack.c.l.b16 %v156
    %v350 = vunpack.c.h.b16 %v156
    %v351 = vunpack.c.l.b16 %v157
    %v352 = vunpack.c.h.b16 %v157
    %v353 = vunpack.c.l.b16 %v158
    %v354 = vunpack.c.h.b16 %v158
    %v355 = vunpack.c.l.b16 %v159
    %v356 = vunpack.c.h.b16 %v159
    %v357 = vunpack.c.l.b16 %v160
    %v358 = vunpack.c.h.b16 %v160
    %v359 = vunpack.c.l.b16 %v161
    %v360 = vunpack.c.h.b16 %v161
    %v361 = vunpack.c.l.b16 %v162
    %v362 = vunpack.c.h.b16 %v162
    %v363 = vunpack.c.l.b16 %v163
    %v364 = vunpack.c.h.b16 %v163
    %v365 = vunpack.c.l.b16 %v164
    %v366 = vunpack.c.h.b16 %v164
    %v367 = vunpack.c.l.b16 %v165
    %v368 = vunpack.c.h.b16 %v165
    %v369 = vunpack.c.l.b16 %v166
    %v370 = vunpack.c.h.b16 %v166
    %v371 = vunpack.c.l.b16 %v167
    %v372 = vunpack.c.h.b16 %v167
    %v373 = vunpack.c.l.b16 %v168
    %v374 = vunpack.c.h.b16 %v168
    %v375 = vunpack.c.l.b16 %v169
    %v376 = vunpack.c.h.b16 %v169
    %v377 = vunpack.c.l.b16 %v170
    %v378 = vunpack.c.h.b16 %v170
    %v379 = vunpack.c.l.b16 %v171
    %v380 = vunpack.c.h.b16 %v171
    %v381 = vunpack.c.l.b16 %v172
    %v382 = vunpack.c.h.b16 %v172
    %v383 = vunpack.c.l.b16 %v173
    %v384 = vunpack.c.h.b16 %v173
    %v385 = vunpack.c.l.b16 %v174
    %v386 = vunpack.c.h.b16 %v174
    %v387 = vunpack.c.l.b16 %v175
    %v388 = vunpack.c.h.b16 %v175
    %v389 = vunpack.c.l.b16 %v176
    %v390 = vunpack.c.h.b16 %v176
    %v391 = vunpack.c.l.b16 %v177
    %v392 = vunpack.c.h.b16 %v177
    %v393 = vunpack.c.l.b16 %v178
    %v394 = vunpack.c.h.b16 %v178
    %v395 = vunpack.c.l.b16 %v179
    %v396 = vunpack.c.h.b16 %v179
    %v397 = vunpack.c.l.b16 %v180
    %v398 = vunpack.c.h.b16 %v180
    %v399 = vunpack.c.l.b16 %v181
    %v400 = vunpack.c.h.b16 %v181
    %v401 = vunpack.c.l.b16 %v182
    %v402 = vunpack.c.h.b16 %v182
    %v403 = vunpack.c.l.b16 %v183
    %v404 = vunpack.c.h.b16 %v183
    %v405 = vunpack.c.l.b16 %v184
    %v406 = vunpack.c.h.b16 %v184
    %v407 = vunpack.c.l.b16 %v185
    %v408 = vunpack.c.h.b16 %v185
    %v409 = vunpack.c.l.b16 %v186
    %v410 = vunpack.c.h.b16 %v186
    %v411 = vunpack.c.l.b16 %v187
    %v412 = vunpack.c.h.b16 %v187
    %v413 = vunpack.c.l.b16 %v188
    %v414 = vunpack.c.h.b16 %v188
    %v415 = vunpack.c.l.b16 %v189
    %v416 = vunpack.c.h.b16 %v189
    %v417 = vunpack.c.l.b16 %v190
    %v418 = vunpack.c.h.b16 %v190
    %v419 = vunpack.c.l.b16 %v191
    %v420 = vunpack.c.h.b16 %v191
    %v421 = vunpack.c.l.b16 %v192
    %v422 = vunpack.c.h.b16 %v192
    %v423 = vunpack.c.l.b16 %v193
    %v424 = vunpack.c.h.b16 %v193
    %v425 = vunpack.c.l.b16 %v194
    %v426 = vunpack.c.h.b16 %v194
    %v427 = vunpack.c.l.b16 %v195
    %v428 = vunpack.c.h.b16 %v195
    %v429 = vunpack.c.l.b16 %v196
    %v430 = vunpack.c.h.b16 %v196
    %v431 = vunpack.c.l.b16 %v197
    %v432 = vunpack.c.h.b16 %v197
    %v433 = vunpack.c.l.b16 %v198
    %v434 = vunpack.c.h.b16 %v198
    %v435 = vunpack.c.l.b16 %v199
    %v436 = vunpack.c.h.b16 %v199
    %v437 = vunpack.c.l.b16 %v200
    %v438 = vunpack.c.h.b16 %v200
    %v439 = vunpack.c.l.b16 %v201
    %v440 = vunpack.c.h.b16 %v201
    %v441 = vunpack.c.l.b16 %v202
    %v442 = vunpack.c.h.b16 %v202
    %v443 = vunpack.c.l.b16 %v203
    %v444 = vunpack.c.h.b16 %v203
    %v445 = vunpack.c.l.b16 %v204
    %v446 = vunpack.c.h.b16 %v204
    %v447 = vunpack.c.l.b16 %v205
    %v448 = vunpack.c.h.b16 %v205
    %v449 = vunpack.c.l.b16 %v206
    %v450 = vunpack.c.h.b16 %v206
    %v451 = vunpack.c.l.b16 %v207
    %v452 = vunpack.c.h.b16 %v207
    %v453 = vunpack.c.l.b16 %v208
    %v454 = vunpack.c.h.b16 %v208
    %v455 = vunpack.c.l.b16 %v209
    %v456 = vunpack.c.h.b16 %v209
    %v457 = vunpack.c.l.b16 %v210
    %v458 = vunpack.c.h.b16 %v210
    %v459 = vunpack.c.l.b16 %v211
    %v460 = vunpack.c.h.b16 %v211
    %v461 = vunpack.c.l.b16 %v212
    %v462 = vunpack.c.h.b16 %v212
    %v463 = vunpack.c.l.b16 %v213
    %v464 = vunpack.c.h.b16 %v213
    %v465 = vunpack.c.l.b16 %v214
    %v466 = vunpack.c.h.b16 %v214
    %v467 = vunpack.c.l.b16 %v215
    %v468 = vunpack.c.h.b16 %v215
    %v469 = vunpack.c.l.b16 %v216
    %v470 = vunpack.c.h.b16 %v216
    %v471 = vunpack.c.l.b16 %v217
    %v472 = vunpack.c.h.b16 %v217
    %v473 = vunpack.c.l.b16 %v218
    %v474 = vunpack.c.h.b16 %v218
    %v475 = vunpack.c.l.b16 %v219
    %v476 = vunpack.c.h.b16 %v219
    %v477 = vunpack.c.l.b16 %v220
    %v478 = vunpack.c.h.b16 %v220
    %v479 = vunpack.c.l.b16 %v221
    %v480 = vunpack.c.h.b16 %v221
    %v481 = vunpack.c.l.b16 %v222
    %v482 = vunpack.c.h.b16 %v222
    %v483 = vunpack.c.l.b16 %v223
    %v484 = vunpack.c.h.b16 %v223
    %v485 = vunpack.c.l.b16 %v224
    %v486 = vunpack.c.h.b16 %v224
    %v487 = vunpack.c.l.b16 %v225
    %v488 = vunpack.c.h.b16 %v225
    %v489 = vunpack.c.l.b16 %v226
    %v490 = vunpack.c.h.b16 %v226
    %v491 = vunpack.c.l.b16 %v227
    %v492 = vunpack.c.h.b16 %v227
    %v493 = vunpack.c.l.b16 %v228
    %v494 = vunpack.c.h.b16 %v228
    %v495 = vunpack.c.l.b16 %v229
    %v496 = vunpack.c.h.b16 %v229
    %v497 = vunpack.c.l.b16 %v230
    %v498 = vunpack.c.h.b16 %v230
    %v499 = vunpack.c.l.b16 %v231
    %v500 = vunpack.c.h.b16 %v231
    %v501 = vunpack.c.l.b16 %v232
    %v502 = vunpack.c.h.b16 %v232
    %v503 = vpack.c.b16 %v343, %v335
    %v504 = vpack.c.b16 %v344, %v336
    %v505 = vpack.c.b16 %v345, %v337
    %v506 = vpack.c.b16 %v346, %v338
    %v507 = vpack.c.b16 %v347, %v339
    %v508 = vpack.c.b16 %v348, %v340
    %v509 = vpack.c.b16 %v349, %v341
    %v510 = vpack.c.b16 %v350, %v342
    %v511 = vpack.c.b16 %v359, %v351
    %v512 = vpack.c.b16 %v360, %v352
    %v513 = vpack.c.b16 %v361, %v353
    %v514 = vpack.c.b16 %v362, %v354
    %v515 = vpack.c.b16 %v363, %v355
    %v516 = vpack.c.b16 %v364, %v356
    %v517 = vpack.c.b16 %v365, %v357
    %v518 = vpack.c.b16 %v366, %v358
    %v519 = vpack.c.b16 %v375, %v367
    %v520 = vpack.c.b16 %v376, %v368
    %v521 = vpack.c.b16 %v377, %v369
    %v522 = vpack.c.b16 %v378, %v370
    %v523 = vpack.c.b16 %v379, %v371
    %v524 = vpack.c.b16 %v380, %v372
    %v525 = vpack.c.b16 %v381, %v373
    %v526 = vpack.c.b16 %v382, %v374
    %v527 = vpack.c.b16 %v391, %v383
    %v528 = vpack.c.b16 %v392, %v384
    %v529 = vpack.c.b16 %v393, %v385
    %v530 = vpack.c.b16 %v394, %v386
    %v531 = vpack.c.b16 %v395, %v387
    %v532 = vpack.c.b16 %v396, %v388
    %v533 = vpack.c.b16 %v397, %v389
    %v534 = vpack.c.b16 %v398, %v390
    %v535 = vpack.c.b16 %v407, %v399
    %v536 = vpack.c.b16 %v408, %v400
    %v537 = vpack.c.b16 %v409, %v401
    %v538 = vpack.c.b16 %v410, %v402
    %v539 = vpack.c.b16 %v411, %v403
    %v540 = vpack.c.b16 %v412, %v404
    %v541 = vpack.c.b16 %v413, %v405
    %v542 = vpack.c.b16 %v414, %v406
    %v543 = vpack.c.b16 %v423, %v415
    %v544 = vpack.c.b16 %v424, %v416
    %v545 = vpack.c.b16 %v425, %v417
    %v546 = vpack.c.b16 %v426, %v418
    %v547 = vpack.c.b16 %v427, %v419
    %v548 = vpack.c.b16 %v428, %v420
    %v549 = vpack.c.b16 %v429, %v421
    %v550 = vpack.c.b16 %v430, %v422
    %v551 = vpack.c.b16 %v439, %v431
    %v552 = vpack.c.b16 %v440, %v432
    %v553 = vpack.c.b16 %v441, %v433
    %v554 = vpack.c.b16 %v442, %v434
    %v555 = vpack.c.b16 %v443, %v435
    %v556 = vpack.c.b16 %v444, %v436
    %v557 = vpack.c.b16 %v445, %v437
    %v558 = vpack.c.b16 %v446, %v438
    %v559 = vpack.c.b16 %v455, %v447
    %v560 = vpack.c.b16 %v456, %v448
    %v561 = vpack.c.b16 %v457, %v449
    %v562 = vpack.c.b16 %v458, %v450
    %v563 = vpack.c.b16 %v459, %v451
    %v564 = vpack.c.b16 %v460, %v452
    %v565 = vpack.c.b16 %v461, %v453
    %v566 = vpack.c.b16 %v462, %v454
    %v567 = vpack.c.b16 %v471, %v463
    %v568 = vpack.c.b16 %v472, %v464
    %v569 = vpack.c.b16 %v473, %v465
    %v570 = vpack.c.b16 %v474, %v466
    %v571 = vpack.c.b16 %v475, %v467
    %v572 = vpack.c.b16 %v476, %v468
    %v573 = vpack.c.b16 %v477, %v469
    %v574 = vpack.c.b16 %v478, %v470
    %v575 = vpack.c.b16 %v487, %v479
    %v576 = vpack.c.b16 %v488, %v480
    %v577 = vpack.c.b16 %v489, %v481
    %v578 = vpack.c.b16 %v490, %v482
    %v579 = vpack.c.b16 %v491, %v483
    %v580 = vpack.c.b16 %v492, %v484
    %v581 = vpack.c.b16 %v493, %v485
    %v582 = vpack.c.b16 %v494, %v486
    %v583 = vpack.c.b16 %v495, %v495
    %v584 = vpack.c.b16 %v496, %v496
    %v585 = vpack.c.b16 %v497, %v497
    %v586 = vpack.c.b16 %v498, %v498
    %v587 = vpack.c.b16 %v499, %v499
    %v588 = vpack.c.b16 %v500, %v500
    %v589 = vpack.c.b16 %v501, %v501
    %v590 = vpack.c.b16 %v502, %v502
    %vm671 = vcmask 277504
    %v673 = vsel %vm671, %v148, 0
    %vm675 = vcmask 1040384
    %v677 = vsel %vm675, %v583, 0
    %v680 = vsel %vm675, %v584, 0
    %v683 = vsel %vm675, %v585, 0
    %v686 = vsel %vm675, %v586, 0
    %v689 = vsel %vm675, %v587, 0
    %v692 = vsel %vm675, %v588, 0
    %v695 = vsel %vm675, %v589, 0
    %v698 = vsel %vm675, %v590, 0
    %700 = vmatpush.bf16.msra.mxu0 %v559
    %701 = vmatpush.bf16.msra.mxu0 %v551
    %702 = vmatpush.bf16.msra.mxu0 %v543
    %703 = vmatpush.bf16.msra.mxu0 %v535
    %704 = vmatpush.bf16.msra.mxu0 %v527
    %705 = vmatpush.bf16.msra.mxu0 %v519
    %706 = vmatpush.bf16.msra.mxu0 %v511
    %707 = vmatpush.bf16.msra.mxu0 %v503
    %708 = vmatmul.bf16.gmra.mxu0 %v147
    %v709 = vpop.f32.mrf.mxu0
    %v710 = vadd.f32 %v235, %v709
    %v711 = vpop.f32.mrf.mxu0
    %v712 = vadd.f32 %v235, %v711
    %713 = vdwg.mxu0
    %714 = vmatpush.bf16.msra.mxu0 0
    %715 = vmatpush.bf16.msra.mxu0 0
    %716 = vmatpush.bf16.msra.mxu0 0
    %717 = vmatpush.bf16.msra.mxu0 0
    %718 = vmatpush.bf16.msra.mxu0 0
    %719 = vmatpush.bf16.msra.mxu0 %v677
    %720 = vmatpush.bf16.msra.mxu0 %v575
    %721 = vmatpush.bf16.msra.mxu0 %v567
    %722 = vmatmul.bf16.gmra.mxu0 %v673
    %v723 = vpop.f32.mrf.mxu0
    %v724 = vadd.f32 %v710, %v723
    %v725 = vpop.f32.mrf.mxu0
    %v726 = vadd.f32 %v712, %v725
    %727 = vdwg.mxu0
    %728 = vmatpush.bf16.msra.mxu0 %v560
    %729 = vmatpush.bf16.msra.mxu0 %v552
    %730 = vmatpush.bf16.msra.mxu0 %v544
    %731 = vmatpush.bf16.msra.mxu0 %v536
    %732 = vmatpush.bf16.msra.mxu0 %v528
    %733 = vmatpush.bf16.msra.mxu0 %v520
    %734 = vmatpush.bf16.msra.mxu0 %v512
    %735 = vmatpush.bf16.msra.mxu0 %v504
    %736 = vmatmul.bf16.gmra.mxu0 %v147
    %v737 = vpop.f32.mrf.mxu0
    %v738 = vadd.f32 %v236, %v737
    %v739 = vpop.f32.mrf.mxu0
    %v740 = vadd.f32 %v236, %v739
    %741 = vdwg.mxu0
    %742 = vmatpush.bf16.msra.mxu0 0
    %743 = vmatpush.bf16.msra.mxu0 0
    %744 = vmatpush.bf16.msra.mxu0 0
    %745 = vmatpush.bf16.msra.mxu0 0
    %746 = vmatpush.bf16.msra.mxu0 0
    %747 = vmatpush.bf16.msra.mxu0 %v680
    %748 = vmatpush.bf16.msra.mxu0 %v576
    %749 = vmatpush.bf16.msra.mxu0 %v568
    %750 = vmatmul.bf16.gmra.mxu0 %v673
    %v751 = vpop.f32.mrf.mxu0
    %v752 = vadd.f32 %v738, %v751
    %v753 = vpop.f32.mrf.mxu0
    %v754 = vadd.f32 %v740, %v753
    %755 = vdwg.mxu0
    %756 = vmatpush.bf16.msra.mxu0 %v561
    %757 = vmatpush.bf16.msra.mxu0 %v553
    %758 = vmatpush.bf16.msra.mxu0 %v545
    %759 = vmatpush.bf16.msra.mxu0 %v537
    %760 = vmatpush.bf16.msra.mxu0 %v529
    %761 = vmatpush.bf16.msra.mxu0 %v521
    %762 = vmatpush.bf16.msra.mxu0 %v513
    %763 = vmatpush.bf16.msra.mxu0 %v505
    %764 = vmatmul.bf16.gmra.mxu0 %v147
    %v765 = vpop.f32.mrf.mxu0
    %v766 = vadd.f32 %v237, %v765
    %v767 = vpop.f32.mrf.mxu0
    %v768 = vadd.f32 %v237, %v767
    %769 = vdwg.mxu0
    %770 = vmatpush.bf16.msra.mxu0 0
    %771 = vmatpush.bf16.msra.mxu0 0
    %772 = vmatpush.bf16.msra.mxu0 0
    %773 = vmatpush.bf16.msra.mxu0 0
    %774 = vmatpush.bf16.msra.mxu0 0
    %775 = vmatpush.bf16.msra.mxu0 %v683
    %776 = vmatpush.bf16.msra.mxu0 %v577
    %777 = vmatpush.bf16.msra.mxu0 %v569
    %778 = vmatmul.bf16.gmra.mxu0 %v673
    %v779 = vpop.f32.mrf.mxu0
    %v780 = vadd.f32 %v766, %v779
    %v781 = vpop.f32.mrf.mxu0
    %v782 = vadd.f32 %v768, %v781
    %783 = vdwg.mxu0
    %784 = vmatpush.bf16.msra.mxu0 %v562
    %785 = vmatpush.bf16.msra.mxu0 %v554
    %786 = vmatpush.bf16.msra.mxu0 %v546
    %787 = vmatpush.bf16.msra.mxu0 %v538
    %788 = vmatpush.bf16.msra.mxu0 %v530
    %789 = vmatpush.bf16.msra.mxu0 %v522
    %790 = vmatpush.bf16.msra.mxu0 %v514
    %791 = vmatpush.bf16.msra.mxu0 %v506
    %792 = vmatmul.bf16.gmra.mxu0 %v147
    %v793 = vpop.f32.mrf.mxu0
    %v794 = vadd.f32 %v238, %v793
    %v795 = vpop.f32.mrf.mxu0
    %v796 = vadd.f32 %v238, %v795
    %797 = vdwg.mxu0
    %798 = vmatpush.bf16.msra.mxu0 0
    %799 = vmatpush.bf16.msra.mxu0 0
    %800 = vmatpush.bf16.msra.mxu0 0
    %801 = vmatpush.bf16.msra.mxu0 0
    %802 = vmatpush.bf16.msra.mxu0 0
    %803 = vmatpush.bf16.msra.mxu0 %v686
    %804 = vmatpush.bf16.msra.mxu0 %v578
    %805 = vmatpush.bf16.msra.mxu0 %v570
    %806 = vmatmul.bf16.gmra.mxu0 %v673
    %v807 = vpop.f32.mrf.mxu0
    %v808 = vadd.f32 %v794, %v807
    %v809 = vpop.f32.mrf.mxu0
    %v810 = vadd.f32 %v796, %v809
    %811 = vdwg.mxu0
    %812 = vmatpush.bf16.msra.mxu0 %v563
    %813 = vmatpush.bf16.msra.mxu0 %v555
    %814 = vmatpush.bf16.msra.mxu0 %v547
    %815 = vmatpush.bf16.msra.mxu0 %v539
    %816 = vmatpush.bf16.msra.mxu0 %v531
    %817 = vmatpush.bf16.msra.mxu0 %v523
    %818 = vmatpush.bf16.msra.mxu0 %v515
    %819 = vmatpush.bf16.msra.mxu0 %v507
    %820 = vmatmul.bf16.gmra.mxu0 %v147
    %v821 = vpop.f32.mrf.mxu0
    %v822 = vadd.f32 %v239, %v821
    %v823 = vpop.f32.mrf.mxu0
    %v824 = vadd.f32 %v239, %v823
    %825 = vdwg.mxu0
    %826 = vmatpush.bf16.msra.mxu0 0
    %827 = vmatpush.bf16.msra.mxu0 0
    %828 = vmatpush.bf16.msra.mxu0 0
    %829 = vmatpush.bf16.msra.mxu0 0
    %830 = vmatpush.bf16.msra.mxu0 0
    %831 = vmatpush.bf16.msra.mxu0 %v689
    %832 = vmatpush.bf16.msra.mxu0 %v579
    %833 = vmatpush.bf16.msra.mxu0 %v571
    %834 = vmatmul.bf16.gmra.mxu0 %v673
    %v835 = vpop.f32.mrf.mxu0
    %v836 = vadd.f32 %v822, %v835
    %v837 = vpop.f32.mrf.mxu0
    %v838 = vadd.f32 %v824, %v837
    %839 = vdwg.mxu0
    %840 = vmatpush.bf16.msra.mxu0 %v564
    %841 = vmatpush.bf16.msra.mxu0 %v556
    %842 = vmatpush.bf16.msra.mxu0 %v548
    %843 = vmatpush.bf16.msra.mxu0 %v540
    %844 = vmatpush.bf16.msra.mxu0 %v532
    %845 = vmatpush.bf16.msra.mxu0 %v524
    %846 = vmatpush.bf16.msra.mxu0 %v516
    %847 = vmatpush.bf16.msra.mxu0 %v508
    %848 = vmatmul.bf16.gmra.mxu0 %v147
    %v849 = vpop.f32.mrf.mxu0
    %v850 = vadd.f32 %v240, %v849
    %v851 = vpop.f32.mrf.mxu0
    %v852 = vadd.f32 %v240, %v851
    %853 = vdwg.mxu0
    %854 = vmatpush.bf16.msra.mxu0 0
    %855 = vmatpush.bf16.msra.mxu0 0
    %856 = vmatpush.bf16.msra.mxu0 0
    %857 = vmatpush.bf16.msra.mxu0 0
    %858 = vmatpush.bf16.msra.mxu0 0
    %859 = vmatpush.bf16.msra.mxu0 %v692
    %860 = vmatpush.bf16.msra.mxu0 %v580
    %861 = vmatpush.bf16.msra.mxu0 %v572
    %862 = vmatmul.bf16.gmra.mxu0 %v673
    %v863 = vpop.f32.mrf.mxu0
    %v864 = vadd.f32 %v850, %v863
    %v865 = vpop.f32.mrf.mxu0
    %v866 = vadd.f32 %v852, %v865
    %867 = vdwg.mxu0
    %868 = vmatpush.bf16.msra.mxu0 %v565
    %869 = vmatpush.bf16.msra.mxu0 %v557
    %870 = vmatpush.bf16.msra.mxu0 %v549
    %871 = vmatpush.bf16.msra.mxu0 %v541
    %872 = vmatpush.bf16.msra.mxu0 %v533
    %873 = vmatpush.bf16.msra.mxu0 %v525
    %874 = vmatpush.bf16.msra.mxu0 %v517
    %875 = vmatpush.bf16.msra.mxu0 %v509
    %876 = vmatmul.bf16.gmra.mxu0 %v147
    %v877 = vpop.f32.mrf.mxu0
    %v878 = vadd.f32 %v241, %v877
    %v879 = vpop.f32.mrf.mxu0
    %v880 = vadd.f32 %v241, %v879
    %881 = vdwg.mxu0
    %882 = vmatpush.bf16.msra.mxu0 0
    %883 = vmatpush.bf16.msra.mxu0 0
    %884 = vmatpush.bf16.msra.mxu0 0
    %885 = vmatpush.bf16.msra.mxu0 0
    %886 = vmatpush.bf16.msra.mxu0 0
    %887 = vmatpush.bf16.msra.mxu0 %v695
    %888 = vmatpush.bf16.msra.mxu0 %v581
    %889 = vmatpush.bf16.msra.mxu0 %v573
    %890 = vmatmul.bf16.gmra.mxu0 %v673
    %v891 = vpop.f32.mrf.mxu0
    %v892 = vadd.f32 %v878, %v891
    %v893 = vpop.f32.mrf.mxu0
    %v894 = vadd.f32 %v880, %v893
    %895 = vdwg.mxu0
    %896 = vmatpush.bf16.msra.mxu0 %v566
    %897 = vmatpush.bf16.msra.mxu0 %v558
    %898 = vmatpush.bf16.msra.mxu0 %v550
    %899 = vmatpush.bf16.msra.mxu0 %v542
    %900 = vmatpush.bf16.msra.mxu0 %v534
    %901 = vmatpush.bf16.msra.mxu0 %v526
    %902 = vmatpush.bf16.msra.mxu0 %v518
    %903 = vmatpush.bf16.msra.mxu0 %v510
    %904 = vmatmul.bf16.gmra.mxu0 %v147
    %v905 = vpop.f32.mrf.mxu0
    %v906 = vadd.f32 %v242, %v905
    %v907 = vpop.f32.mrf.mxu0
    %v908 = vadd.f32 %v242, %v907
    %909 = vdwg.mxu0
    %910 = vmatpush.bf16.msra.mxu0 0
    %911 = vmatpush.bf16.msra.mxu0 0
    %912 = vmatpush.bf16.msra.mxu0 0
    %913 = vmatpush.bf16.msra.mxu0 0
    %914 = vmatpush.bf16.msra.mxu0 0
    %915 = vmatpush.bf16.msra.mxu0 %v698
    %916 = vmatpush.bf16.msra.mxu0 %v582
    %917 = vmatpush.bf16.msra.mxu0 %v574
    %918 = vmatmul.bf16.gmra.mxu0 %v673
    %v919 = vpop.f32.mrf.mxu0
    %v920 = vadd.f32 %v906, %v919
    %v921 = vpop.f32.mrf.mxu0
    %v922 = vadd.f32 %v908, %v921
    %923 = vdwg.mxu0
    %v924 = vmax.f32 %v724, 0.0
    %v925 = vmax.f32 %v752, 0.0
    %v926 = vmax.f32 %v780, 0.0
    %v927 = vmax.f32 %v808, 0.0
    %v928 = vmax.f32 %v836, 0.0
    %v929 = vmax.f32 %v864, 0.0
    %v930 = vmax.f32 %v892, 0.0
    %v931 = vmax.f32 %v920, 0.0
    %v932 = vmax.f32 %v726, 0.0
    %v933 = vmax.f32 %v754, 0.0
    %v934 = vmax.f32 %v782, 0.0
    %v935 = vmax.f32 %v810, 0.0
    %v936 = vmax.f32 %v838, 0.0
    %v937 = vmax.f32 %v866, 0.0
    %v938 = vmax.f32 %v894, 0.0
    %v939 = vmax.f32 %v922, 0.0
    %v940 = vpack.c.bf16 %v932, %v924
    %v941 = vpack.c.bf16 %v933, %v925
    %v942 = vpack.c.bf16 %v934, %v926
    %v943 = vpack.c.bf16 %v935, %v927
    %v944 = vpack.c.bf16 %v936, %v928
    %v945 = vpack.c.bf16 %v937, %v929
    %v946 = vpack.c.bf16 %v938, %v930
    %v947 = vpack.c.bf16 %v939, %v931
    %v948 = vld [vmem:[%s3] sm:$0xf]
    %v949 = vld [vmem:[%s3 + $0x4] sm:$0xf]
    %v950 = vld [vmem:[%s3 + $0x8] sm:$0xf]
    %v951 = vld [vmem:[%s3 + $0xc] sm:$0xf]
    %v952 = vld [vmem:[%s3 + $0x10] sm:$0xf]
    %v953 = vld [vmem:[%s3 + $0x14] sm:$0xf]
    %v954 = vld [vmem:[%s3 + $0x18] sm:$0xf]
    %v955 = vld [vmem:[%s3 + $0x1c] sm:$0xf]
    %v956 = vld [vmem:[%s3 + $0x20] sm:$0xf]
    %v957 = vld [vmem:[%s3 + $0x24] sm:$0xf]
    %v958 = vld [vmem:[%s3 + $0x28] sm:$0xf]
    %v959 = vld [vmem:[%s3 + $0x2c] sm:$0xf]
    %v960 = vld [vmem:[%s3 + $0x30] sm:$0xf]
    %v961 = vld [vmem:[%s3 + $0x34] sm:$0xf]
    %v962 = vld [vmem:[%s3 + $0x38] sm:$0xf]
    %v963 = vld [vmem:[%s3 + $0x3c] sm:$0xf]
    %v964 = vld [vmem:[%s3 + $0x40] sm:$0xf]
    %v965 = vld [vmem:[%s3 + $0x44] sm:$0xf]
    %v966 = vld [vmem:[%s3 + $0x48] sm:$0xf]
    %v967 = vld [vmem:[%s3 + $0x4c] sm:$0xf]
    %v968 = vld [vmem:[%s3 + $0x50] sm:$0xf]
    %v969 = vld [vmem:[%s3 + $0x54] sm:$0xf]
    %v970 = vld [vmem:[%s3 + $0x58] sm:$0xf]
    %v971 = vld [vmem:[%s3 + $0x5c] sm:$0xf]
    %v972 = vld [vmem:[%s3 + $0x60] sm:$0xf]
    %v973 = vld [vmem:[%s3 + $0x64] sm:$0xf]
    %v974 = vld [vmem:[%s3 + $0x68] sm:$0xf]
    %v975 = vld [vmem:[%s3 + $0x6c] sm:$0xf]
    %v976 = vld [vmem:[%s3 + $0x70] sm:$0xf]
    %v977 = vld [vmem:[%s3 + $0x74] sm:$0xf]
    %v978 = vld [vmem:[%s3 + $0x78] sm:$0xf]
    %v979 = vld [vmem:[%s3 + $0x7c] sm:$0xf]
    %v980 = vld [vmem:[%s3 + $0x80] sm:$0xf]
    %v981 = vld [vmem:[%s3 + $0x84] sm:$0xf]
    %v982 = vld [vmem:[%s3 + $0x88] sm:$0xf]
    %v983 = vld [vmem:[%s3 + $0x8c] sm:$0xf]
    %v984 = vld [vmem:[%s3 + $0x90] sm:$0xf]
    %v985 = vld [vmem:[%s3 + $0x94] sm:$0xf]
    %v986 = vld [vmem:[%s3 + $0x98] sm:$0xf]
    %v987 = vld [vmem:[%s3 + $0x9c] sm:$0xf]
    %v988 = vld [vmem:[%s3 + $0xa0] sm:$0xf]
    %v989 = vld [vmem:[%s3 + $0xa4] sm:$0xf]
    %v990 = vld [vmem:[%s3 + $0xa8] sm:$0xf]
    %v991 = vld [vmem:[%s3 + $0xac] sm:$0xf]
    %v992 = vld [vmem:[%s3 + $0xb0] sm:$0xf]
    %v993 = vld [vmem:[%s3 + $0xb4] sm:$0xf]
    %v994 = vld [vmem:[%s3 + $0xb8] sm:$0xf]
    %v995 = vld [vmem:[%s3 + $0xbc] sm:$0xf]
    %v996 = vld [vmem:[%s3 + $0xc0] sm:$0xf]
    %v997 = vld [vmem:[%s3 + $0xc4] sm:$0xf]
    %v998 = vld [vmem:[%s3 + $0xc8] sm:$0xf]
    %v999 = vld [vmem:[%s3 + $0xcc] sm:$0xf]
    %v1000 = vld [vmem:[%s3 + $0xd0] sm:$0xf]
    %v1001 = vld [vmem:[%s3 + $0xd4] sm:$0xf]
    %v1002 = vld [vmem:[%s3 + $0xd8] sm:$0xf]
    %v1003 = vld [vmem:[%s3 + $0xdc] sm:$0xf]
    %v1004 = vld [vmem:[%s3 + $0xe0] sm:$0xf]
    %v1005 = vld [vmem:[%s3 + $0xe4] sm:$0xf]
    %v1006 = vld [vmem:[%s3 + $0xe8] sm:$0xf]
    %v1007 = vld [vmem:[%s3 + $0xec] sm:$0xf]
    %v1008 = vld [vmem:[%s3 + $0xf0] sm:$0xf]
    %v1009 = vld [vmem:[%s3 + $0xf4] sm:$0xf]
    %v1010 = vld [vmem:[%s3 + $0xf8] sm:$0xf]
    %v1011 = vld [vmem:[%s3 + $0xfc] sm:$0xf]
    %v1012 = vld [vmem:[%s3 + $0x100] sm:$0xf]
    %v1013 = vld [vmem:[%s3 + $0x104] sm:$0xf]
    %v1014 = vld [vmem:[%s3 + $0x108] sm:$0xf]
    %v1015 = vld [vmem:[%s3 + $0x10c] sm:$0xf]
    %v1016 = vld [vmem:[%s3 + $0x110] sm:$0xf]
    %v1017 = vld [vmem:[%s3 + $0x114] sm:$0xf]
    %v1018 = vld [vmem:[%s3 + $0x118] sm:$0xf]
    %v1019 = vld [vmem:[%s3 + $0x11c] sm:$0xf]
    %v1020 = vld [vmem:[%s3 + $0x120] sm:$0xf]
    %v1021 = vld [vmem:[%s3 + $0x124] sm:$0xf]
    %v1022 = vld [vmem:[%s3 + $0x128] sm:$0xf]
    %v1023 = vld [vmem:[%s3 + $0x12c] sm:$0xf]
    %v1024 = vld [vmem:[%s3 + $0x130] sm:$0xf]
    %v1025 = vld [vmem:[%s3 + $0x134] sm:$0xf]
    %v1026 = vld [vmem:[%s3 + $0x138] sm:$0xf]
    %v1027 = vld [vmem:[%s3 + $0x13c] sm:$0xf]
    %v1028 = vld [vmem:[%s3 + $0x140] sm:$0xf]
    %v1029 = vld [vmem:[%s3 + $0x144] sm:$0xf]
    %v1030 = vld [vmem:[%s3 + $0x148] sm:$0xf]
    %v1031 = vld [vmem:[%s3 + $0x14c] sm:$0xf]
    %v1032 = vld [vmem:[%s3 + $0x150] sm:$0xf]
    %v1033 = vld [vmem:[%s3 + $0x154] sm:$0xf]
    %v1034 = vld [vmem:[%s3 + $0x158] sm:$0xf]
    %v1035 = vld [vmem:[%s3 + $0x15c] sm:$0xf]
    %v1036 = vld [vmem:[%s3 + $0x160] sm:$0xf]
    %v1037 = vld [vmem:[%s3 + $0x164] sm:$0xf]
    %v1038 = vld [vmem:[%s3 + $0x168] sm:$0xf]
    %v1039 = vld [vmem:[%s3 + $0x16c] sm:$0xf]
    %v1040 = vld [vmem:[%s3 + $0x170] sm:$0xf]
    %v1041 = vld [vmem:[%s3 + $0x174] sm:$0xf]
    %v1042 = vld [vmem:[%s3 + $0x178] sm:$0xf]
    %v1043 = vld [vmem:[%s3 + $0x17c] sm:$0xf]
    %v1044 = vld [vmem:[%s3 + $0x180] sm:$0xf]
    %v1045 = vld [vmem:[%s3 + $0x184] sm:$0xf]
    %v1046 = vld [vmem:[%s3 + $0x188] sm:$0xf]
    %v1047 = vld [vmem:[%s3 + $0x18c] sm:$0xf]
    %v1048 = vld [vmem:[%s3 + $0x190] sm:$0xf]
    %v1049 = vld [vmem:[%s3 + $0x194] sm:$0xf]
    %v1050 = vld [vmem:[%s3 + $0x198] sm:$0xf]
    %v1051 = vld [vmem:[%s3 + $0x19c] sm:$0xf]
    %v1052 = vld [vmem:[%s3 + $0x1a0] sm:$0xf]
    %v1053 = vld [vmem:[%s3 + $0x1a4] sm:$0xf]
    %v1054 = vld [vmem:[%s3 + $0x1a8] sm:$0xf]
    %v1055 = vld [vmem:[%s3 + $0x1ac] sm:$0xf]
    %v1056 = vld [vmem:[%s3 + $0x1b0] sm:$0xf]
    %v1057 = vld [vmem:[%s3 + $0x1b4] sm:$0xf]
    %v1058 = vld [vmem:[%s3 + $0x1b8] sm:$0xf]
    %v1059 = vld [vmem:[%s3 + $0x1bc] sm:$0xf]
    %v1060 = vld [vmem:[%s3 + $0x1c0] sm:$0xf]
    %v1061 = vld [vmem:[%s3 + $0x1c4] sm:$0xf]
    %v1062 = vld [vmem:[%s3 + $0x1c8] sm:$0xf]
    %v1063 = vld [vmem:[%s3 + $0x1cc] sm:$0xf]
    %v1064 = vld [vmem:[%s3 + $0x1d0] sm:$0xf]
    %v1065 = vld [vmem:[%s3 + $0x1d4] sm:$0xf]
    %v1066 = vld [vmem:[%s3 + $0x1d8] sm:$0xf]
    %v1067 = vld [vmem:[%s3 + $0x1dc] sm:$0xf]
    %v1068 = vld [vmem:[%s3 + $0x1e0] sm:$0xf]
    %v1069 = vld [vmem:[%s3 + $0x1e4] sm:$0xf]
    %v1070 = vld [vmem:[%s3 + $0x1e8] sm:$0xf]
    %v1071 = vld [vmem:[%s3 + $0x1ec] sm:$0xf]
    %v1072 = vld [vmem:[%s3 + $0x1f0] sm:$0xf]
    %v1073 = vld [vmem:[%s3 + $0x1f4] sm:$0xf]
    %v1074 = vld [vmem:[%s3 + $0x1f8] sm:$0xf]
    %v1075 = vld [vmem:[%s3 + $0x1fc] sm:$0xf]
    %v1204 = vunpack.c.l.b16 %v948
    %v1205 = vunpack.c.l.b16 %v949
    %v1206 = vunpack.c.l.b16 %v950
    %v1207 = vunpack.c.l.b16 %v951
    %v1208 = vunpack.c.l.b16 %v952
    %v1209 = vunpack.c.l.b16 %v953
    %v1210 = vunpack.c.l.b16 %v954
    %v1211 = vunpack.c.l.b16 %v955
    %v1212 = vunpack.c.l.b16 %v956
    %v1213 = vunpack.c.l.b16 %v957
    %v1214 = vunpack.c.l.b16 %v958
    %v1215 = vunpack.c.l.b16 %v959
    %v1216 = vunpack.c.l.b16 %v960
    %v1217 = vunpack.c.l.b16 %v961
    %v1218 = vunpack.c.l.b16 %v962
    %v1219 = vunpack.c.l.b16 %v963
    %v1220 = vunpack.c.l.b16 %v964
    %v1221 = vunpack.c.l.b16 %v965
    %v1222 = vunpack.c.l.b16 %v966
    %v1223 = vunpack.c.l.b16 %v967
    %v1224 = vunpack.c.l.b16 %v968
    %v1225 = vunpack.c.l.b16 %v969
    %v1226 = vunpack.c.l.b16 %v970
    %v1227 = vunpack.c.l.b16 %v971
    %v1228 = vunpack.c.l.b16 %v972
    %v1229 = vunpack.c.l.b16 %v973
    %v1230 = vunpack.c.l.b16 %v974
    %v1231 = vunpack.c.l.b16 %v975
    %v1232 = vunpack.c.l.b16 %v976
    %v1233 = vunpack.c.l.b16 %v977
    %v1234 = vunpack.c.l.b16 %v978
    %v1235 = vunpack.c.l.b16 %v979
    %v1236 = vunpack.c.l.b16 %v980
    %v1237 = vunpack.c.l.b16 %v981
    %v1238 = vunpack.c.l.b16 %v982
    %v1239 = vunpack.c.l.b16 %v983
    %v1240 = vunpack.c.l.b16 %v984
    %v1241 = vunpack.c.l.b16 %v985
    %v1242 = vunpack.c.l.b16 %v986
    %v1243 = vunpack.c.l.b16 %v987
    %v1244 = vunpack.c.l.b16 %v988
    %v1245 = vunpack.c.l.b16 %v989
    %v1246 = vunpack.c.l.b16 %v990
    %v1247 = vunpack.c.l.b16 %v991
    %v1248 = vunpack.c.l.b16 %v992
    %v1249 = vunpack.c.l.b16 %v993
    %v1250 = vunpack.c.l.b16 %v994
    %v1251 = vunpack.c.l.b16 %v995
    %v1252 = vunpack.c.l.b16 %v996
    %v1253 = vunpack.c.l.b16 %v997
    %v1254 = vunpack.c.l.b16 %v998
    %v1255 = vunpack.c.l.b16 %v999
    %v1256 = vunpack.c.l.b16 %v1000
    %v1257 = vunpack.c.l.b16 %v1001
    %v1258 = vunpack.c.l.b16 %v1002
    %v1259 = vunpack.c.l.b16 %v1003
    %v1260 = vunpack.c.l.b16 %v1004
    %v1261 = vunpack.c.l.b16 %v1005
    %v1262 = vunpack.c.l.b16 %v1006
    %v1263 = vunpack.c.l.b16 %v1007
    %v1264 = vunpack.c.l.b16 %v1008
    %v1265 = vunpack.c.l.b16 %v1009
    %v1266 = vunpack.c.l.b16 %v1010
    %v1267 = vunpack.c.l.b16 %v1011
    %v1268 = vunpack.c.l.b16 %v1012
    %v1269 = vunpack.c.l.b16 %v1013
    %v1270 = vunpack.c.l.b16 %v1014
    %v1271 = vunpack.c.l.b16 %v1015
    %v1272 = vunpack.c.l.b16 %v1016
    %v1273 = vunpack.c.l.b16 %v1017
    %v1274 = vunpack.c.l.b16 %v1018
    %v1275 = vunpack.c.l.b16 %v1019
    %v1276 = vunpack.c.l.b16 %v1020
    %v1277 = vunpack.c.l.b16 %v1021
    %v1278 = vunpack.c.l.b16 %v1022
    %v1279 = vunpack.c.l.b16 %v1023
    %v1280 = vunpack.c.l.b16 %v1024
    %v1281 = vunpack.c.l.b16 %v1025
    %v1282 = vunpack.c.l.b16 %v1026
    %v1283 = vunpack.c.l.b16 %v1027
    %v1284 = vunpack.c.l.b16 %v1028
    %v1285 = vunpack.c.l.b16 %v1029
    %v1286 = vunpack.c.l.b16 %v1030
    %v1287 = vunpack.c.l.b16 %v1031
    %v1288 = vunpack.c.l.b16 %v1032
    %v1289 = vunpack.c.l.b16 %v1033
    %v1290 = vunpack.c.l.b16 %v1034
    %v1291 = vunpack.c.l.b16 %v1035
    %v1292 = vunpack.c.l.b16 %v1036
    %v1293 = vunpack.c.l.b16 %v1037
    %v1294 = vunpack.c.l.b16 %v1038
    %v1295 = vunpack.c.l.b16 %v1039
    %v1296 = vunpack.c.l.b16 %v1040
    %v1297 = vunpack.c.l.b16 %v1041
    %v1298 = vunpack.c.l.b16 %v1042
    %v1299 = vunpack.c.l.b16 %v1043
    %v1300 = vunpack.c.l.b16 %v1044
    %v1301 = vunpack.c.l.b16 %v1045
    %v1302 = vunpack.c.l.b16 %v1046
    %v1303 = vunpack.c.l.b16 %v1047
    %v1304 = vunpack.c.l.b16 %v1048
    %v1305 = vunpack.c.l.b16 %v1049
    %v1306 = vunpack.c.l.b16 %v1050
    %v1307 = vunpack.c.l.b16 %v1051
    %v1308 = vunpack.c.l.b16 %v1052
    %v1309 = vunpack.c.l.b16 %v1053
    %v1310 = vunpack.c.l.b16 %v1054
    %v1311 = vunpack.c.l.b16 %v1055
    %v1312 = vunpack.c.l.b16 %v1056
    %v1313 = vunpack.c.l.b16 %v1057
    %v1314 = vunpack.c.l.b16 %v1058
    %v1315 = vunpack.c.l.b16 %v1059
    %v1316 = vunpack.c.l.b16 %v1060
    %v1317 = vunpack.c.l.b16 %v1061
    %v1318 = vunpack.c.l.b16 %v1062
    %v1319 = vunpack.c.l.b16 %v1063
    %v1320 = vunpack.c.l.b16 %v1064
    %v1321 = vunpack.c.l.b16 %v1065
    %v1322 = vunpack.c.l.b16 %v1066
    %v1323 = vunpack.c.l.b16 %v1067
    %v1324 = vunpack.c.l.b16 %v1068
    %v1325 = vunpack.c.l.b16 %v1069
    %v1326 = vunpack.c.l.b16 %v1070
    %v1327 = vunpack.c.l.b16 %v1071
    %v1328 = vunpack.c.l.b16 %v1072
    %v1329 = vunpack.c.l.b16 %v1073
    %v1330 = vunpack.c.l.b16 %v1074
    %v1331 = vunpack.c.l.b16 %v1075
    %v1332 = vpack.c.b16 %v1205, %v1204
    %v1333 = vpack.c.b16 %v1207, %v1206
    %v1334 = vpack.c.b16 %v1209, %v1208
    %v1335 = vpack.c.b16 %v1211, %v1210
    %v1336 = vpack.c.b16 %v1213, %v1212
    %v1337 = vpack.c.b16 %v1215, %v1214
    %v1338 = vpack.c.b16 %v1217, %v1216
    %v1339 = vpack.c.b16 %v1219, %v1218
    %v1340 = vpack.c.b16 %v1221, %v1220
    %v1341 = vpack.c.b16 %v1223, %v1222
    %v1342 = vpack.c.b16 %v1225, %v1224
    %v1343 = vpack.c.b16 %v1227, %v1226
    %v1344 = vpack.c.b16 %v1229, %v1228
    %v1345 = vpack.c.b16 %v1231, %v1230
    %v1346 = vpack.c.b16 %v1233, %v1232
    %v1347 = vpack.c.b16 %v1235, %v1234
    %v1348 = vpack.c.b16 %v1237, %v1236
    %v1349 = vpack.c.b16 %v1239, %v1238
    %v1350 = vpack.c.b16 %v1241, %v1240
    %v1351 = vpack.c.b16 %v1243, %v1242
    %v1352 = vpack.c.b16 %v1245, %v1244
    %v1353 = vpack.c.b16 %v1247, %v1246
    %v1354 = vpack.c.b16 %v1249, %v1248
    %v1355 = vpack.c.b16 %v1251, %v1250
    %v1356 = vpack.c.b16 %v1253, %v1252
    %v1357 = vpack.c.b16 %v1255, %v1254
    %v1358 = vpack.c.b16 %v1257, %v1256
    %v1359 = vpack.c.b16 %v1259, %v1258
    %v1360 = vpack.c.b16 %v1261, %v1260
    %v1361 = vpack.c.b16 %v1263, %v1262
    %v1362 = vpack.c.b16 %v1265, %v1264
    %v1363 = vpack.c.b16 %v1267, %v1266
    %v1364 = vpack.c.b16 %v1269, %v1268
    %v1365 = vpack.c.b16 %v1271, %v1270
    %v1366 = vpack.c.b16 %v1273, %v1272
    %v1367 = vpack.c.b16 %v1275, %v1274
    %v1368 = vpack.c.b16 %v1277, %v1276
    %v1369 = vpack.c.b16 %v1279, %v1278
    %v1370 = vpack.c.b16 %v1281, %v1280
    %v1371 = vpack.c.b16 %v1283, %v1282
    %v1372 = vpack.c.b16 %v1285, %v1284
    %v1373 = vpack.c.b16 %v1287, %v1286
    %v1374 = vpack.c.b16 %v1289, %v1288
    %v1375 = vpack.c.b16 %v1291, %v1290
    %v1376 = vpack.c.b16 %v1293, %v1292
    %v1377 = vpack.c.b16 %v1295, %v1294
    %v1378 = vpack.c.b16 %v1297, %v1296
    %v1379 = vpack.c.b16 %v1299, %v1298
    %v1380 = vpack.c.b16 %v1301, %v1300
    %v1381 = vpack.c.b16 %v1303, %v1302
    %v1382 = vpack.c.b16 %v1305, %v1304
    %v1383 = vpack.c.b16 %v1307, %v1306
    %v1384 = vpack.c.b16 %v1309, %v1308
    %v1385 = vpack.c.b16 %v1311, %v1310
    %v1386 = vpack.c.b16 %v1313, %v1312
    %v1387 = vpack.c.b16 %v1315, %v1314
    %v1388 = vpack.c.b16 %v1317, %v1316
    %v1389 = vpack.c.b16 %v1319, %v1318
    %v1390 = vpack.c.b16 %v1321, %v1320
    %v1391 = vpack.c.b16 %v1323, %v1322
    %v1392 = vpack.c.b16 %v1325, %v1324
    %v1393 = vpack.c.b16 %v1327, %v1326
    %v1394 = vpack.c.b16 %v1329, %v1328
    %v1395 = vpack.c.b16 %v1331, %v1330
    %1460 = vmatpush.bf16.msra.mxu0 %v1339
    %1461 = vmatpush.bf16.msra.mxu0 %v1338
    %1462 = vmatpush.bf16.msra.mxu0 %v1337
    %1463 = vmatpush.bf16.msra.mxu0 %v1336
    %1464 = vmatpush.bf16.msra.mxu0 %v1335
    %1465 = vmatpush.bf16.msra.mxu0 %v1334
    %1466 = vmatpush.bf16.msra.mxu0 %v1333
    %1467 = vmatpush.bf16.msra.mxu0 %v1332
    %1468 = vmatmul.bf16.gmra.mxu0 %v940
    %v1469 = vpop.f32.mrf.mxu0
    %v1470 = vadd.f32 0.0, %v1469
    %v1471 = vpop.f32.mrf.mxu0
    %v1472 = vadd.f32 0.0, %v1471
    %1473 = vdwg.mxu0
    %1474 = vmatpush.bf16.msra.mxu0 %v1347
    %1475 = vmatpush.bf16.msra.mxu0 %v1346
    %1476 = vmatpush.bf16.msra.mxu0 %v1345
    %1477 = vmatpush.bf16.msra.mxu0 %v1344
    %1478 = vmatpush.bf16.msra.mxu0 %v1343
    %1479 = vmatpush.bf16.msra.mxu0 %v1342
    %1480 = vmatpush.bf16.msra.mxu0 %v1341
    %1481 = vmatpush.bf16.msra.mxu0 %v1340
    %1482 = vmatmul.bf16.gmra.mxu0 %v941
    %v1483 = vpop.f32.mrf.mxu0
    %v1484 = vadd.f32 %v1470, %v1483
    %v1485 = vpop.f32.mrf.mxu0
    %v1486 = vadd.f32 %v1472, %v1485
    %1487 = vdwg.mxu0
    %1488 = vmatpush.bf16.msra.mxu0 %v1355
    %1489 = vmatpush.bf16.msra.mxu0 %v1354
    %1490 = vmatpush.bf16.msra.mxu0 %v1353
    %1491 = vmatpush.bf16.msra.mxu0 %v1352
    %1492 = vmatpush.bf16.msra.mxu0 %v1351
    %1493 = vmatpush.bf16.msra.mxu0 %v1350
    %1494 = vmatpush.bf16.msra.mxu0 %v1349
    %1495 = vmatpush.bf16.msra.mxu0 %v1348
    %1496 = vmatmul.bf16.gmra.mxu0 %v942
    %v1497 = vpop.f32.mrf.mxu0
    %v1498 = vadd.f32 %v1484, %v1497
    %v1499 = vpop.f32.mrf.mxu0
    %v1500 = vadd.f32 %v1486, %v1499
    %1501 = vdwg.mxu0
    %1502 = vmatpush.bf16.msra.mxu0 %v1363
    %1503 = vmatpush.bf16.msra.mxu0 %v1362
    %1504 = vmatpush.bf16.msra.mxu0 %v1361
    %1505 = vmatpush.bf16.msra.mxu0 %v1360
    %1506 = vmatpush.bf16.msra.mxu0 %v1359
    %1507 = vmatpush.bf16.msra.mxu0 %v1358
    %1508 = vmatpush.bf16.msra.mxu0 %v1357
    %1509 = vmatpush.bf16.msra.mxu0 %v1356
    %1510 = vmatmul.bf16.gmra.mxu0 %v943
    %v1511 = vpop.f32.mrf.mxu0
    %v1512 = vadd.f32 %v1498, %v1511
    %v1513 = vpop.f32.mrf.mxu0
    %v1514 = vadd.f32 %v1500, %v1513
    %1515 = vdwg.mxu0
    %1516 = vmatpush.bf16.msra.mxu0 %v1371
    %1517 = vmatpush.bf16.msra.mxu0 %v1370
    %1518 = vmatpush.bf16.msra.mxu0 %v1369
    %1519 = vmatpush.bf16.msra.mxu0 %v1368
    %1520 = vmatpush.bf16.msra.mxu0 %v1367
    %1521 = vmatpush.bf16.msra.mxu0 %v1366
    %1522 = vmatpush.bf16.msra.mxu0 %v1365
    %1523 = vmatpush.bf16.msra.mxu0 %v1364
    %1524 = vmatmul.bf16.gmra.mxu0 %v944
    %v1525 = vpop.f32.mrf.mxu0
    %v1526 = vadd.f32 %v1512, %v1525
    %v1527 = vpop.f32.mrf.mxu0
    %v1528 = vadd.f32 %v1514, %v1527
    %1529 = vdwg.mxu0
    %1530 = vmatpush.bf16.msra.mxu0 %v1379
    %1531 = vmatpush.bf16.msra.mxu0 %v1378
    %1532 = vmatpush.bf16.msra.mxu0 %v1377
    %1533 = vmatpush.bf16.msra.mxu0 %v1376
    %1534 = vmatpush.bf16.msra.mxu0 %v1375
    %1535 = vmatpush.bf16.msra.mxu0 %v1374
    %1536 = vmatpush.bf16.msra.mxu0 %v1373
    %1537 = vmatpush.bf16.msra.mxu0 %v1372
    %1538 = vmatmul.bf16.gmra.mxu0 %v945
    %v1539 = vpop.f32.mrf.mxu0
    %v1540 = vadd.f32 %v1526, %v1539
    %v1541 = vpop.f32.mrf.mxu0
    %v1542 = vadd.f32 %v1528, %v1541
    %1543 = vdwg.mxu0
    %1544 = vmatpush.bf16.msra.mxu0 %v1387
    %1545 = vmatpush.bf16.msra.mxu0 %v1386
    %1546 = vmatpush.bf16.msra.mxu0 %v1385
    %1547 = vmatpush.bf16.msra.mxu0 %v1384
    %1548 = vmatpush.bf16.msra.mxu0 %v1383
    %1549 = vmatpush.bf16.msra.mxu0 %v1382
    %1550 = vmatpush.bf16.msra.mxu0 %v1381
    %1551 = vmatpush.bf16.msra.mxu0 %v1380
    %1552 = vmatmul.bf16.gmra.mxu0 %v946
    %v1553 = vpop.f32.mrf.mxu0
    %v1554 = vadd.f32 %v1540, %v1553
    %v1555 = vpop.f32.mrf.mxu0
    %v1556 = vadd.f32 %v1542, %v1555
    %1557 = vdwg.mxu0
    %1558 = vmatpush.bf16.msra.mxu0 %v1395
    %1559 = vmatpush.bf16.msra.mxu0 %v1394
    %1560 = vmatpush.bf16.msra.mxu0 %v1393
    %1561 = vmatpush.bf16.msra.mxu0 %v1392
    %1562 = vmatpush.bf16.msra.mxu0 %v1391
    %1563 = vmatpush.bf16.msra.mxu0 %v1390
    %1564 = vmatpush.bf16.msra.mxu0 %v1389
    %1565 = vmatpush.bf16.msra.mxu0 %v1388
    %1566 = vmatmul.bf16.gmra.mxu0 %v947
    %v1567 = vpop.f32.mrf.mxu0
    %v1568 = vadd.f32 %v1554, %v1567
    %v1569 = vpop.f32.mrf.mxu0
    %v1570 = vadd.f32 %v1556, %v1569
    %1571 = vdwg.mxu0
    %v1574 = vrot.slane %v1568, 7
    %v1575 = vrot.slane %v1570, 7
    %v1576 = vsel %vm675, %v1574, %v1575
    %v1579 = vsel %vm675, 0.0, %v1574
    %vm1580 = vcmask 1046528
    %v1581 = vrot.slane %v1568, 1
    %v1582 = vrot.slane %v1570, 1
    %v1583 = vsel %vm1580, %v1581, %v1582
    %v1585 = vsel %vm1580, %v1582, 0.0
    %1586 = vrot.lane.b32.xlu0 %v1568, 96
    %v1587 = vpop.permute.xlu0 %1586
    %1588 = vrot.lane.b32.xlu0 %v1570, 96
    %v1589 = vpop.permute.xlu0 %1588
    %v1592 = vadd.f32 %v1579, %v1587
    %v1593 = vadd.f32 %v1576, %v1589
    %1595 = vrot.lane.b32.xlu0 %v1583, 64
    %v1596 = vpop.permute.xlu0 %1595
    %1597 = vrot.lane.b32.xlu0 %v1585, 64
    %v1598 = vpop.permute.xlu0 %1597
    %v1601 = vadd.f32 %v1592, %v1596
    %v1602 = vadd.f32 %v1593, %v1598
    %v1603 = vld [vmem:[%s4 + $0x80] ss:$0 sm:$0xff]
    %v1604 = vadd.f32 %v1601, %v1603
    %v1605 = vadd.f32 %v1602, %v1603
    %vm1606 = vcmp.ge.f32.partialorder %v1604, 0.0
    %vm1607 = vcmp.ge.f32.partialorder %v1605, 0.0
    %v1608 = vmul.f32 %v1604, 0.2
    %v1609 = vmul.f32 %v1605, 0.2
    %v1610 = vsel %vm1606, %v1604, %v1608
    %v1611 = vsel %vm1607, %v1605, %v1609
    %v1612 = vld [vmem:[%s4] sm:$0xff]
    %v1613 = vld [vmem:[%s4 + $0x8] sm:$0xff]
    %v1614 = vld [vmem:[%s4 + $0x10] sm:$0xff]
    %v1615 = vld [vmem:[%s4 + $0x18] sm:$0xff]
    %v1616 = vld [vmem:[%s4 + $0x20] sm:$0xff]
    %v1617 = vld [vmem:[%s4 + $0x28] sm:$0xff]
    %v1618 = vld [vmem:[%s4 + $0x30] sm:$0xff]
    %v1619 = vld [vmem:[%s4 + $0x38] sm:$0xff]
    %vm1620 = vcmask 261120
    %v1622 = vsel %vm1620, %v1610, 0
    %v1625 = vsel %vm1620, %v1611, 0
    %1627 = vmatpush.msra.mxu0 0.0
    %1628 = vmatpush.msra.mxu0 0.0
    %1629 = vmatpush.msra.mxu0 0.0
    %1630 = vmatpush.msra.mxu0 0.0
    %1631 = vmatpush.msra.mxu0 0.0
    %1632 = vmatpush.msra.mxu0 0.0
    %1633 = vmatpush.msra.mxu0 0.0
    %1634 = vmatpush.msra.mxu0 0.0
    %1635 = vmatpush.msra.mxu0 0.0
    %1636 = vmatpush.msra.mxu0 0.0
    %1637 = vmatpush.msra.mxu0 0.0
    %1638 = vmatpush.msra.mxu0 0.0
    %1639 = vmatpush.msra.mxu0 %v1618
    %1640 = vmatpush.msra.mxu0 %v1616
    %1641 = vmatpush.msra.mxu0 %v1614
    %1642 = vmatpush.msra.mxu0 %v1612
    %1643 = vmatmul.f32.gmra.mxu0 %v1622
    %v1644 = vpop.f32.mrf.mxu0
    %v1645 = vadd.f32 0.0, %v1644
    %1646 = vmatmul.f32.gmra.mxu0 %v1625
    %v1647 = vpop.f32.mrf.mxu0
    %v1648 = vadd.f32 0.0, %v1647
    %1649 = vdwg.mxu0
    %1650 = vmatpush.msra.mxu0 0.0
    %1651 = vmatpush.msra.mxu0 0.0
    %1652 = vmatpush.msra.mxu0 0.0
    %1653 = vmatpush.msra.mxu0 0.0
    %1654 = vmatpush.msra.mxu0 0.0
    %1655 = vmatpush.msra.mxu0 0.0
    %1656 = vmatpush.msra.mxu0 0.0
    %1657 = vmatpush.msra.mxu0 0.0
    %1658 = vmatpush.msra.mxu0 0.0
    %1659 = vmatpush.msra.mxu0 0.0
    %1660 = vmatpush.msra.mxu0 0.0
    %1661 = vmatpush.msra.mxu0 0.0
    %1662 = vmatpush.msra.mxu0 %v1619
    %1663 = vmatpush.msra.mxu0 %v1617
    %1664 = vmatpush.msra.mxu0 %v1615
    %1665 = vmatpush.msra.mxu0 %v1613
    %1666 = vmatmul.f32.gmra.mxu0 %v1622
    %v1667 = vpop.f32.mrf.mxu0
    %v1668 = vadd.f32 0.0, %v1667
    %1669 = vmatmul.f32.gmra.mxu0 %v1625
    %v1670 = vpop.f32.mrf.mxu0
    %v1671 = vadd.f32 0.0, %v1670
    %1672 = vdwg.mxu0
    %v1673 = vld [vmem:[%s4 + $0x81] ss:$0 sm:$0xff]
    %v1674 = vld [vmem:[%s4 + $0xc0] sm:$0xff]
    %vm1675 = vcmask 130048
    %v1677 = vsel %vm1675, %v1674, 0
    %1679 = vmatpush.msra.mxu0 0.0
    %1680 = vmatpush.msra.mxu0 0.0
    %1681 = vmatpush.msra.mxu0 0.0
    %1682 = vmatpush.msra.mxu0 0.0
    %1683 = vmatpush.msra.mxu0 0.0
    %1684 = vmatpush.msra.mxu0 0.0
    %1685 = vmatpush.msra.mxu0 0.0
    %1686 = vmatpush.msra.mxu0 0.0
    %1687 = vmatpush.msra.mxu0 0.0
    %1688 = vmatpush.msra.mxu0 0.0
    %1689 = vmatpush.msra.mxu0 0.0
    %1690 = vmatpush.msra.mxu0 0.0
    %1691 = vmatpush.msra.mxu0 0.0
    %1692 = vmatpush.msra.mxu0 0.0
    %1693 = vmatpush.msra.mxu0 %v1648
    %1694 = vmatpush.msra.mxu0 %v1645
    %1695 = vmatmul.f32.gmra.mxu0 %v1677
    %v1696 = vpop.f32.mrf.mxu0
    %v1697 = vadd.f32 0.0, %v1696
    %1698 = vdwg.mxu0
    %v1699 = vadd.f32 %v1673, %v1697
    %v1700 = vld [vmem:[%s4 + $0xd0] sm:$0xff]
    %1703 = vrot.lane.b32.xlu0 %v1645, 96
    %v1704 = vpop.permute.xlu0 %1703
    %1705 = vrot.lane.b32.xlu0 %v1648, 96
    %v1706 = vpop.permute.xlu0 %1705
    %v1710 = vsel %vm1675, %v1700, 0
    %1712 = vmatpush.msra.mxu0 0.0
    %1713 = vmatpush.msra.mxu0 0.0
    %1714 = vmatpush.msra.mxu0 0.0
    %1715 = vmatpush.msra.mxu0 0.0
    %1716 = vmatpush.msra.mxu0 0.0
    %1717 = vmatpush.msra.mxu0 0.0
    %1718 = vmatpush.msra.mxu0 0.0
    %1719 = vmatpush.msra.mxu0 0.0
    %1720 = vmatpush.msra.mxu0 0.0
    %1721 = vmatpush.msra.mxu0 0.0
    %1722 = vmatpush.msra.mxu0 0.0
    %1723 = vmatpush.msra.mxu0 0.0
    %1724 = vmatpush.msra.mxu0 0.0
    %1725 = vmatpush.msra.mxu0 0.0
    %1726 = vmatpush.msra.mxu0 %v1706
    %1727 = vmatpush.msra.mxu0 %v1704
    %1728 = vmatmul.f32.gmra.mxu0 %v1710
    %v1729 = vpop.f32.mrf.mxu0
    %v1730 = vadd.f32 0.0, %v1729
    %1731 = vdwg.mxu0
    %v1732 = vadd.f32 %v1699, %v1730
    %v1733 = vld [vmem:[%s4 + $0xe0] sm:$0xff]
    %1734 = vrot.lane.b32.xlu0 %v1645, 64
    %v1735 = vpop.permute.xlu0 %1734
    %1736 = vrot.lane.b32.xlu0 %v1648, 64
    %v1737 = vpop.permute.xlu0 %1736
    %v1741 = vsel %vm1675, %v1733, 0
    %1743 = vmatpush.msra.mxu0 0.0
    %1744 = vmatpush.msra.mxu0 0.0
    %1745 = vmatpush.msra.mxu0 0.0
    %1746 = vmatpush.msra.mxu0 0.0
    %1747 = vmatpush.msra.mxu0 0.0
    %1748 = vmatpush.msra.mxu0 0.0
    %1749 = vmatpush.msra.mxu0 0.0
    %1750 = vmatpush.msra.mxu0 0.0
    %1751 = vmatpush.msra.mxu0 0.0
    %1752 = vmatpush.msra.mxu0 0.0
    %1753 = vmatpush.msra.mxu0 0.0
    %1754 = vmatpush.msra.mxu0 0.0
    %1755 = vmatpush.msra.mxu0 0.0
    %1756 = vmatpush.msra.mxu0 0.0
    %1757 = vmatpush.msra.mxu0 %v1737
    %1758 = vmatpush.msra.mxu0 %v1735
    %1759 = vmatmul.f32.gmra.mxu0 %v1741
    %v1760 = vpop.f32.mrf.mxu0
    %v1761 = vadd.f32 0.0, %v1760
    %1762 = vdwg.mxu0
    %v1763 = vadd.f32 %v1732, %v1761
    %v1764 = vld [vmem:[%s4 + $0xf0] sm:$0xff]
    %1765 = vrot.lane.b32.xlu0 %v1645, 32
    %v1766 = vpop.permute.xlu0 %1765
    %1767 = vrot.lane.b32.xlu0 %v1648, 32
    %v1768 = vpop.permute.xlu0 %1767
    %v1772 = vsel %vm1675, %v1764, 0
    %1774 = vmatpush.msra.mxu0 0.0
    %1775 = vmatpush.msra.mxu0 0.0
    %1776 = vmatpush.msra.mxu0 0.0
    %1777 = vmatpush.msra.mxu0 0.0
    %1778 = vmatpush.msra.mxu0 0.0
    %1779 = vmatpush.msra.mxu0 0.0
    %1780 = vmatpush.msra.mxu0 0.0
    %1781 = vmatpush.msra.mxu0 0.0
    %1782 = vmatpush.msra.mxu0 0.0
    %1783 = vmatpush.msra.mxu0 0.0
    %1784 = vmatpush.msra.mxu0 0.0
    %1785 = vmatpush.msra.mxu0 0.0
    %1786 = vmatpush.msra.mxu0 0.0
    %1787 = vmatpush.msra.mxu0 0.0
    %1788 = vmatpush.msra.mxu0 %v1768
    %1789 = vmatpush.msra.mxu0 %v1766
    %1790 = vmatmul.f32.gmra.mxu0 %v1772
    %v1791 = vpop.f32.mrf.mxu0
    %v1792 = vadd.f32 0.0, %v1791
    %1793 = vdwg.mxu0
    %v1794 = vadd.f32 %v1763, %v1792
    %v1795 = vld [vmem:[%s4 + $0x100] sm:$0xff]
    %v1797 = vsel %vm1675, %v1795, 0
    %1799 = vmatpush.msra.mxu0 0.0
    %1800 = vmatpush.msra.mxu0 0.0
    %1801 = vmatpush.msra.mxu0 0.0
    %1802 = vmatpush.msra.mxu0 0.0
    %1803 = vmatpush.msra.mxu0 0.0
    %1804 = vmatpush.msra.mxu0 0.0
    %1805 = vmatpush.msra.mxu0 0.0
    %1806 = vmatpush.msra.mxu0 0.0
    %1807 = vmatpush.msra.mxu0 0.0
    %1808 = vmatpush.msra.mxu0 0.0
    %1809 = vmatpush.msra.mxu0 0.0
    %1810 = vmatpush.msra.mxu0 0.0
    %1811 = vmatpush.msra.mxu0 0.0
    %1812 = vmatpush.msra.mxu0 0.0
    %1813 = vmatpush.msra.mxu0 %v1671
    %1814 = vmatpush.msra.mxu0 %v1668
    %1815 = vmatmul.f32.gmra.mxu0 %v1797
    %v1816 = vpop.f32.mrf.mxu0
    %v1817 = vadd.f32 0.0, %v1816
    %1818 = vdwg.mxu0
    %v1819 = vadd.f32 %v1794, %v1817
    %vm1820 = vcmp.ge.f32.partialorder %v1819, 0.0
    %v1821 = vmul.f32 %v1819, 0.2
    %v1822 = vsel %vm1820, %v1819, %v1821
    %v1823 = vsel %vm1620, %v1822, 0.0
    %v1824 = vrot.slane %v1823, 4
    %v1825 = vadd.f32 %v1823, %v1824
    %v1826 = vrot.slane %v1825, 2
    %v1827 = vadd.f32 %v1825, %v1826
    %v1828 = vrot.slane %v1827, 1
    %v1829 = vadd.f32 %v1827, %v1828
    %v1830 = vrcp.pop 8.0
    %v1831 = vmul.f32 8.0, %v1830
    %v1832 = vsub.f32 1.0, %v1831
    %v1833 = vmul.f32 %v1830, %v1832
    %v1834 = vadd.f32 %v1830, %v1833
    %vm1835 = vweird.f32 %v1830
    %v1836 = vsel %vm1835, %v1830, %v1834
    %v1837 = vmul.f32 %v1829, %v1836
    %v1838 = vsub.f32 %v1822, %v1837
    %v1839 = vmul.f32 %v1838, %v1838
    %v1840 = vsel %vm1620, %v1839, 0.0
    %v1841 = vrot.slane %v1840, 4
    %v1842 = vadd.f32 %v1840, %v1841
    %v1843 = vrot.slane %v1842, 2
    %v1844 = vadd.f32 %v1842, %v1843
    %v1845 = vrot.slane %v1844, 1
    %v1846 = vadd.f32 %v1844, %v1845
    %v1847 = vmul.f32 %v1846, %v1836
    %v1848 = vadd.f32 %v1847, 1e-05
    %v1849 = vrsqrt.pop %v1848
    %v1850 = vmul.f32 %v1849, %v1848
    %v1851 = vmul.f32 %v1850, %v1849
    %v1852 = vmul.f32 0.5, %v1851
    %v1853 = vsub.f32 1.5, %v1852
    %v1854 = vmul.f32 %v1849, %v1853
    %vm1855 = vweird.f32 %v1848
    %vm1856 = vweird.f32 %v1849
    %vm1857 = vmor %vm1855, %vm1856
    %v1858 = vsel %vm1857, %v1849, %v1854
    %v1859 = vmul.f32 %v1838, %v1858
    %v1860 = vld [vmem:[%s4 + $0x40] sm:$0xff]
    %v1861 = vld [vmem:[%s4 + $0x50] sm:$0xff]
    %v1862 = vld [vmem:[%s4 + $0x60] sm:$0xff]
    %v1863 = vld [vmem:[%s4 + $0x70] sm:$0xff]
    %v1864 = vld [vmem:[%s4 + $0xb0] sm:$0xff]
    %v1866 = vsel %vm1620, %v1859, 0
    %1868 = vmatpush.msra.mxu0 0.0
    %1869 = vmatpush.msra.mxu0 0.0
    %1870 = vmatpush.msra.mxu0 0.0
    %1871 = vmatpush.msra.mxu0 0.0
    %1872 = vmatpush.msra.mxu0 0.0
    %1873 = vmatpush.msra.mxu0 0.0
    %1874 = vmatpush.msra.mxu0 0.0
    %1875 = vmatpush.msra.mxu0 0.0
    %1876 = vmatpush.msra.mxu0 0.0
    %1877 = vmatpush.msra.mxu0 0.0
    %1878 = vmatpush.msra.mxu0 0.0
    %1879 = vmatpush.msra.mxu0 0.0
    %1880 = vmatpush.msra.mxu0 %v1863
    %1881 = vmatpush.msra.mxu0 %v1862
    %1882 = vmatpush.msra.mxu0 %v1861
    %1883 = vmatpush.msra.mxu0 %v1860
    %1884 = vmatmul.f32.gmra.mxu0 %v1866
    %v1885 = vpop.f32.mrf.mxu0
    %v1886 = vadd.f32 %v1864, %v1885
    %1887 = vdwg.mxu0
    %s1888 = smul.u32 320, 1
    %s1889 = sshll.u32 %s1888, 4
    %1890 = dma.done [#allocation3], %s1889
    %v1891 = vld [vmem:[#allocation2] sm:$0xff]
    %v1892 = vld [vmem:[#allocation2 + $0x8] sm:$0xff]
    %v1893 = vld [vmem:[#allocation2 + $0x10] sm:$0xff]
    %v1894 = vld [vmem:[#allocation2 + $0x18] sm:$0xff]
    %v1895 = vld [vmem:[#allocation2 + $0x40] sm:$0xff]
    %v1896 = vld [vmem:[#allocation2 + $0x48] sm:$0xff]
    %v1897 = vld [vmem:[#allocation2 + $0x50] sm:$0xff]
    %v1898 = vld [vmem:[#allocation2 + $0x58] sm:$0xff]
    %v1899 = vld [vmem:[#allocation2 + $0x80] sm:$0xff]
    %v1900 = vld [vmem:[#allocation2 + $0x88] sm:$0xff]
    %v1901 = vld [vmem:[#allocation2 + $0x90] sm:$0xff]
    %v1902 = vld [vmem:[#allocation2 + $0x98] sm:$0xff]
    %v1903 = vld [vmem:[#allocation2 + $0xc0] sm:$0xff]
    %v1904 = vld [vmem:[#allocation2 + $0xc8] sm:$0xff]
    %v1905 = vld [vmem:[#allocation2 + $0xd0] sm:$0xff]
    %v1906 = vld [vmem:[#allocation2 + $0xd8] sm:$0xff]
    %v1907 = vld [vmem:[#allocation2 + $0xe0] sm:$0xff]
    %v1908 = vld [vmem:[#allocation2 + $0xe8] sm:$0xff]
    %v1909 = vld [vmem:[#allocation2 + $0xf0] sm:$0xff]
    %v1910 = vld [vmem:[#allocation2 + $0xf8] sm:$0xff]
    %v1911 = vld [vmem:[%s4 + $0x82] ss:$0 sm:$0xff]
    %v1913 = vsel %vm1620, %v1886, 0
    %1915 = vmatpush.msra.mxu0 0.0
    %1916 = vmatpush.msra.mxu0 0.0
    %1917 = vmatpush.msra.mxu0 0.0
    %1918 = vmatpush.msra.mxu0 0.0
    %1919 = vmatpush.msra.mxu0 0.0
    %1920 = vmatpush.msra.mxu0 0.0
    %1921 = vmatpush.msra.mxu0 0.0
    %1922 = vmatpush.msra.mxu0 0.0
    %1923 = vmatpush.msra.mxu0 0.0
    %1924 = vmatpush.msra.mxu0 0.0
    %1925 = vmatpush.msra.mxu0 0.0
    %1926 = vmatpush.msra.mxu0 0.0
    %1927 = vmatpush.msra.mxu0 %v1894
    %1928 = vmatpush.msra.mxu0 %v1893
    %1929 = vmatpush.msra.mxu0 %v1892
    %1930 = vmatpush.msra.mxu0 %v1891
    %1931 = vmatmul.f32.gmra.mxu0 %v1913
    %v1932 = vpop.f32.mrf.mxu0
    %v1933 = vadd.f32 %v1911, %v1932
    %1934 = vdwg.mxu0
    %v1935 = vld [vmem:[%s4 + $0x84] ss:$0 sm:$0xff]
    %1937 = vrot.lane.b32.xlu0 %v1933, 96
    %v1938 = vpop.permute.xlu0 %1937
    %vm1939 = vcmask 64512
    %v1940 = vsel %vm1939, %v1933, 0
    %v1942 = vsel %vm1939, %v1938, 0
    %1944 = vmatpush.xpose.msra.mxu0 0.0
    %1945 = vmatpush.xpose.msra.mxu0 0.0
    %1946 = vmatpush.xpose.msra.mxu0 0.0
    %1947 = vmatpush.xpose.msra.mxu0 0.0
    %1948 = vmatpush.xpose.msra.mxu0 0.0
    %1949 = vmatpush.xpose.msra.mxu0 0.0
    %1950 = vmatpush.xpose.msra.mxu0 0.0
    %1951 = vmatpush.xpose.msra.mxu0 0.0
    %1952 = vmatpush.xpose.msra.mxu0 0.0
    %1953 = vmatpush.xpose.msra.mxu0 0.0
    %1954 = vmatpush.xpose.msra.mxu0 0.0
    %1955 = vmatpush.xpose.msra.mxu0 0.0
    %1956 = vmatpush.xpose.msra.mxu0 0.0
    %1957 = vmatpush.xpose.msra.mxu0 0.0
    %1958 = vmatpush.xpose.msra.mxu0 0.0
    %1959 = vmatpush.xpose.msra.mxu0 %v1942
    %1960 = vmatmul.f32.gmra.mxu0 %v1940
    %v1961 = vpop.f32.mrf.mxu0
    %v1962 = vadd.f32 0.0, %v1961
    %1963 = vdwg.mxu0
    %v1964 = vmul.f32 %v1962, 0.35355338
    %v1965 = vsel %vm1939, %v1964, -inf
    %1966 = vmax.xlane.f32.xlu0 %v1965
    %v1967 = vpop.xlane.xlu0 %1966
    %v1968 = vsub.f32 %v1964, %v1967
    %v1969 = vmul.f32 %v1968, 1.442695
    %v1970 = vpow.pop %v1969
    %v1971 = vsel %vm1939, %v1970, 0.0
    %1972 = vadd.xlane.f32.xlu0 %v1971
    %v1973 = vpop.xlane.xlu0 %1972
    %v1974 = vrcp.pop %v1973
    %v1975 = vmul.f32 %v1970, %v1974
    %1976 = vrot.lane.b32.xlu0 %v1933, 64
    %v1977 = vpop.permute.xlu0 %1976
    %v1980 = vsel %vm1939, %v1975, 0
    %1982 = vmatpush.msra.mxu0 0.0
    %1983 = vmatpush.msra.mxu0 0.0
    %1984 = vmatpush.msra.mxu0 0.0
    %1985 = vmatpush.msra.mxu0 0.0
    %1986 = vmatpush.msra.mxu0 0.0
    %1987 = vmatpush.msra.mxu0 0.0
    %1988 = vmatpush.msra.mxu0 0.0
    %1989 = vmatpush.msra.mxu0 0.0
    %1990 = vmatpush.msra.mxu0 0.0
    %1991 = vmatpush.msra.mxu0 0.0
    %1992 = vmatpush.msra.mxu0 0.0
    %1993 = vmatpush.msra.mxu0 0.0
    %1994 = vmatpush.msra.mxu0 0.0
    %1995 = vmatpush.msra.mxu0 0.0
    %1996 = vmatpush.msra.mxu0 0.0
    %1997 = vmatpush.msra.mxu0 %v1977
    %1998 = vmatmul.f32.gmra.mxu0 %v1980
    %v1999 = vpop.f32.mrf.mxu0
    %v2000 = vadd.f32 0.0, %v1999
    %2001 = vdwg.mxu0
    %v2003 = vsel %vm1939, %v2000, 0
    %2005 = vmatpush.msra.mxu0 0.0
    %2006 = vmatpush.msra.mxu0 0.0
    %2007 = vmatpush.msra.mxu0 0.0
    %2008 = vmatpush.msra.mxu0 0.0
    %2009 = vmatpush.msra.mxu0 0.0
    %2010 = vmatpush.msra.mxu0 0.0
    %2011 = vmatpush.msra.mxu0 0.0
    %2012 = vmatpush.msra.mxu0 0.0
    %2013 = vmatpush.msra.mxu0 0.0
    %2014 = vmatpush.msra.mxu0 0.0
    %2015 = vmatpush.msra.mxu0 0.0
    %2016 = vmatpush.msra.mxu0 0.0
    %2017 = vmatpush.msra.mxu0 0.0
    %2018 = vmatpush.msra.mxu0 0.0
    %2019 = vmatpush.msra.mxu0 0.0
    %2020 = vmatpush.msra.mxu0 %v1895
    %2021 = vmatmul.f32.gmra.mxu0 %v2003
    %v2022 = vpop.f32.mrf.mxu0
    %v2023 = vadd.f32 0.0, %v2022
    %2024 = vdwg.mxu0
    %v2025 = vadd.f32 %v1935, %v2023
    %2026 = vrot.lane.b32.xlu0 %v1933, 120
    %v2027 = vpop.permute.xlu0 %2026
    %2028 = vrot.lane.b32.xlu0 %v1933, 88
    %v2029 = vpop.permute.xlu0 %2028
    %v2030 = vsel %vm1939, %v2027, 0
    %v2032 = vsel %vm1939, %v2029, 0
    %2034 = vmatpush.xpose.msra.mxu0 0.0
    %2035 = vmatpush.xpose.msra.mxu0 0.0
    %2036 = vmatpush.xpose.msra.mxu0 0.0
    %2037 = vmatpush.xpose.msra.mxu0 0.0
    %2038 = vmatpush.xpose.msra.mxu0 0.0
    %2039 = vmatpush.xpose.msra.mxu0 0.0
    %2040 = vmatpush.xpose.msra.mxu0 0.0
    %2041 = vmatpush.xpose.msra.mxu0 0.0
    %2042 = vmatpush.xpose.msra.mxu0 0.0
    %2043 = vmatpush.xpose.msra.mxu0 0.0
    %2044 = vmatpush.xpose.msra.mxu0 0.0
    %2045 = vmatpush.xpose.msra.mxu0 0.0
    %2046 = vmatpush.xpose.msra.mxu0 0.0
    %2047 = vmatpush.xpose.msra.mxu0 0.0
    %2048 = vmatpush.xpose.msra.mxu0 0.0
    %2049 = vmatpush.xpose.msra.mxu0 %v2032
    %2050 = vmatmul.f32.gmra.mxu0 %v2030
    %v2051 = vpop.f32.mrf.mxu0
    %v2052 = vadd.f32 0.0, %v2051
    %2053 = vdwg.mxu0
    %v2054 = vmul.f32 %v2052, 0.35355338
    %v2055 = vsel %vm1939, %v2054, -inf
    %2056 = vmax.xlane.f32.xlu0 %v2055
    %v2057 = vpop.xlane.xlu0 %2056
    %v2058 = vsub.f32 %v2054, %v2057
    %v2059 = vmul.f32 %v2058, 1.442695
    %v2060 = vpow.pop %v2059
    %v2061 = vsel %vm1939, %v2060, 0.0
    %2062 = vadd.xlane.f32.xlu0 %v2061
    %v2063 = vpop.xlane.xlu0 %2062
    %v2064 = vrcp.pop %v2063
    %v2065 = vmul.f32 %v2060, %v2064
    %2066 = vrot.lane.b32.xlu0 %v1933, 56
    %v2067 = vpop.permute.xlu0 %2066
    %v2070 = vsel %vm1939, %v2065, 0
    %2072 = vmatpush.msra.mxu0 0.0
    %2073 = vmatpush.msra.mxu0 0.0
    %2074 = vmatpush.msra.mxu0 0.0
    %2075 = vmatpush.msra.mxu0 0.0
    %2076 = vmatpush.msra.mxu0 0.0
    %2077 = vmatpush.msra.mxu0 0.0
    %2078 = vmatpush.msra.mxu0 0.0
    %2079 = vmatpush.msra.mxu0 0.0
    %2080 = vmatpush.msra.mxu0 0.0
    %2081 = vmatpush.msra.mxu0 0.0
    %2082 = vmatpush.msra.mxu0 0.0
    %2083 = vmatpush.msra.mxu0 0.0
    %2084 = vmatpush.msra.mxu0 0.0
    %2085 = vmatpush.msra.mxu0 0.0
    %2086 = vmatpush.msra.mxu0 0.0
    %2087 = vmatpush.msra.mxu0 %v2067
    %2088 = vmatmul.f32.gmra.mxu0 %v2070
    %v2089 = vpop.f32.mrf.mxu0
    %v2090 = vadd.f32 0.0, %v2089
    %2091 = vdwg.mxu0
    %v2093 = vsel %vm1939, %v2090, 0
    %2095 = vmatpush.msra.mxu0 0.0
    %2096 = vmatpush.msra.mxu0 0.0
    %2097 = vmatpush.msra.mxu0 0.0
    %2098 = vmatpush.msra.mxu0 0.0
    %2099 = vmatpush.msra.mxu0 0.0
    %2100 = vmatpush.msra.mxu0 0.0
    %2101 = vmatpush.msra.mxu0 0.0
    %2102 = vmatpush.msra.mxu0 0.0
    %2103 = vmatpush.msra.mxu0 0.0
    %2104 = vmatpush.msra.mxu0 0.0
    %2105 = vmatpush.msra.mxu0 0.0
    %2106 = vmatpush.msra.mxu0 0.0
    %2107 = vmatpush.msra.mxu0 0.0
    %2108 = vmatpush.msra.mxu0 0.0
    %2109 = vmatpush.msra.mxu0 0.0
    %2110 = vmatpush.msra.mxu0 %v1896
    %2111 = vmatmul.f32.gmra.mxu0 %v2093
    %v2112 = vpop.f32.mrf.mxu0
    %v2113 = vadd.f32 0.0, %v2112
    %2114 = vdwg.mxu0
    %v2115 = vadd.f32 %v2025, %v2113
    %2116 = vrot.lane.b32.xlu0 %v1933, 112
    %v2117 = vpop.permute.xlu0 %2116
    %2118 = vrot.lane.b32.xlu0 %v1933, 80
    %v2119 = vpop.permute.xlu0 %2118
    %v2120 = vsel %vm1939, %v2117, 0
    %v2122 = vsel %vm1939, %v2119, 0
    %2124 = vmatpush.xpose.msra.mxu0 0.0
    %2125 = vmatpush.xpose.msra.mxu0 0.0
    %2126 = vmatpush.xpose.msra.mxu0 0.0
    %2127 = vmatpush.xpose.msra.mxu0 0.0
    %2128 = vmatpush.xpose.msra.mxu0 0.0
    %2129 = vmatpush.xpose.msra.mxu0 0.0
    %2130 = vmatpush.xpose.msra.mxu0 0.0
    %2131 = vmatpush.xpose.msra.mxu0 0.0
    %2132 = vmatpush.xpose.msra.mxu0 0.0
    %2133 = vmatpush.xpose.msra.mxu0 0.0
    %2134 = vmatpush.xpose.msra.mxu0 0.0
    %2135 = vmatpush.xpose.msra.mxu0 0.0
    %2136 = vmatpush.xpose.msra.mxu0 0.0
    %2137 = vmatpush.xpose.msra.mxu0 0.0
    %2138 = vmatpush.xpose.msra.mxu0 0.0
    %2139 = vmatpush.xpose.msra.mxu0 %v2122
    %2140 = vmatmul.f32.gmra.mxu0 %v2120
    %v2141 = vpop.f32.mrf.mxu0
    %v2142 = vadd.f32 0.0, %v2141
    %2143 = vdwg.mxu0
    %v2144 = vmul.f32 %v2142, 0.35355338
    %v2145 = vsel %vm1939, %v2144, -inf
    %2146 = vmax.xlane.f32.xlu0 %v2145
    %v2147 = vpop.xlane.xlu0 %2146
    %v2148 = vsub.f32 %v2144, %v2147
    %v2149 = vmul.f32 %v2148, 1.442695
    %v2150 = vpow.pop %v2149
    %v2151 = vsel %vm1939, %v2150, 0.0
    %2152 = vadd.xlane.f32.xlu0 %v2151
    %v2153 = vpop.xlane.xlu0 %2152
    %v2154 = vrcp.pop %v2153
    %v2155 = vmul.f32 %v2150, %v2154
    %2156 = vrot.lane.b32.xlu0 %v1933, 48
    %v2157 = vpop.permute.xlu0 %2156
    %v2160 = vsel %vm1939, %v2155, 0
    %2162 = vmatpush.msra.mxu0 0.0
    %2163 = vmatpush.msra.mxu0 0.0
    %2164 = vmatpush.msra.mxu0 0.0
    %2165 = vmatpush.msra.mxu0 0.0
    %2166 = vmatpush.msra.mxu0 0.0
    %2167 = vmatpush.msra.mxu0 0.0
    %2168 = vmatpush.msra.mxu0 0.0
    %2169 = vmatpush.msra.mxu0 0.0
    %2170 = vmatpush.msra.mxu0 0.0
    %2171 = vmatpush.msra.mxu0 0.0
    %2172 = vmatpush.msra.mxu0 0.0
    %2173 = vmatpush.msra.mxu0 0.0
    %2174 = vmatpush.msra.mxu0 0.0
    %2175 = vmatpush.msra.mxu0 0.0
    %2176 = vmatpush.msra.mxu0 0.0
    %2177 = vmatpush.msra.mxu0 %v2157
    %2178 = vmatmul.f32.gmra.mxu0 %v2160
    %v2179 = vpop.f32.mrf.mxu0
    %v2180 = vadd.f32 0.0, %v2179
    %2181 = vdwg.mxu0
    %v2183 = vsel %vm1939, %v2180, 0
    %2185 = vmatpush.msra.mxu0 0.0
    %2186 = vmatpush.msra.mxu0 0.0
    %2187 = vmatpush.msra.mxu0 0.0
    %2188 = vmatpush.msra.mxu0 0.0
    %2189 = vmatpush.msra.mxu0 0.0
    %2190 = vmatpush.msra.mxu0 0.0
    %2191 = vmatpush.msra.mxu0 0.0
    %2192 = vmatpush.msra.mxu0 0.0
    %2193 = vmatpush.msra.mxu0 0.0
    %2194 = vmatpush.msra.mxu0 0.0
    %2195 = vmatpush.msra.mxu0 0.0
    %2196 = vmatpush.msra.mxu0 0.0
    %2197 = vmatpush.msra.mxu0 0.0
    %2198 = vmatpush.msra.mxu0 0.0
    %2199 = vmatpush.msra.mxu0 0.0
    %2200 = vmatpush.msra.mxu0 %v1897
    %2201 = vmatmul.f32.gmra.mxu0 %v2183
    %v2202 = vpop.f32.mrf.mxu0
    %v2203 = vadd.f32 0.0, %v2202
    %2204 = vdwg.mxu0
    %v2205 = vadd.f32 %v2115, %v2203
    %2206 = vrot.lane.b32.xlu0 %v1933, 104
    %v2207 = vpop.permute.xlu0 %2206
    %2208 = vrot.lane.b32.xlu0 %v1933, 72
    %v2209 = vpop.permute.xlu0 %2208
    %v2210 = vsel %vm1939, %v2207, 0
    %v2212 = vsel %vm1939, %v2209, 0
    %2214 = vmatpush.xpose.msra.mxu0 0.0
    %2215 = vmatpush.xpose.msra.mxu0 0.0
    %2216 = vmatpush.xpose.msra.mxu0 0.0
    %2217 = vmatpush.xpose.msra.mxu0 0.0
    %2218 = vmatpush.xpose.msra.mxu0 0.0
    %2219 = vmatpush.xpose.msra.mxu0 0.0
    %2220 = vmatpush.xpose.msra.mxu0 0.0
    %2221 = vmatpush.xpose.msra.mxu0 0.0
    %2222 = vmatpush.xpose.msra.mxu0 0.0
    %2223 = vmatpush.xpose.msra.mxu0 0.0
    %2224 = vmatpush.xpose.msra.mxu0 0.0
    %2225 = vmatpush.xpose.msra.mxu0 0.0
    %2226 = vmatpush.xpose.msra.mxu0 0.0
    %2227 = vmatpush.xpose.msra.mxu0 0.0
    %2228 = vmatpush.xpose.msra.mxu0 0.0
    %2229 = vmatpush.xpose.msra.mxu0 %v2212
    %2230 = vmatmul.f32.gmra.mxu0 %v2210
    %v2231 = vpop.f32.mrf.mxu0
    %v2232 = vadd.f32 0.0, %v2231
    %2233 = vdwg.mxu0
    %v2234 = vmul.f32 %v2232, 0.35355338
    %v2235 = vsel %vm1939, %v2234, -inf
    %2236 = vmax.xlane.f32.xlu0 %v2235
    %v2237 = vpop.xlane.xlu0 %2236
    %v2238 = vsub.f32 %v2234, %v2237
    %v2239 = vmul.f32 %v2238, 1.442695
    %v2240 = vpow.pop %v2239
    %v2241 = vsel %vm1939, %v2240, 0.0
    %2242 = vadd.xlane.f32.xlu0 %v2241
    %v2243 = vpop.xlane.xlu0 %2242
    %v2244 = vrcp.pop %v2243
    %v2245 = vmul.f32 %v2240, %v2244
    %2246 = vrot.lane.b32.xlu0 %v1933, 40
    %v2247 = vpop.permute.xlu0 %2246
    %v2250 = vsel %vm1939, %v2245, 0
    %2252 = vmatpush.msra.mxu0 0.0
    %2253 = vmatpush.msra.mxu0 0.0
    %2254 = vmatpush.msra.mxu0 0.0
    %2255 = vmatpush.msra.mxu0 0.0
    %2256 = vmatpush.msra.mxu0 0.0
    %2257 = vmatpush.msra.mxu0 0.0
    %2258 = vmatpush.msra.mxu0 0.0
    %2259 = vmatpush.msra.mxu0 0.0
    %2260 = vmatpush.msra.mxu0 0.0
    %2261 = vmatpush.msra.mxu0 0.0
    %2262 = vmatpush.msra.mxu0 0.0
    %2263 = vmatpush.msra.mxu0 0.0
    %2264 = vmatpush.msra.mxu0 0.0
    %2265 = vmatpush.msra.mxu0 0.0
    %2266 = vmatpush.msra.mxu0 0.0
    %2267 = vmatpush.msra.mxu0 %v2247
    %2268 = vmatmul.f32.gmra.mxu0 %v2250
    %v2269 = vpop.f32.mrf.mxu0
    %v2270 = vadd.f32 0.0, %v2269
    %2271 = vdwg.mxu0
    %v2273 = vsel %vm1939, %v2270, 0
    %2275 = vmatpush.msra.mxu0 0.0
    %2276 = vmatpush.msra.mxu0 0.0
    %2277 = vmatpush.msra.mxu0 0.0
    %2278 = vmatpush.msra.mxu0 0.0
    %2279 = vmatpush.msra.mxu0 0.0
    %2280 = vmatpush.msra.mxu0 0.0
    %2281 = vmatpush.msra.mxu0 0.0
    %2282 = vmatpush.msra.mxu0 0.0
    %2283 = vmatpush.msra.mxu0 0.0
    %2284 = vmatpush.msra.mxu0 0.0
    %2285 = vmatpush.msra.mxu0 0.0
    %2286 = vmatpush.msra.mxu0 0.0
    %2287 = vmatpush.msra.mxu0 0.0
    %2288 = vmatpush.msra.mxu0 0.0
    %2289 = vmatpush.msra.mxu0 0.0
    %2290 = vmatpush.msra.mxu0 %v1898
    %2291 = vmatmul.f32.gmra.mxu0 %v2273
    %v2292 = vpop.f32.mrf.mxu0
    %v2293 = vadd.f32 0.0, %v2292
    %2294 = vdwg.mxu0
    %v2295 = vadd.f32 %v2205, %v2293
    %v2296 = vadd.f32 %v1886, %v2295
    %v2297 = vsel %vm1620, %v2296, 0.0
    %2298 = vadd.xlane.f32.xlu0 %v2297
    %v2299 = vpop.xlane.xlu0 %2298
    %v2300 = vrcp.pop 32.0
    %v2301 = vmul.f32 32.0, %v2300
    %v2302 = vsub.f32 1.0, %v2301
    %v2303 = vmul.f32 %v2300, %v2302
    %v2304 = vadd.f32 %v2300, %v2303
    %vm2305 = vweird.f32 %v2300
    %v2306 = vsel %vm2305, %v2300, %v2304
    %v2307 = vmul.f32 %v2299, %v2306
    %v2308 = vsub.f32 %v2296, %v2307
    %v2309 = vmul.f32 %v2308, %v2308
    %v2310 = vsel %vm1620, %v2309, 0.0
    %2311 = vadd.xlane.f32.xlu0 %v2310
    %v2312 = vpop.xlane.xlu0 %2311
    %v2313 = vmul.f32 %v2312, %v2306
    %v2314 = vadd.f32 %v2313, 1e-05
    %v2315 = vrsqrt.pop %v2314
    %v2316 = vmul.f32 %v2315, %v2314
    %v2317 = vmul.f32 %v2316, %v2315
    %v2318 = vmul.f32 0.5, %v2317
    %v2319 = vsub.f32 1.5, %v2318
    %v2320 = vmul.f32 %v2315, %v2319
    %vm2321 = vweird.f32 %v2314
    %vm2322 = vweird.f32 %v2315
    %vm2323 = vmor %vm2321, %vm2322
    %v2324 = vsel %vm2323, %v2315, %v2320
    %v2325 = vmul.f32 %v2308, %v2324
    %v2326 = vld [vmem:[%s4 + $0x86] ss:$0 sm:$0xff]
    %v2327 = vmul.f32 %v2325, %v2326
    %v2328 = vld [vmem:[%s4 + $0x90] ss:$0 sm:$0xff]
    %v2329 = vadd.f32 %v2327, %v2328
    %v2330 = vld [vmem:[%s4 + $0x92] ss:$0 sm:$0xff]
    %v2332 = vsel %vm1620, %v2329, 0
    %2334 = vmatpush.msra.mxu0 0.0
    %2335 = vmatpush.msra.mxu0 0.0
    %2336 = vmatpush.msra.mxu0 0.0
    %2337 = vmatpush.msra.mxu0 0.0
    %2338 = vmatpush.msra.mxu0 0.0
    %2339 = vmatpush.msra.mxu0 0.0
    %2340 = vmatpush.msra.mxu0 0.0
    %2341 = vmatpush.msra.mxu0 0.0
    %2342 = vmatpush.msra.mxu0 0.0
    %2343 = vmatpush.msra.mxu0 0.0
    %2344 = vmatpush.msra.mxu0 0.0
    %2345 = vmatpush.msra.mxu0 0.0
    %2346 = vmatpush.msra.mxu0 %v1902
    %2347 = vmatpush.msra.mxu0 %v1901
    %2348 = vmatpush.msra.mxu0 %v1900
    %2349 = vmatpush.msra.mxu0 %v1899
    %2350 = vmatmul.f32.gmra.mxu0 %v2332
    %v2351 = vpop.f32.mrf.mxu0
    %v2352 = vadd.f32 %v2330, %v2351
    %2353 = vdwg.mxu0
    %v2354 = vmax.f32 %v2352, 0.0
    %v2355 = vld [vmem:[%s4 + $0x94] ss:$0 sm:$0xff]
    %vm2356 = vcmask 523264
    %v2358 = vsel %vm2356, %v2354, 0
    %2360 = vmatpush.msra.mxu0 0.0
    %2361 = vmatpush.msra.mxu0 0.0
    %2362 = vmatpush.msra.mxu0 0.0
    %2363 = vmatpush.msra.mxu0 0.0
    %2364 = vmatpush.msra.mxu0 0.0
    %2365 = vmatpush.msra.mxu0 0.0
    %2366 = vmatpush.msra.mxu0 0.0
    %2367 = vmatpush.msra.mxu0 0.0
    %2368 = vmatpush.msra.mxu0 %v1910
    %2369 = vmatpush.msra.mxu0 %v1909
    %2370 = vmatpush.msra.mxu0 %v1908
    %2371 = vmatpush.msra.mxu0 %v1907
    %2372 = vmatpush.msra.mxu0 %v1906
    %2373 = vmatpush.msra.mxu0 %v1905
    %2374 = vmatpush.msra.mxu0 %v1904
    %2375 = vmatpush.msra.mxu0 %v1903
    %2376 = vmatmul.f32.gmra.mxu0 %v2358
    %v2377 = vpop.f32.mrf.mxu0
    %v2378 = vadd.f32 %v2355, %v2377
    %2379 = vdwg.mxu0
    %v2380 = vadd.f32 %v2329, %v2378
    %v2381 = vsel %vm1620, %v2380, 0.0
    %2382 = vadd.xlane.f32.xlu0 %v2381
    %v2383 = vpop.xlane.xlu0 %2382
    %v2384 = vmul.f32 %v2383, %v2306
    %v2385 = vsub.f32 %v2380, %v2384
    %v2386 = vmul.f32 %v2385, %v2385
    %v2387 = vsel %vm1620, %v2386, 0.0
    %2388 = vadd.xlane.f32.xlu0 %v2387
    %v2389 = vpop.xlane.xlu0 %2388
    %v2390 = vmul.f32 %v2389, %v2306
    %v2391 = vadd.f32 %v2390, 1e-05
    %v2392 = vrsqrt.pop %v2391
    %v2393 = vmul.f32 %v2392, %v2391
    %v2394 = vmul.f32 %v2393, %v2392
    %v2395 = vmul.f32 0.5, %v2394
    %v2396 = vsub.f32 1.5, %v2395
    %v2397 = vmul.f32 %v2392, %v2396
    %vm2398 = vweird.f32 %v2391
    %vm2399 = vweird.f32 %v2392
    %vm2400 = vmor %vm2398, %vm2399
    %v2401 = vsel %vm2400, %v2392, %v2397
    %v2402 = vmul.f32 %v2385, %v2401
    %v2403 = vld [vmem:[%s4 + $0x96] ss:$0 sm:$0xff]
    %v2404 = vmul.f32 %v2402, %v2403
    %v2405 = vld [vmem:[%s4 + $0xa0] ss:$0 sm:$0xff]
    %v2406 = vadd.f32 %v2404, %v2405
    %v2407 = vld [vmem:[#allocation2 + $0x20] sm:$0xff]
    %v2408 = vld [vmem:[#allocation2 + $0x28] sm:$0xff]
    %v2409 = vld [vmem:[#allocation2 + $0x30] sm:$0xff]
    %v2410 = vld [vmem:[#allocation2 + $0x38] sm:$0xff]
    %v2411 = vld [vmem:[#allocation2 + $0x60] sm:$0xff]
    %v2412 = vld [vmem:[#allocation2 + $0x68] sm:$0xff]
    %v2413 = vld [vmem:[#allocation2 + $0x70] sm:$0xff]
    %v2414 = vld [vmem:[#allocation2 + $0x78] sm:$0xff]
    %v2415 = vld [vmem:[#allocation2 + $0xa0] sm:$0xff]
    %v2416 = vld [vmem:[#allocation2 + $0xa8] sm:$0xff]
    %v2417 = vld [vmem:[#allocation2 + $0xb0] sm:$0xff]
    %v2418 = vld [vmem:[#allocation2 + $0xb8] sm:$0xff]
    %v2419 = vld [vmem:[#allocation2 + $0x100] sm:$0xff]
    %v2420 = vld [vmem:[#allocation2 + $0x108] sm:$0xff]
    %v2421 = vld [vmem:[#allocation2 + $0x110] sm:$0xff]
    %v2422 = vld [vmem:[#allocation2 + $0x118] sm:$0xff]
    %v2423 = vld [vmem:[#allocation2 + $0x120] sm:$0xff]
    %v2424 = vld [vmem:[#allocation2 + $0x128] sm:$0xff]
    %v2425 = vld [vmem:[#allocation2 + $0x130] sm:$0xff]
    %v2426 = vld [vmem:[#allocation2 + $0x138] sm:$0xff]
    %v2427 = vld [vmem:[%s4 + $0x83] ss:$0 sm:$0xff]
    %v2429 = vsel %vm1620, %v2406, 0
    %2431 = vmatpush.msra.mxu0 0.0
    %2432 = vmatpush.msra.mxu0 0.0
    %2433 = vmatpush.msra.mxu0 0.0
    %2434 = vmatpush.msra.mxu0 0.0
    %2435 = vmatpush.msra.mxu0 0.0
    %2436 = vmatpush.msra.mxu0 0.0
    %2437 = vmatpush.msra.mxu0 0.0
    %2438 = vmatpush.msra.mxu0 0.0
    %2439 = vmatpush.msra.mxu0 0.0
    %2440 = vmatpush.msra.mxu0 0.0
    %2441 = vmatpush.msra.mxu0 0.0
    %2442 = vmatpush.msra.mxu0 0.0
    %2443 = vmatpush.msra.mxu0 %v2410
    %2444 = vmatpush.msra.mxu0 %v2409
    %2445 = vmatpush.msra.mxu0 %v2408
    %2446 = vmatpush.msra.mxu0 %v2407
    %2447 = vmatmul.f32.gmra.mxu0 %v2429
    %v2448 = vpop.f32.mrf.mxu0
    %v2449 = vadd.f32 %v2427, %v2448
    %2450 = vdwg.mxu0
    %v2451 = vld [vmem:[%s4 + $0x85] ss:$0 sm:$0xff]
    %2453 = vrot.lane.b32.xlu0 %v2449, 96
    %v2454 = vpop.permute.xlu0 %2453
    %v2455 = vsel %vm1939, %v2449, 0
    %v2457 = vsel %vm1939, %v2454, 0
    %2459 = vmatpush.xpose.msra.mxu0 0.0
    %2460 = vmatpush.xpose.msra.mxu0 0.0
    %2461 = vmatpush.xpose.msra.mxu0 0.0
    %2462 = vmatpush.xpose.msra.mxu0 0.0
    %2463 = vmatpush.xpose.msra.mxu0 0.0
    %2464 = vmatpush.xpose.msra.mxu0 0.0
    %2465 = vmatpush.xpose.msra.mxu0 0.0
    %2466 = vmatpush.xpose.msra.mxu0 0.0
    %2467 = vmatpush.xpose.msra.mxu0 0.0
    %2468 = vmatpush.xpose.msra.mxu0 0.0
    %2469 = vmatpush.xpose.msra.mxu0 0.0
    %2470 = vmatpush.xpose.msra.mxu0 0.0
    %2471 = vmatpush.xpose.msra.mxu0 0.0
    %2472 = vmatpush.xpose.msra.mxu0 0.0
    %2473 = vmatpush.xpose.msra.mxu0 0.0
    %2474 = vmatpush.xpose.msra.mxu0 %v2457
    %2475 = vmatmul.f32.gmra.mxu0 %v2455
    %v2476 = vpop.f32.mrf.mxu0
    %v2477 = vadd.f32 0.0, %v2476
    %2478 = vdwg.mxu0
    %v2479 = vmul.f32 %v2477, 0.35355338
    %v2480 = vsel %vm1939, %v2479, -inf
    %2481 = vmax.xlane.f32.xlu0 %v2480
    %v2482 = vpop.xlane.xlu0 %2481
    %v2483 = vsub.f32 %v2479, %v2482
    %v2484 = vmul.f32 %v2483, 1.442695
    %v2485 = vpow.pop %v2484
    %v2486 = vsel %vm1939, %v2485, 0.0
    %2487 = vadd.xlane.f32.xlu0 %v2486
    %v2488 = vpop.xlane.xlu0 %2487
    %v2489 = vrcp.pop %v2488
    %v2490 = vmul.f32 %v2485, %v2489
    %2491 = vrot.lane.b32.xlu0 %v2449, 64
    %v2492 = vpop.permute.xlu0 %2491
    %v2495 = vsel %vm1939, %v2490, 0
    %2497 = vmatpush.msra.mxu0 0.0
    %2498 = vmatpush.msra.mxu0 0.0
    %2499 = vmatpush.msra.mxu0 0.0
    %2500 = vmatpush.msra.mxu0 0.0
    %2501 = vmatpush.msra.mxu0 0.0
    %2502 = vmatpush.msra.mxu0 0.0
    %2503 = vmatpush.msra.mxu0 0.0
    %2504 = vmatpush.msra.mxu0 0.0
    %2505 = vmatpush.msra.mxu0 0.0
    %2506 = vmatpush.msra.mxu0 0.0
    %2507 = vmatpush.msra.mxu0 0.0
    %2508 = vmatpush.msra.mxu0 0.0
    %2509 = vmatpush.msra.mxu0 0.0
    %2510 = vmatpush.msra.mxu0 0.0
    %2511 = vmatpush.msra.mxu0 0.0
    %2512 = vmatpush.msra.mxu0 %v2492
    %2513 = vmatmul.f32.gmra.mxu0 %v2495
    %v2514 = vpop.f32.mrf.mxu0
    %v2515 = vadd.f32 0.0, %v2514
    %2516 = vdwg.mxu0
    %v2518 = vsel %vm1939, %v2515, 0
    %2520 = vmatpush.msra.mxu0 0.0
    %2521 = vmatpush.msra.mxu0 0.0
    %2522 = vmatpush.msra.mxu0 0.0
    %2523 = vmatpush.msra.mxu0 0.0
    %2524 = vmatpush.msra.mxu0 0.0
    %2525 = vmatpush.msra.mxu0 0.0
    %2526 = vmatpush.msra.mxu0 0.0
    %2527 = vmatpush.msra.mxu0 0.0
    %2528 = vmatpush.msra.mxu0 0.0
    %2529 = vmatpush.msra.mxu0 0.0
    %2530 = vmatpush.msra.mxu0 0.0
    %2531 = vmatpush.msra.mxu0 0.0
    %2532 = vmatpush.msra.mxu0 0.0
    %2533 = vmatpush.msra.mxu0 0.0
    %2534 = vmatpush.msra.mxu0 0.0
    %2535 = vmatpush.msra.mxu0 %v2411
    %2536 = vmatmul.f32.gmra.mxu0 %v2518
    %v2537 = vpop.f32.mrf.mxu0
    %v2538 = vadd.f32 0.0, %v2537
    %2539 = vdwg.mxu0
    %v2540 = vadd.f32 %v2451, %v2538
    %2541 = vrot.lane.b32.xlu0 %v2449, 120
    %v2542 = vpop.permute.xlu0 %2541
    %2543 = vrot.lane.b32.xlu0 %v2449, 88
    %v2544 = vpop.permute.xlu0 %2543
    %v2545 = vsel %vm1939, %v2542, 0
    %v2547 = vsel %vm1939, %v2544, 0
    %2549 = vmatpush.xpose.msra.mxu0 0.0
    %2550 = vmatpush.xpose.msra.mxu0 0.0
    %2551 = vmatpush.xpose.msra.mxu0 0.0
    %2552 = vmatpush.xpose.msra.mxu0 0.0
    %2553 = vmatpush.xpose.msra.mxu0 0.0
    %2554 = vmatpush.xpose.msra.mxu0 0.0
    %2555 = vmatpush.xpose.msra.mxu0 0.0
    %2556 = vmatpush.xpose.msra.mxu0 0.0
    %2557 = vmatpush.xpose.msra.mxu0 0.0
    %2558 = vmatpush.xpose.msra.mxu0 0.0
    %2559 = vmatpush.xpose.msra.mxu0 0.0
    %2560 = vmatpush.xpose.msra.mxu0 0.0
    %2561 = vmatpush.xpose.msra.mxu0 0.0
    %2562 = vmatpush.xpose.msra.mxu0 0.0
    %2563 = vmatpush.xpose.msra.mxu0 0.0
    %2564 = vmatpush.xpose.msra.mxu0 %v2547
    %2565 = vmatmul.f32.gmra.mxu0 %v2545
    %v2566 = vpop.f32.mrf.mxu0
    %v2567 = vadd.f32 0.0, %v2566
    %2568 = vdwg.mxu0
    %v2569 = vmul.f32 %v2567, 0.35355338
    %v2570 = vsel %vm1939, %v2569, -inf
    %2571 = vmax.xlane.f32.xlu0 %v2570
    %v2572 = vpop.xlane.xlu0 %2571
    %v2573 = vsub.f32 %v2569, %v2572
    %v2574 = vmul.f32 %v2573, 1.442695
    %v2575 = vpow.pop %v2574
    %v2576 = vsel %vm1939, %v2575, 0.0
    %2577 = vadd.xlane.f32.xlu0 %v2576
    %v2578 = vpop.xlane.xlu0 %2577
    %v2579 = vrcp.pop %v2578
    %v2580 = vmul.f32 %v2575, %v2579
    %2581 = vrot.lane.b32.xlu0 %v2449, 56
    %v2582 = vpop.permute.xlu0 %2581
    %v2585 = vsel %vm1939, %v2580, 0
    %2587 = vmatpush.msra.mxu0 0.0
    %2588 = vmatpush.msra.mxu0 0.0
    %2589 = vmatpush.msra.mxu0 0.0
    %2590 = vmatpush.msra.mxu0 0.0
    %2591 = vmatpush.msra.mxu0 0.0
    %2592 = vmatpush.msra.mxu0 0.0
    %2593 = vmatpush.msra.mxu0 0.0
    %2594 = vmatpush.msra.mxu0 0.0
    %2595 = vmatpush.msra.mxu0 0.0
    %2596 = vmatpush.msra.mxu0 0.0
    %2597 = vmatpush.msra.mxu0 0.0
    %2598 = vmatpush.msra.mxu0 0.0
    %2599 = vmatpush.msra.mxu0 0.0
    %2600 = vmatpush.msra.mxu0 0.0
    %2601 = vmatpush.msra.mxu0 0.0
    %2602 = vmatpush.msra.mxu0 %v2582
    %2603 = vmatmul.f32.gmra.mxu0 %v2585
    %v2604 = vpop.f32.mrf.mxu0
    %v2605 = vadd.f32 0.0, %v2604
    %2606 = vdwg.mxu0
    %v2608 = vsel %vm1939, %v2605, 0
    %2610 = vmatpush.msra.mxu0 0.0
    %2611 = vmatpush.msra.mxu0 0.0
    %2612 = vmatpush.msra.mxu0 0.0
    %2613 = vmatpush.msra.mxu0 0.0
    %2614 = vmatpush.msra.mxu0 0.0
    %2615 = vmatpush.msra.mxu0 0.0
    %2616 = vmatpush.msra.mxu0 0.0
    %2617 = vmatpush.msra.mxu0 0.0
    %2618 = vmatpush.msra.mxu0 0.0
    %2619 = vmatpush.msra.mxu0 0.0
    %2620 = vmatpush.msra.mxu0 0.0
    %2621 = vmatpush.msra.mxu0 0.0
    %2622 = vmatpush.msra.mxu0 0.0
    %2623 = vmatpush.msra.mxu0 0.0
    %2624 = vmatpush.msra.mxu0 0.0
    %2625 = vmatpush.msra.mxu0 %v2412
    %2626 = vmatmul.f32.gmra.mxu0 %v2608
    %v2627 = vpop.f32.mrf.mxu0
    %v2628 = vadd.f32 0.0, %v2627
    %2629 = vdwg.mxu0
    %v2630 = vadd.f32 %v2540, %v2628
    %2631 = vrot.lane.b32.xlu0 %v2449, 112
    %v2632 = vpop.permute.xlu0 %2631
    %2633 = vrot.lane.b32.xlu0 %v2449, 80
    %v2634 = vpop.permute.xlu0 %2633
    %v2635 = vsel %vm1939, %v2632, 0
    %v2637 = vsel %vm1939, %v2634, 0
    %2639 = vmatpush.xpose.msra.mxu0 0.0
    %2640 = vmatpush.xpose.msra.mxu0 0.0
    %2641 = vmatpush.xpose.msra.mxu0 0.0
    %2642 = vmatpush.xpose.msra.mxu0 0.0
    %2643 = vmatpush.xpose.msra.mxu0 0.0
    %2644 = vmatpush.xpose.msra.mxu0 0.0
    %2645 = vmatpush.xpose.msra.mxu0 0.0
    %2646 = vmatpush.xpose.msra.mxu0 0.0
    %2647 = vmatpush.xpose.msra.mxu0 0.0
    %2648 = vmatpush.xpose.msra.mxu0 0.0
    %2649 = vmatpush.xpose.msra.mxu0 0.0
    %2650 = vmatpush.xpose.msra.mxu0 0.0
    %2651 = vmatpush.xpose.msra.mxu0 0.0
    %2652 = vmatpush.xpose.msra.mxu0 0.0
    %2653 = vmatpush.xpose.msra.mxu0 0.0
    %2654 = vmatpush.xpose.msra.mxu0 %v2637
    %2655 = vmatmul.f32.gmra.mxu0 %v2635
    %v2656 = vpop.f32.mrf.mxu0
    %v2657 = vadd.f32 0.0, %v2656
    %2658 = vdwg.mxu0
    %v2659 = vmul.f32 %v2657, 0.35355338
    %v2660 = vsel %vm1939, %v2659, -inf
    %2661 = vmax.xlane.f32.xlu0 %v2660
    %v2662 = vpop.xlane.xlu0 %2661
    %v2663 = vsub.f32 %v2659, %v2662
    %v2664 = vmul.f32 %v2663, 1.442695
    %v2665 = vpow.pop %v2664
    %v2666 = vsel %vm1939, %v2665, 0.0
    %2667 = vadd.xlane.f32.xlu0 %v2666
    %v2668 = vpop.xlane.xlu0 %2667
    %v2669 = vrcp.pop %v2668
    %v2670 = vmul.f32 %v2665, %v2669
    %2671 = vrot.lane.b32.xlu0 %v2449, 48
    %v2672 = vpop.permute.xlu0 %2671
    %v2675 = vsel %vm1939, %v2670, 0
    %2677 = vmatpush.msra.mxu0 0.0
    %2678 = vmatpush.msra.mxu0 0.0
    %2679 = vmatpush.msra.mxu0 0.0
    %2680 = vmatpush.msra.mxu0 0.0
    %2681 = vmatpush.msra.mxu0 0.0
    %2682 = vmatpush.msra.mxu0 0.0
    %2683 = vmatpush.msra.mxu0 0.0
    %2684 = vmatpush.msra.mxu0 0.0
    %2685 = vmatpush.msra.mxu0 0.0
    %2686 = vmatpush.msra.mxu0 0.0
    %2687 = vmatpush.msra.mxu0 0.0
    %2688 = vmatpush.msra.mxu0 0.0
    %2689 = vmatpush.msra.mxu0 0.0
    %2690 = vmatpush.msra.mxu0 0.0
    %2691 = vmatpush.msra.mxu0 0.0
    %2692 = vmatpush.msra.mxu0 %v2672
    %2693 = vmatmul.f32.gmra.mxu0 %v2675
    %v2694 = vpop.f32.mrf.mxu0
    %v2695 = vadd.f32 0.0, %v2694
    %2696 = vdwg.mxu0
    %v2698 = vsel %vm1939, %v2695, 0
    %2700 = vmatpush.msra.mxu0 0.0
    %2701 = vmatpush.msra.mxu0 0.0
    %2702 = vmatpush.msra.mxu0 0.0
    %2703 = vmatpush.msra.mxu0 0.0
    %2704 = vmatpush.msra.mxu0 0.0
    %2705 = vmatpush.msra.mxu0 0.0
    %2706 = vmatpush.msra.mxu0 0.0
    %2707 = vmatpush.msra.mxu0 0.0
    %2708 = vmatpush.msra.mxu0 0.0
    %2709 = vmatpush.msra.mxu0 0.0
    %2710 = vmatpush.msra.mxu0 0.0
    %2711 = vmatpush.msra.mxu0 0.0
    %2712 = vmatpush.msra.mxu0 0.0
    %2713 = vmatpush.msra.mxu0 0.0
    %2714 = vmatpush.msra.mxu0 0.0
    %2715 = vmatpush.msra.mxu0 %v2413
    %2716 = vmatmul.f32.gmra.mxu0 %v2698
    %v2717 = vpop.f32.mrf.mxu0
    %v2718 = vadd.f32 0.0, %v2717
    %2719 = vdwg.mxu0
    %v2720 = vadd.f32 %v2630, %v2718
    %2721 = vrot.lane.b32.xlu0 %v2449, 104
    %v2722 = vpop.permute.xlu0 %2721
    %2723 = vrot.lane.b32.xlu0 %v2449, 72
    %v2724 = vpop.permute.xlu0 %2723
    %v2725 = vsel %vm1939, %v2722, 0
    %v2727 = vsel %vm1939, %v2724, 0
    %2729 = vmatpush.xpose.msra.mxu0 0.0
    %2730 = vmatpush.xpose.msra.mxu0 0.0
    %2731 = vmatpush.xpose.msra.mxu0 0.0
    %2732 = vmatpush.xpose.msra.mxu0 0.0
    %2733 = vmatpush.xpose.msra.mxu0 0.0
    %2734 = vmatpush.xpose.msra.mxu0 0.0
    %2735 = vmatpush.xpose.msra.mxu0 0.0
    %2736 = vmatpush.xpose.msra.mxu0 0.0
    %2737 = vmatpush.xpose.msra.mxu0 0.0
    %2738 = vmatpush.xpose.msra.mxu0 0.0
    %2739 = vmatpush.xpose.msra.mxu0 0.0
    %2740 = vmatpush.xpose.msra.mxu0 0.0
    %2741 = vmatpush.xpose.msra.mxu0 0.0
    %2742 = vmatpush.xpose.msra.mxu0 0.0
    %2743 = vmatpush.xpose.msra.mxu0 0.0
    %2744 = vmatpush.xpose.msra.mxu0 %v2727
    %2745 = vmatmul.f32.gmra.mxu0 %v2725
    %v2746 = vpop.f32.mrf.mxu0
    %v2747 = vadd.f32 0.0, %v2746
    %2748 = vdwg.mxu0
    %v2749 = vmul.f32 %v2747, 0.35355338
    %v2750 = vsel %vm1939, %v2749, -inf
    %2751 = vmax.xlane.f32.xlu0 %v2750
    %v2752 = vpop.xlane.xlu0 %2751
    %v2753 = vsub.f32 %v2749, %v2752
    %v2754 = vmul.f32 %v2753, 1.442695
    %v2755 = vpow.pop %v2754
    %v2756 = vsel %vm1939, %v2755, 0.0
    %2757 = vadd.xlane.f32.xlu0 %v2756
    %v2758 = vpop.xlane.xlu0 %2757
    %v2759 = vrcp.pop %v2758
    %v2760 = vmul.f32 %v2755, %v2759
    %2761 = vrot.lane.b32.xlu0 %v2449, 40
    %v2762 = vpop.permute.xlu0 %2761
    %v2765 = vsel %vm1939, %v2760, 0
    %2767 = vmatpush.msra.mxu0 0.0
    %2768 = vmatpush.msra.mxu0 0.0
    %2769 = vmatpush.msra.mxu0 0.0
    %2770 = vmatpush.msra.mxu0 0.0
    %2771 = vmatpush.msra.mxu0 0.0
    %2772 = vmatpush.msra.mxu0 0.0
    %2773 = vmatpush.msra.mxu0 0.0
    %2774 = vmatpush.msra.mxu0 0.0
    %2775 = vmatpush.msra.mxu0 0.0
    %2776 = vmatpush.msra.mxu0 0.0
    %2777 = vmatpush.msra.mxu0 0.0
    %2778 = vmatpush.msra.mxu0 0.0
    %2779 = vmatpush.msra.mxu0 0.0
    %2780 = vmatpush.msra.mxu0 0.0
    %2781 = vmatpush.msra.mxu0 0.0
    %2782 = vmatpush.msra.mxu0 %v2762
    %2783 = vmatmul.f32.gmra.mxu0 %v2765
    %v2784 = vpop.f32.mrf.mxu0
    %v2785 = vadd.f32 0.0, %v2784
    %2786 = vdwg.mxu0
    %v2788 = vsel %vm1939, %v2785, 0
    %2790 = vmatpush.msra.mxu0 0.0
    %2791 = vmatpush.msra.mxu0 0.0
    %2792 = vmatpush.msra.mxu0 0.0
    %2793 = vmatpush.msra.mxu0 0.0
    %2794 = vmatpush.msra.mxu0 0.0
    %2795 = vmatpush.msra.mxu0 0.0
    %2796 = vmatpush.msra.mxu0 0.0
    %2797 = vmatpush.msra.mxu0 0.0
    %2798 = vmatpush.msra.mxu0 0.0
    %2799 = vmatpush.msra.mxu0 0.0
    %2800 = vmatpush.msra.mxu0 0.0
    %2801 = vmatpush.msra.mxu0 0.0
    %2802 = vmatpush.msra.mxu0 0.0
    %2803 = vmatpush.msra.mxu0 0.0
    %2804 = vmatpush.msra.mxu0 0.0
    %2805 = vmatpush.msra.mxu0 %v2414
    %2806 = vmatmul.f32.gmra.mxu0 %v2788
    %v2807 = vpop.f32.mrf.mxu0
    %v2808 = vadd.f32 0.0, %v2807
    %2809 = vdwg.mxu0
    %v2810 = vadd.f32 %v2720, %v2808
    %v2811 = vadd.f32 %v2406, %v2810
    %v2812 = vsel %vm1620, %v2811, 0.0
    %2813 = vadd.xlane.f32.xlu0 %v2812
    %v2814 = vpop.xlane.xlu0 %2813
    %v2815 = vmul.f32 %v2814, %v2306
    %v2816 = vsub.f32 %v2811, %v2815
    %v2817 = vmul.f32 %v2816, %v2816
    %v2818 = vsel %vm1620, %v2817, 0.0
    %2819 = vadd.xlane.f32.xlu0 %v2818
    %v2820 = vpop.xlane.xlu0 %2819
    %v2821 = vmul.f32 %v2820, %v2306
    %v2822 = vadd.f32 %v2821, 1e-05
    %v2823 = vrsqrt.pop %v2822
    %v2824 = vmul.f32 %v2823, %v2822
    %v2825 = vmul.f32 %v2824, %v2823
    %v2826 = vmul.f32 0.5, %v2825
    %v2827 = vsub.f32 1.5, %v2826
    %v2828 = vmul.f32 %v2823, %v2827
    %vm2829 = vweird.f32 %v2822
    %vm2830 = vweird.f32 %v2823
    %vm2831 = vmor %vm2829, %vm2830
    %v2832 = vsel %vm2831, %v2823, %v2828
    %v2833 = vmul.f32 %v2816, %v2832
    %v2834 = vld [vmem:[%s4 + $0x87] ss:$0 sm:$0xff]
    %v2835 = vmul.f32 %v2833, %v2834
    %v2836 = vld [vmem:[%s4 + $0x91] ss:$0 sm:$0xff]
    %v2837 = vadd.f32 %v2835, %v2836
    %v2838 = vld [vmem:[%s4 + $0x93] ss:$0 sm:$0xff]
    %v2840 = vsel %vm1620, %v2837, 0
    %2842 = vmatpush.msra.mxu0 0.0
    %2843 = vmatpush.msra.mxu0 0.0
    %2844 = vmatpush.msra.mxu0 0.0
    %2845 = vmatpush.msra.mxu0 0.0
    %2846 = vmatpush.msra.mxu0 0.0
    %2847 = vmatpush.msra.mxu0 0.0
    %2848 = vmatpush.msra.mxu0 0.0
    %2849 = vmatpush.msra.mxu0 0.0
    %2850 = vmatpush.msra.mxu0 0.0
    %2851 = vmatpush.msra.mxu0 0.0
    %2852 = vmatpush.msra.mxu0 0.0
    %2853 = vmatpush.msra.mxu0 0.0
    %2854 = vmatpush.msra.mxu0 %v2418
    %2855 = vmatpush.msra.mxu0 %v2417
    %2856 = vmatpush.msra.mxu0 %v2416
    %2857 = vmatpush.msra.mxu0 %v2415
    %2858 = vmatmul.f32.gmra.mxu0 %v2840
    %v2859 = vpop.f32.mrf.mxu0
    %v2860 = vadd.f32 %v2838, %v2859
    %2861 = vdwg.mxu0
    %v2862 = vmax.f32 %v2860, 0.0
    %v2863 = vld [vmem:[%s4 + $0x95] ss:$0 sm:$0xff]
    %v2865 = vsel %vm2356, %v2862, 0
    %2867 = vmatpush.msra.mxu0 0.0
    %2868 = vmatpush.msra.mxu0 0.0
    %2869 = vmatpush.msra.mxu0 0.0
    %2870 = vmatpush.msra.mxu0 0.0
    %2871 = vmatpush.msra.mxu0 0.0
    %2872 = vmatpush.msra.mxu0 0.0
    %2873 = vmatpush.msra.mxu0 0.0
    %2874 = vmatpush.msra.mxu0 0.0
    %2875 = vmatpush.msra.mxu0 %v2426
    %2876 = vmatpush.msra.mxu0 %v2425
    %2877 = vmatpush.msra.mxu0 %v2424
    %2878 = vmatpush.msra.mxu0 %v2423
    %2879 = vmatpush.msra.mxu0 %v2422
    %2880 = vmatpush.msra.mxu0 %v2421
    %2881 = vmatpush.msra.mxu0 %v2420
    %2882 = vmatpush.msra.mxu0 %v2419
    %2883 = vmatmul.f32.gmra.mxu0 %v2865
    %v2884 = vpop.f32.mrf.mxu0
    %v2885 = vadd.f32 %v2863, %v2884
    %2886 = vdwg.mxu0
    %v2887 = vadd.f32 %v2837, %v2885
    %v2888 = vsel %vm1620, %v2887, 0.0
    %2889 = vadd.xlane.f32.xlu0 %v2888
    %v2890 = vpop.xlane.xlu0 %2889
    %v2891 = vmul.f32 %v2890, %v2306
    %v2892 = vsub.f32 %v2887, %v2891
    %v2893 = vmul.f32 %v2892, %v2892
    %v2894 = vsel %vm1620, %v2893, 0.0
    %2895 = vadd.xlane.f32.xlu0 %v2894
    %v2896 = vpop.xlane.xlu0 %2895
    %v2897 = vmul.f32 %v2896, %v2306
    %v2898 = vadd.f32 %v2897, 1e-05
    %v2899 = vrsqrt.pop %v2898
    %v2900 = vmul.f32 %v2899, %v2898
    %v2901 = vmul.f32 %v2900, %v2899
    %v2902 = vmul.f32 0.5, %v2901
    %v2903 = vsub.f32 1.5, %v2902
    %v2904 = vmul.f32 %v2899, %v2903
    %vm2905 = vweird.f32 %v2898
    %vm2906 = vweird.f32 %v2899
    %vm2907 = vmor %vm2905, %vm2906
    %v2908 = vsel %vm2907, %v2899, %v2904
    %v2909 = vmul.f32 %v2892, %v2908
    %v2910 = vld [vmem:[%s4 + $0x97] ss:$0 sm:$0xff]
    %v2911 = vmul.f32 %v2909, %v2910
    %v2912 = vld [vmem:[%s4 + $0xa1] ss:$0 sm:$0xff]
    %v2913 = vadd.f32 %v2911, %v2912
    %2914 = vst.msk [vmem:[#allocation4] sm:$0xff] %vm1620, %v2913
    // Predicated region
    $region41: #{transformer_encoder_forward.1} parent=1 // pred_check
      _
    $region42: #{transformer_encoder_forward.1} parent=1 // pred_check_branch
      %2916 = sbr.rel (0) target = $region44
    $region43: #{transformer_encoder_forward.1} parent=1 // pred_region
      %2918 = vsyncadd [#allocation5], 0
      %s2920 = sshll.u32 [#allocation4], 4
      %s2921 = int_to_ptr.vmem [resolvable:$true] %s2920
      %s2922 = sshll.u32 %s6, 4
      %s2923 = int_to_ptr.hbm [resolvable:$true] %s2922
      %2925 = dma.vmem_to_hbm [thread:$0]  %s2921, 128, %s2923, [#allocation5]
    $region44: #{transformer_encoder_forward.1} parent=1 // pred_fallthru
      _
    // Predicated region
    $region45: #{transformer_encoder_forward.1} parent=1 // pred_check
      _
    $region46: #{transformer_encoder_forward.1} parent=1 // pred_check_branch
      %2927 = sbr.rel (0) target = $region48
    $region47: #{transformer_encoder_forward.1} parent=1 // pred_region
      %2929 = dma.done [#allocation5], 128
    $region48: #{transformer_encoder_forward.1} parent=1 // pred_fallthru
      _
    %2930 = vsyncpa [#allocation5], 1
  %2931 = vsyncmov [#allocation3]
  %s2932 = vpop.sfrf %2931
  %p2933 = scmp.eq.s32.totalorder %s2932, 0
  %p2934 = pneg %p2933
  %2936 = shalt.err (%p2934)

</llo_original>
